<compile_context>
chip_gen: v7x
topology: tpu7x:2x2x1
jax: 0.10.0
libtpu: 0.0.40
codegen_flags: <defaults>
</compile_context>

<pallas_src>
import jax
import jax.numpy as jnp
from jax.experimental import pallas as pl
from jax.experimental.pallas import tpu as pltpu

# ---------------- config (small, shape-consistent) ----------------
INPUT_DIM = 64            # flattened input size (C*H*W)
LAYER_DIMS = [64, 32]     # encoder hidden sizes; LAYER_DIMS[0] == INPUT_DIM
LATENT_DIM = 8
C, H, W = 1, 8, 8         # C*H*W == INPUT_DIM

PAD = 128                 # every feature dim padded to one full vreg lane width
TB = 256                  # batch tile (review: 256-512 rows per grid step)
BATCH = 512               # demo batch -> 2 "parallel" tiles (both TCs on v7x)

# Lane layout of the single packed input/output slab.
Z_OFF = INPUT_DIM                # 64: eps lanes (input) / z lanes (output)
MU_OFF = Z_OFF + LATENT_DIM      # 72: mu lanes (output)
LV_OFF = MU_OFF + LATENT_DIM     # 80: log_var lanes (output)
assert LV_OFF + LATENT_DIM <= PAD


# ---------------- in-kernel math helpers ----------------
def _gelu(x):
    # tanh-form GELU: the tanh goes to the EUP (otherwise-idle VLIW slot);
    # matches exact erf-GELU to ~3e-4 absolute.
    c = 0.7978845608028654  # sqrt(2/pi)
    return 0.5 * x * (1.0 + jnp.tanh(c * (x + 0.044715 * x * x * x)))


# ---------------- the Pallas kernel: full VAE forward on one batch tile ----------------
def vae_kernel(xe_ref, wstack_ref, wml_ref, bstack_ref, out_ref):
    f32, bf16 = jnp.float32, jnp.bfloat16

    b = bstack_ref[...]                          # (8, 128) f32, all biases
    xe = xe_ref[...]                             # (TB, 128) bf16: x | eps | 0

    def linear(act, w_idx, b_idx):
        # bf16 operands, f32 accumulation on the MXU; bias add in f32.
        w = wstack_ref[w_idx]                    # (128, 128) bf16
        out = jnp.dot(act.astype(bf16), w, preferred_element_type=f32)
        return out + b[b_idx:b_idx + 1, :]

    # ---- Encoder: Linear+GELU -> Linear+GELU ----
    # enc1 weight rows 64:128 are zero, so the packed eps lanes are ignored.
    h = _gelu(linear(xe, 0, 0))                  # enc L1
    h = _gelu(linear(h, 1, 1))                   # enc L2

    # ---- fused fc_mu | fc_log_var: one (128, 256) MXU push ----
    # Column layout (built wrapper-side):
    #   half A: mu @ lanes 64:72 (compute), mu @ 72:80 (pack), lv @ 80:88 (pack)
    #   half B: lv @ lanes 64:72 (compute, aligned with eps/z lanes)
    ml = jnp.dot(h.astype(bf16), wml_ref[...], preferred_element_type=f32)
    a = ml[:, 0:PAD] + b[2:3, :]                 # (TB,128): mu + pack payload
    lv_c = ml[:, PAD:2 * PAD] + b[3:4, :]        # (TB,128): log_var at 64:72

    # ---- Reparametrize at lanes 64:72: z = mu + eps * exp(0.5 * log_var) ----
    lane = jax.lax.broadcasted_iota(jnp.int32, a.shape, 1)
    eps = jnp.where((lane >= Z_OFF) & (lane < Z_OFF + LATENT_DIM),
                    xe.astype(f32), 0.0)
    # lanes 64:72 -> z; lanes 72:88 keep the mu/lv pack payload (eps=0, std=1);
    # every other lane stays exactly 0.
    zml = a + eps * jnp.exp(0.5 * lv_c)

    # ---- Decoder: (Linear+GELU) x3 -> output_layer Linear ----
    # dec1's real weight rows are placed at 64:72, so it reads z directly from
    # the packed slab and ignores the mu/lv payload lanes (zero rows).
    d = _gelu(linear(zml, 2, 4))                 # dec L1
    d = _gelu(linear(d, 3, 5))                   # dec L2
    d = _gelu(linear(d, 4, 6))                   # dec L3
    y = linear(d, 5, 7)                          # output_layer; 0 in lanes 64:128

    # ---- Single lane-dense epilogue store: y | z | mu | log_var ----
    out_ref[...] = y + zml


# ---------------- parameter init (deterministic, synthetic) ----------------
def _init_linear(key, in_dim, out_dim):
    kw, kb = jax.random.split(key)
    bound = 1.0 / (in_dim ** 0.5)
    w = jax.random.uniform(kw, (in_dim, out_dim), jnp.float32, -bound, bound)
    b = jax.random.uniform(kb, (out_dim,), jnp.float32, -bound, bound)
    return w, b


def init_vae_params(key):
    keys = jax.random.split(key, 8)
    return dict(
        enc1=_init_linear(keys[0], INPUT_DIM, LAYER_DIMS[0]),
        enc2=_init_linear(keys[1], LAYER_DIMS[0], LAYER_DIMS[1]),
        mu=_init_linear(keys[2], LAYER_DIMS[1], LATENT_DIM),
        lv=_init_linear(keys[3], LAYER_DIMS[1], LATENT_DIM),
        dec1=_init_linear(keys[4], LATENT_DIM, LAYER_DIMS[1]),
        dec2=_init_linear(keys[5], LAYER_DIMS[1], LAYER_DIMS[0]),
        dec3=_init_linear(keys[6], LAYER_DIMS[0], INPUT_DIM),
        out=_init_linear(keys[7], LAYER_DIMS[0], INPUT_DIM),
    )


def _place_w(w, row_off=0, col_off=0):
    """Embed a real weight block into a zero 128x128 matrix at a lane offset."""
    z = jnp.zeros((PAD, PAD), jnp.float32)
    return z.at[row_off:row_off + w.shape[0], col_off:col_off + w.shape[1]].set(w)


def _place_b(pairs):
    """Embed (bias, lane_offset) pairs into one zero 128-lane bias row."""
    z = jnp.zeros((PAD,), jnp.float32)
    for bvec, off in pairs:
        z = z.at[off:off + bvec.shape[0]].set(bvec)
    return z


def pack_params(p):
    """Pack weights/biases into 3 padded, lane-dense arrays (done once)."""
    wstack = jnp.stack([
        _place_w(p["enc1"][0]),
        _place_w(p["enc2"][0]),
        _place_w(p["dec1"][0], row_off=Z_OFF),   # dec1 reads z from lanes 64:72
        _place_w(p["dec2"][0]),
        _place_w(p["dec3"][0]),
        _place_w(p["out"][0]),
    ]).astype(jnp.bfloat16)                                      # (6,128,128)

    # Fused mu|log_var weight: one matmul emits the compute copies (lanes
    # 64:72 of each half) AND the pack copies (lanes 72:88 of half A).
    half_a = (_place_w(p["mu"][0], col_off=Z_OFF)
              + _place_w(p["mu"][0], col_off=MU_OFF)
              + _place_w(p["lv"][0], col_off=LV_OFF))
    half_b = _place_w(p["lv"][0], col_off=Z_OFF)
    wml = jnp.concatenate([half_a, half_b], axis=1).astype(jnp.bfloat16)  # (128,256)

    bstack = jnp.stack([
        _place_b([(p["enc1"][1], 0)]),
        _place_b([(p["enc2"][1], 0)]),
        _place_b([(p["mu"][1], Z_OFF), (p["mu"][1], MU_OFF), (p["lv"][1], LV_OFF)]),
        _place_b([(p["lv"][1], Z_OFF)]),
        _place_b([(p["dec1"][1], 0)]),
        _place_b([(p["dec2"][1], 0)]),
        _place_b([(p["dec3"][1], 0)]),
        _place_b([(p["out"][1], 0)]),
    ]).astype(jnp.float32)                                       # (8,128)
    return wstack, wml, bstack


# ---------------- wrapper ----------------
@jax.jit
def vae_forward(x, eps, wstack, wml, bstack):
    bsz = x.shape[0]
    b_pad = -(-bsz // TB) * TB

    # One bf16 input slab: x in lanes 0:64, eps in 64:72, zeros elsewhere.
    xe = jnp.concatenate(
        [x.reshape(bsz, -1).astype(jnp.bfloat16), eps.astype(jnp.bfloat16)],
        axis=1)
    xe = jnp.pad(xe, ((0, b_pad - bsz), (0, PAD - (INPUT_DIM + LATENT_DIM))))

    out = pl.pallas_call(
        vae_kernel,
        out_shape=jax.ShapeDtypeStruct((b_pad, PAD), jnp.float32),  # y|z|mu|lv
        grid_spec=pltpu.PrefetchScalarGridSpec(
            num_scalar_prefetch=0,
            grid=(b_pad // TB,),
            in_specs=[
                pl.BlockSpec((TB, PAD), lambda i: (i, 0)),           # x|eps tile
                pl.BlockSpec((6, PAD, PAD), lambda i: (0, 0, 0)),    # weights (resident)
                pl.BlockSpec((PAD, 2 * PAD), lambda i: (0, 0)),      # fused mu|lv weight
                pl.BlockSpec((8, PAD), lambda i: (0, 0)),            # all biases
            ],
            out_specs=pl.BlockSpec((TB, PAD), lambda i: (i, 0)),
        ),
        compiler_params=pltpu.CompilerParams(
            dimension_semantics=("parallel",),   # batch tiles -> both TCs on v7x
        ),
    )(xe, wstack, wml, bstack)

    y = out[:bsz, 0:INPUT_DIM]
    z = out[:bsz, Z_OFF:Z_OFF + LATENT_DIM]
    mu = out[:bsz, MU_OFF:MU_OFF + LATENT_DIM]
    lv = out[:bsz, LV_OFF:LV_OFF + LATENT_DIM]
    # PyTorch VAE.forward returns [x, y, z, mu, log_var]
    return [x, y, z, mu, lv]


# ---------------- pure-JAX reference (exact erf GELU, f32) ----------------
def vae_reference(x, eps, params):
    gelu = lambda v: jax.nn.gelu(v, approximate=False)
    xf = x.reshape(x.shape[0], -1)
    h = gelu(xf @ params["enc1"][0] + params["enc1"][1])
    h = gelu(h @ params["enc2"][0] + params["enc2"][1])
    mu = h @ params["mu"][0] + params["mu"][1]
    lv = h @ params["lv"][0] + params["lv"][1]
    z = mu + eps * jnp.exp(0.5 * lv)
    d = gelu(z @ params["dec1"][0] + params["dec1"][1])
    d = gelu(d @ params["dec2"][0] + params["dec2"][1])
    d = gelu(d @ params["dec3"][0] + params["dec3"][1])
    y = d @ params["out"][0] + params["out"][1]
    return [x, y, z, mu, lv]


if __name__ == "__main__":
    key = jax.random.PRNGKey(0)
    k_x, k_eps, k_p = jax.random.split(key, 3)

    x = jax.random.normal(k_x, (BATCH, C, H, W), jnp.float32)        # NCHW input
    # eps = torch.randn_like(std): sampled outside the kernel for determinism;
    # rounded to bf16 once so the kernel (bf16 input lanes) and the f32
    # reference consume bit-identical noise.
    # TODO(synk): could instead draw eps in-kernel via pltpu.prng_seed/prng_random_bits.
    eps = jax.random.normal(k_eps, (BATCH, LATENT_DIM), jnp.float32)
    eps = eps.astype(jnp.bfloat16).astype(jnp.float32)

    params = init_vae_params(k_p)
    wstack, wml, bstack = pack_params(params)

    outs = jax.block_until_ready(vae_forward(x, eps, wstack, wml, bstack))
    ref = vae_reference(x, eps, params)

    names = ["x", "y", "z", "mu", "log_var"]
    # Tolerance covers bf16-matmul operands + tanh-GELU approximation (~1e-2);
    # layout/packing bugs would show up as O(0.1..1) deviations.
    for name, got, want in zip(names, outs, ref):
        assert got.shape == want.shape, (name, got.shape, want.shape)
        err = float(jnp.max(jnp.abs(got - want)))
        assert jnp.allclose(got, want, atol=3e-2, rtol=3e-2), (name, err)

    print("KERNEL_OK")
</pallas_src>

<mosaic_0001>
module attributes {stable_mosaic.version = 11 : i64} {
  func.func @vae_kernel(%arg0: i32, %arg1: memref<256x128xbf16, #tpu.memory_space<vmem>>, %arg2: memref<6x128x128xbf16, #tpu.memory_space<vmem>>, %arg3: memref<128x256xbf16, #tpu.memory_space<vmem>>, %arg4: memref<8x128xf32, #tpu.memory_space<vmem>>, %arg5: memref<256x128xf32, #tpu.memory_space<vmem>>) attributes {dimension_semantics = [#tpu.dimension_semantics<parallel>], iteration_bounds = array<i64: 2>, scalar_prefetch = 0 : i64, scratch_operands = 0 : i64, tpu.core_type = #tpu.core_type<tc>, window_params = [{transform_indices = @transform_0, window_bounds = array<i64: 256, 128>}, {pipeline_mode = #tpu.pipeline_mode<synchronous>, transform_indices = @transform_1, window_bounds = array<i64: 6, 128, 128>}, {pipeline_mode = #tpu.pipeline_mode<synchronous>, transform_indices = @transform_2, window_bounds = array<i64: 128, 256>}, {pipeline_mode = #tpu.pipeline_mode<synchronous>, transform_indices = @transform_3, window_bounds = array<i64: 8, 128>}, {transform_indices = @transform_4, window_bounds = array<i64: 256, 128>}]} {
    %c0 = arith.constant 0 : index
    %c0_0 = arith.constant 0 : index
    %0 = vector.load %arg4[%c0, %c0_0] : memref<8x128xf32, #tpu.memory_space<vmem>>, vector<8x128xf32>
    %c0_1 = arith.constant 0 : index
    %c0_2 = arith.constant 0 : index
    %1 = vector.load %arg1[%c0_1, %c0_2] : memref<256x128xbf16, #tpu.memory_space<vmem>>, vector<256x128xbf16>
    %c0_3 = arith.constant 0 : index
    %c0_4 = arith.constant 0 : index
    %c0_5 = arith.constant 0 : index
    %2 = vector.load %arg2[%c0_3, %c0_4, %c0_5] : memref<6x128x128xbf16, #tpu.memory_space<vmem>>, vector<1x128x128xbf16>
    %3 = vector.shape_cast %2 : vector<1x128x128xbf16> to vector<128x128xbf16>
    %cst = arith.constant dense<0.000000e+00> : vector<256x128xf32>
    %4 = tpu.matmul %1, %3, %cst {dimension_numbers = #tpu.dot_dimension_numbers<[1], [0], [0], [1], [0, 0, 1, 1], [], []>} : vector<256x128xbf16>, vector<128x128xbf16>, vector<256x128xf32> -> vector<256x128xf32>
    %5 = vector.extract_strided_slice %0 {offsets = [0, 0], sizes = [1, 128], strides = [1, 1]} : vector<8x128xf32> to vector<1x128xf32>
    %6 = vector.broadcast %5 : vector<1x128xf32> to vector<256x128xf32>
    %7 = arith.addf %4, %6 : vector<256x128xf32>
    %cst_6 = arith.constant 5.000000e-01 : f32
    %8 = vector.broadcast %cst_6 : f32 to vector<256x128xf32>
    %9 = arith.mulf %8, %7 : vector<256x128xf32>
    %cst_7 = arith.constant 4.471500e-02 : f32
    %10 = vector.broadcast %cst_7 : f32 to vector<256x128xf32>
    %11 = arith.mulf %10, %7 : vector<256x128xf32>
    %12 = arith.mulf %11, %7 : vector<256x128xf32>
    %13 = arith.mulf %12, %7 : vector<256x128xf32>
    %14 = arith.addf %7, %13 : vector<256x128xf32>
    %cst_8 = arith.constant 0.797884583 : f32
    %15 = vector.broadcast %cst_8 : f32 to vector<256x128xf32>
    %16 = arith.mulf %15, %14 : vector<256x128xf32>
    %17 = math.tanh %16 : vector<256x128xf32>
    %cst_9 = arith.constant 1.000000e+00 : f32
    %18 = vector.broadcast %cst_9 : f32 to vector<256x128xf32>
    %19 = arith.addf %18, %17 : vector<256x128xf32>
    %20 = arith.mulf %9, %19 : vector<256x128xf32>
    %c1 = arith.constant 1 : index
    %c0_10 = arith.constant 0 : index
    %c0_11 = arith.constant 0 : index
    %21 = vector.load %arg2[%c1, %c0_10, %c0_11] : memref<6x128x128xbf16, #tpu.memory_space<vmem>>, vector<1x128x128xbf16>
    %22 = vector.shape_cast %21 : vector<1x128x128xbf16> to vector<128x128xbf16>
    %23 = arith.truncf %20 : vector<256x128xf32> to vector<256x128xbf16>
    %cst_12 = arith.constant dense<0.000000e+00> : vector<256x128xf32>
    %24 = tpu.matmul %23, %22, %cst_12 {dimension_numbers = #tpu.dot_dimension_numbers<[1], [0], [0], [1], [0, 0, 1, 1], [], []>} : vector<256x128xbf16>, vector<128x128xbf16>, vector<256x128xf32> -> vector<256x128xf32>
    %25 = vector.extract_strided_slice %0 {offsets = [1, 0], sizes = [1, 128], strides = [1, 1]} : vector<8x128xf32> to vector<1x128xf32>
    %26 = vector.broadcast %25 : vector<1x128xf32> to vector<256x128xf32>
    %27 = arith.addf %24, %26 : vector<256x128xf32>
    %cst_13 = arith.constant 5.000000e-01 : f32
    %28 = vector.broadcast %cst_13 : f32 to vector<256x128xf32>
    %29 = arith.mulf %28, %27 : vector<256x128xf32>
    %cst_14 = arith.constant 4.471500e-02 : f32
    %30 = vector.broadcast %cst_14 : f32 to vector<256x128xf32>
    %31 = arith.mulf %30, %27 : vector<256x128xf32>
    %32 = arith.mulf %31, %27 : vector<256x128xf32>
    %33 = arith.mulf %32, %27 : vector<256x128xf32>
    %34 = arith.addf %27, %33 : vector<256x128xf32>
    %cst_15 = arith.constant 0.797884583 : f32
    %35 = vector.broadcast %cst_15 : f32 to vector<256x128xf32>
    %36 = arith.mulf %35, %34 : vector<256x128xf32>
    %37 = math.tanh %36 : vector<256x128xf32>
    %cst_16 = arith.constant 1.000000e+00 : f32
    %38 = vector.broadcast %cst_16 : f32 to vector<256x128xf32>
    %39 = arith.addf %38, %37 : vector<256x128xf32>
    %40 = arith.mulf %29, %39 : vector<256x128xf32>
    %41 = arith.truncf %40 : vector<256x128xf32> to vector<256x128xbf16>
    %c0_17 = arith.constant 0 : index
    %c0_18 = arith.constant 0 : index
    %42 = vector.load %arg3[%c0_17, %c0_18] : memref<128x256xbf16, #tpu.memory_space<vmem>>, vector<128x256xbf16>
    %cst_19 = arith.constant dense<0.000000e+00> : vector<256x256xf32>
    %43 = tpu.matmul %41, %42, %cst_19 {dimension_numbers = #tpu.dot_dimension_numbers<[1], [0], [0], [1], [0, 0, 1, 1], [], []>} : vector<256x128xbf16>, vector<128x256xbf16>, vector<256x256xf32> -> vector<256x256xf32>
    %44 = vector.extract_strided_slice %43 {offsets = [0, 0], sizes = [256, 128], strides = [1, 1]} : vector<256x256xf32> to vector<256x128xf32>
    %45 = vector.extract_strided_slice %0 {offsets = [2, 0], sizes = [1, 128], strides = [1, 1]} : vector<8x128xf32> to vector<1x128xf32>
    %46 = vector.broadcast %45 : vector<1x128xf32> to vector<256x128xf32>
    %47 = arith.addf %44, %46 : vector<256x128xf32>
    %48 = vector.extract_strided_slice %43 {offsets = [0, 128], sizes = [256, 128], strides = [1, 1]} : vector<256x256xf32> to vector<256x128xf32>
    %49 = vector.extract_strided_slice %0 {offsets = [3, 0], sizes = [1, 128], strides = [1, 1]} : vector<8x128xf32> to vector<1x128xf32>
    %50 = vector.broadcast %49 : vector<1x128xf32> to vector<256x128xf32>
    %51 = arith.addf %48, %50 : vector<256x128xf32>
    %52 = tpu.iota {dimensions = array<i32: 1>} : vector<256x128xi32>
    %c64_i32 = arith.constant 64 : i32
    %53 = vector.broadcast %c64_i32 : i32 to vector<256x128xi32>
    %54 = arith.cmpi sge, %52, %53 : vector<256x128xi32>
    %c72_i32 = arith.constant 72 : i32
    %55 = vector.broadcast %c72_i32 : i32 to vector<256x128xi32>
    %56 = arith.cmpi slt, %52, %55 : vector<256x128xi32>
    %57 = arith.andi %54, %56 : vector<256x128xi1>
    %58 = arith.extf %1 : vector<256x128xbf16> to vector<256x128xf32>
    %cst_20 = arith.constant 0.000000e+00 : f32
    %59 = vector.broadcast %cst_20 : f32 to vector<256x128xf32>
    %60 = arith.select %57, %58, %59 : vector<256x128xi1>, vector<256x128xf32>
    %cst_21 = arith.constant 5.000000e-01 : f32
    %61 = vector.broadcast %cst_21 : f32 to vector<256x128xf32>
    %62 = arith.mulf %61, %51 : vector<256x128xf32>
    %63 = math.exp %62 : vector<256x128xf32>
    %64 = arith.mulf %60, %63 : vector<256x128xf32>
    %65 = arith.addf %47, %64 : vector<256x128xf32>
    %c2 = arith.constant 2 : index
    %c0_22 = arith.constant 0 : index
    %c0_23 = arith.constant 0 : index
    %66 = vector.load %arg2[%c2, %c0_22, %c0_23] : memref<6x128x128xbf16, #tpu.memory_space<vmem>>, vector<1x128x128xbf16>
    %67 = vector.shape_cast %66 : vector<1x128x128xbf16> to vector<128x128xbf16>
    %68 = arith.truncf %65 : vector<256x128xf32> to vector<256x128xbf16>
    %cst_24 = arith.constant dense<0.000000e+00> : vector<256x128xf32>
    %69 = tpu.matmul %68, %67, %cst_24 {dimension_numbers = #tpu.dot_dimension_numbers<[1], [0], [0], [1], [0, 0, 1, 1], [], []>} : vector<256x128xbf16>, vector<128x128xbf16>, vector<256x128xf32> -> vector<256x128xf32>
    %70 = vector.extract_strided_slice %0 {offsets = [4, 0], sizes = [1, 128], strides = [1, 1]} : vector<8x128xf32> to vector<1x128xf32>
    %71 = vector.broadcast %70 : vector<1x128xf32> to vector<256x128xf32>
    %72 = arith.addf %69, %71 : vector<256x128xf32>
    %cst_25 = arith.constant 5.000000e-01 : f32
    %73 = vector.broadcast %cst_25 : f32 to vector<256x128xf32>
    %74 = arith.mulf %73, %72 : vector<256x128xf32>
    %cst_26 = arith.constant 4.471500e-02 : f32
    %75 = vector.broadcast %cst_26 : f32 to vector<256x128xf32>
    %76 = arith.mulf %75, %72 : vector<256x128xf32>
    %77 = arith.mulf %76, %72 : vector<256x128xf32>
    %78 = arith.mulf %77, %72 : vector<256x128xf32>
    %79 = arith.addf %72, %78 : vector<256x128xf32>
    %cst_27 = arith.constant 0.797884583 : f32
    %80 = vector.broadcast %cst_27 : f32 to vector<256x128xf32>
    %81 = arith.mulf %80, %79 : vector<256x128xf32>
    %82 = math.tanh %81 : vector<256x128xf32>
    %cst_28 = arith.constant 1.000000e+00 : f32
    %83 = vector.broadcast %cst_28 : f32 to vector<256x128xf32>
    %84 = arith.addf %83, %82 : vector<256x128xf32>
    %85 = arith.mulf %74, %84 : vector<256x128xf32>
    %c3 = arith.constant 3 : index
    %c0_29 = arith.constant 0 : index
    %c0_30 = arith.constant 0 : index
    %86 = vector.load %arg2[%c3, %c0_29, %c0_30] : memref<6x128x128xbf16, #tpu.memory_space<vmem>>, vector<1x128x128xbf16>
    %87 = vector.shape_cast %86 : vector<1x128x128xbf16> to vector<128x128xbf16>
    %88 = arith.truncf %85 : vector<256x128xf32> to vector<256x128xbf16>
    %cst_31 = arith.constant dense<0.000000e+00> : vector<256x128xf32>
    %89 = tpu.matmul %88, %87, %cst_31 {dimension_numbers = #tpu.dot_dimension_numbers<[1], [0], [0], [1], [0, 0, 1, 1], [], []>} : vector<256x128xbf16>, vector<128x128xbf16>, vector<256x128xf32> -> vector<256x128xf32>
    %90 = vector.extract_strided_slice %0 {offsets = [5, 0], sizes = [1, 128], strides = [1, 1]} : vector<8x128xf32> to vector<1x128xf32>
    %91 = vector.broadcast %90 : vector<1x128xf32> to vector<256x128xf32>
    %92 = arith.addf %89, %91 : vector<256x128xf32>
    %cst_32 = arith.constant 5.000000e-01 : f32
    %93 = vector.broadcast %cst_32 : f32 to vector<256x128xf32>
    %94 = arith.mulf %93, %92 : vector<256x128xf32>
    %cst_33 = arith.constant 4.471500e-02 : f32
    %95 = vector.broadcast %cst_33 : f32 to vector<256x128xf32>
    %96 = arith.mulf %95, %92 : vector<256x128xf32>
    %97 = arith.mulf %96, %92 : vector<256x128xf32>
    %98 = arith.mulf %97, %92 : vector<256x128xf32>
    %99 = arith.addf %92, %98 : vector<256x128xf32>
    %cst_34 = arith.constant 0.797884583 : f32
    %100 = vector.broadcast %cst_34 : f32 to vector<256x128xf32>
    %101 = arith.mulf %100, %99 : vector<256x128xf32>
    %102 = math.tanh %101 : vector<256x128xf32>
    %cst_35 = arith.constant 1.000000e+00 : f32
    %103 = vector.broadcast %cst_35 : f32 to vector<256x128xf32>
    %104 = arith.addf %103, %102 : vector<256x128xf32>
    %105 = arith.mulf %94, %104 : vector<256x128xf32>
    %c4 = arith.constant 4 : index
    %c0_36 = arith.constant 0 : index
    %c0_37 = arith.constant 0 : index
    %106 = vector.load %arg2[%c4, %c0_36, %c0_37] : memref<6x128x128xbf16, #tpu.memory_space<vmem>>, vector<1x128x128xbf16>
    %107 = vector.shape_cast %106 : vector<1x128x128xbf16> to vector<128x128xbf16>
    %108 = arith.truncf %105 : vector<256x128xf32> to vector<256x128xbf16>
    %cst_38 = arith.constant dense<0.000000e+00> : vector<256x128xf32>
    %109 = tpu.matmul %108, %107, %cst_38 {dimension_numbers = #tpu.dot_dimension_numbers<[1], [0], [0], [1], [0, 0, 1, 1], [], []>} : vector<256x128xbf16>, vector<128x128xbf16>, vector<256x128xf32> -> vector<256x128xf32>
    %110 = vector.extract_strided_slice %0 {offsets = [6, 0], sizes = [1, 128], strides = [1, 1]} : vector<8x128xf32> to vector<1x128xf32>
    %111 = vector.broadcast %110 : vector<1x128xf32> to vector<256x128xf32>
    %112 = arith.addf %109, %111 : vector<256x128xf32>
    %cst_39 = arith.constant 5.000000e-01 : f32
    %113 = vector.broadcast %cst_39 : f32 to vector<256x128xf32>
    %114 = arith.mulf %113, %112 : vector<256x128xf32>
    %cst_40 = arith.constant 4.471500e-02 : f32
    %115 = vector.broadcast %cst_40 : f32 to vector<256x128xf32>
    %116 = arith.mulf %115, %112 : vector<256x128xf32>
    %117 = arith.mulf %116, %112 : vector<256x128xf32>
    %118 = arith.mulf %117, %112 : vector<256x128xf32>
    %119 = arith.addf %112, %118 : vector<256x128xf32>
    %cst_41 = arith.constant 0.797884583 : f32
    %120 = vector.broadcast %cst_41 : f32 to vector<256x128xf32>
    %121 = arith.mulf %120, %119 : vector<256x128xf32>
    %122 = math.tanh %121 : vector<256x128xf32>
    %cst_42 = arith.constant 1.000000e+00 : f32
    %123 = vector.broadcast %cst_42 : f32 to vector<256x128xf32>
    %124 = arith.addf %123, %122 : vector<256x128xf32>
    %125 = arith.mulf %114, %124 : vector<256x128xf32>
    %c5 = arith.constant 5 : index
    %c0_43 = arith.constant 0 : index
    %c0_44 = arith.constant 0 : index
    %126 = vector.load %arg2[%c5, %c0_43, %c0_44] : memref<6x128x128xbf16, #tpu.memory_space<vmem>>, vector<1x128x128xbf16>
    %127 = vector.shape_cast %126 : vector<1x128x128xbf16> to vector<128x128xbf16>
    %128 = arith.truncf %125 : vector<256x128xf32> to vector<256x128xbf16>
    %cst_45 = arith.constant dense<0.000000e+00> : vector<256x128xf32>
    %129 = tpu.matmul %128, %127, %cst_45 {dimension_numbers = #tpu.dot_dimension_numbers<[1], [0], [0], [1], [0, 0, 1, 1], [], []>} : vector<256x128xbf16>, vector<128x128xbf16>, vector<256x128xf32> -> vector<256x128xf32>
    %130 = vector.extract_strided_slice %0 {offsets = [7, 0], sizes = [1, 128], strides = [1, 1]} : vector<8x128xf32> to vector<1x128xf32>
    %131 = vector.broadcast %130 : vector<1x128xf32> to vector<256x128xf32>
    %132 = arith.addf %129, %131 : vector<256x128xf32>
    %133 = arith.addf %132, %65 : vector<256x128xf32>
    %c0_46 = arith.constant 0 : index
    %c0_47 = arith.constant 0 : index
    %134 = vector.load %arg5[%c0_46, %c0_47] : memref<256x128xf32, #tpu.memory_space<vmem>>, vector<256x128xf32>
    tpu.vector_store %arg5[%c0_46, %c0_47], %133 {strides = array<i32>} : memref<256x128xf32, #tpu.memory_space<vmem>>, vector<256x128xf32>,
    return
  }
  func.func @transform_0(%arg0: i32) -> (i32, i32) {
    %c0_i32 = arith.constant 0 : i32
    %c0_i32_0 = arith.constant 0 : i32
    return %arg0, %c0_i32 : i32, i32
  }
  func.func @transform_1(%arg0: i32) -> (i32, i32, i32) {
    %c0_i32 = arith.constant 0 : i32
    %c0_i32_0 = arith.constant 0 : i32
    %c0_i32_1 = arith.constant 0 : i32
    %c0_i32_2 = arith.constant 0 : i32
    return %c0_i32, %c0_i32_0, %c0_i32_1 : i32, i32, i32
  }
  func.func @transform_2(%arg0: i32) -> (i32, i32) {
    %c0_i32 = arith.constant 0 : i32
    %c0_i32_0 = arith.constant 0 : i32
    %c0_i32_1 = arith.constant 0 : i32
    return %c0_i32, %c0_i32_0 : i32, i32
  }
  func.func @transform_3(%arg0: i32) -> (i32, i32) {
    %c0_i32 = arith.constant 0 : i32
    %c0_i32_0 = arith.constant 0 : i32
    %c0_i32_1 = arith.constant 0 : i32
    return %c0_i32, %c0_i32_0 : i32, i32
  }
  func.func @transform_4(%arg0: i32) -> (i32, i32) {
    %c0_i32 = arith.constant 0 : i32
    %c0_i32_0 = arith.constant 0 : i32
    return %arg0, %c0_i32 : i32, i32
  }
}

</mosaic_0001>

<llo_original>
// kernel: vae_forward.1
$region0: #{vae_forward.1}
  #allocation0 [shape = 'u32[]', space=smem, size = 0x4, offset = 0x4, fixed_abs, tag = 'smem constant byte address 0x4 - core index']
  #allocation1 [shape = 'u32[144,128]{1,0:T(1,128)}', space=vmem, size = 0x12000, scoped, tag = 'internal scratch']
  %s0 = inlined_call_operand.vmem [shape: bf16[512,128], index: 0, kind: input, shape index: {}]
  %s1 = inlined_call_operand.vmem [shape: bf16[6,128,128], index: 1, kind: input, shape index: {}]
  %s2 = inlined_call_operand.vmem [shape: bf16[128,256], index: 2, kind: input, shape index: {}]
  %s3 = inlined_call_operand.vmem [shape: f32[8,128], index: 3, kind: input, shape index: {}]
  %s4 = inlined_call_operand.vmem [shape: f32[512,128], index: 4, kind: output, shape index: {}]
  %s5 = sld [smem:[#allocation0]]
  $region49: #{vae_forward.1} parent=0
    _
  %s7 = ssub.s32 1, %s5
  %s8 = scalar_select 0, %s7, %s5
  loop: start=0, step=1, limit=4
  $region2: #{vae_forward.1} parent=0 // loop_pre_header
    _
  $region3: #{vae_forward.1} parent=0 // loop_header
    %s10 = sphi 0, %s14
    %p11 = scmp.ge.s32.totalorder %s10, 4
    %s20 = sphi 0, %s22
    %s23 = sphi 0, %s20
    %s24 = sphi 0, %s23
    %s40 = sphi 0, %s24
    %s44 = sphi 0, %s44
    %s46 = sphi 0, %s44
    %s47 = sphi 0, %s46
    %s61 = sphi 0, %s47
    %s65 = sphi 0, %s65
    %s67 = sphi 0, %s65
    %s68 = sphi 0, %s67
    %s82 = sphi 0, %s68
    %s86 = sphi 0, %s86
    %s88 = sphi 0, %s86
    %s89 = sphi 0, %s88
    %s103 = sphi 0, %s89
    %s109 = sphi 0, %s111
    %s112 = sphi 0, %s109
    %s113 = sphi 0, %s112
    %s129 = sphi 0, %s113
  $region4: #{vae_forward.1} parent=0 // loop_header_branch
    %13 = sbr.rel (%p11) target = $region8
  $region5: #{vae_forward.1} parent=0 // loop_body
    %s15 = ssub.s32 %s10, 1
    %s16 = ssub.s32 %s10, 2
    %s17 = sadd.s32 %s10, 1
    %s18 = ssub.s32 %s10, %s17
    %p19 = scmp.eq.s32.totalorder %s18, 0
    %s21 = sadd.s32 %s20, 1
    %s22 = scalar_select %p19, %s20, %s21
    %p25 = pneg %p19
    %p26 = scmp.eq.s32.totalorder %s10, 1
    %p27 = por %p25, %p26
    %p28 = scmp.ne.s32.totalorder %s20, %s23
    %p29 = scmp.eq.s32.totalorder %s10, 0
    %p30 = por %p28, %p29
    %p31 = scmp.ne.s32.totalorder %s20, %s23
    %p32 = scmp.eq.s32.totalorder %s15, 1
    %p33 = por %p31, %p32
    %p34 = scmp.ne.s32.totalorder %s23, %s24
    %p35 = scmp.eq.s32.totalorder %s15, 0
    %p36 = por %p34, %p35
    %p37 = scmp.ne.s32.totalorder %s23, %s24
    %p38 = scmp.eq.s32.totalorder %s16, 1
    %p39 = por %p37, %p38
    %p41 = scmp.ne.s32.totalorder %s24, %s40
    %p42 = scmp.eq.s32.totalorder %s16, 0
    %p43 = por %p41, %p42
    %s45 = sadd.s32 %s44, 1
    %p48 = scmp.eq.s32.totalorder %s10, 1
    %p49 = scmp.ne.s32.totalorder %s44, %s46
    %p50 = scmp.eq.s32.totalorder %s10, 0
    %p51 = por %p49, %p50
    %p52 = scmp.ne.s32.totalorder %s44, %s46
    %p53 = scmp.eq.s32.totalorder %s15, 1
    %p54 = por %p52, %p53
    %p55 = scmp.ne.s32.totalorder %s46, %s47
    %p56 = scmp.eq.s32.totalorder %s15, 0
    %p57 = por %p55, %p56
    %p58 = scmp.ne.s32.totalorder %s46, %s47
    %p59 = scmp.eq.s32.totalorder %s16, 1
    %p60 = por %p58, %p59
    %p62 = scmp.ne.s32.totalorder %s47, %s61
    %p63 = scmp.eq.s32.totalorder %s16, 0
    %p64 = por %p62, %p63
    %s66 = sadd.s32 %s65, 1
    %p69 = scmp.eq.s32.totalorder %s10, 1
    %p70 = scmp.ne.s32.totalorder %s65, %s67
    %p71 = scmp.eq.s32.totalorder %s10, 0
    %p72 = por %p70, %p71
    %p73 = scmp.ne.s32.totalorder %s65, %s67
    %p74 = scmp.eq.s32.totalorder %s15, 1
    %p75 = por %p73, %p74
    %p76 = scmp.ne.s32.totalorder %s67, %s68
    %p77 = scmp.eq.s32.totalorder %s15, 0
    %p78 = por %p76, %p77
    %p79 = scmp.ne.s32.totalorder %s67, %s68
    %p80 = scmp.eq.s32.totalorder %s16, 1
    %p81 = por %p79, %p80
    %p83 = scmp.ne.s32.totalorder %s68, %s82
    %p84 = scmp.eq.s32.totalorder %s16, 0
    %p85 = por %p83, %p84
    %s87 = sadd.s32 %s86, 1
    %p90 = scmp.eq.s32.totalorder %s10, 1
    %p91 = scmp.ne.s32.totalorder %s86, %s88
    %p92 = scmp.eq.s32.totalorder %s10, 0
    %p93 = por %p91, %p92
    %p94 = scmp.ne.s32.totalorder %s86, %s88
    %p95 = scmp.eq.s32.totalorder %s15, 1
    %p96 = por %p94, %p95
    %p97 = scmp.ne.s32.totalorder %s88, %s89
    %p98 = scmp.eq.s32.totalorder %s15, 0
    %p99 = por %p97, %p98
    %p100 = scmp.ne.s32.totalorder %s88, %s89
    %p101 = scmp.eq.s32.totalorder %s16, 1
    %p102 = por %p100, %p101
    %p104 = scmp.ne.s32.totalorder %s89, %s103
    %p105 = scmp.eq.s32.totalorder %s16, 0
    %p106 = por %p104, %p105
    %s107 = ssub.s32 %s10, %s17
    %p108 = scmp.eq.s32.totalorder %s107, 0
    %s110 = sadd.s32 %s109, 1
    %s111 = scalar_select %p108, %s109, %s110
    %p114 = pneg %p108
    %p115 = scmp.eq.s32.totalorder %s10, 1
    %p116 = por %p114, %p115
    %p117 = scmp.ne.s32.totalorder %s109, %s112
    %p118 = scmp.eq.s32.totalorder %s10, 0
    %p119 = por %p117, %p118
    %p120 = scmp.ne.s32.totalorder %s109, %s112
    %p121 = scmp.eq.s32.totalorder %s15, 1
    %p122 = por %p120, %p121
    %p123 = scmp.ne.s32.totalorder %s112, %s113
    %p124 = scmp.eq.s32.totalorder %s15, 0
    %p125 = por %p123, %p124
    %p126 = scmp.ne.s32.totalorder %s112, %s113
    %p127 = scmp.eq.s32.totalorder %s16, 1
    %p128 = por %p126, %p127
    %p130 = scmp.ne.s32.totalorder %s113, %s129
    %p131 = scmp.eq.s32.totalorder %s16, 0
    %p132 = por %p130, %p131
    %p133 = scmp.le.s32.totalorder 1, %s10
    %p134 = scmp.lt.s32.totalorder %s10, 3
    %p135 = pnand %p133, %p134
    %p136 = pneg %p135
    // Predicated region
    $region9: #{vae_forward.1} parent=5 // pred_check
      _
    $region10: #{vae_forward.1} parent=5 // pred_check_branch
      %138 = sbr.rel (%p135) target = $region12
    $region11: #{vae_forward.1} parent=5 // pred_region
      %s139 = ssub.s32 %s10, 1
      // Predicated region
      $region13: #{vae_forward.1} parent=11 // pred_check
        %p140 = pneg %p57
      $region14: #{vae_forward.1} parent=11 // pred_check_branch
        %142 = sbr.rel (%p140) target = $region16
      $region15: #{vae_forward.1} parent=11 // pred_region
        _
      $region16: #{vae_forward.1} parent=11 // pred_fallthru
        _
      // Predicated region
      $region17: #{vae_forward.1} parent=11 // pred_check
        %p143 = pneg %p78
      $region18: #{vae_forward.1} parent=11 // pred_check_branch
        %145 = sbr.rel (%p143) target = $region20
      $region19: #{vae_forward.1} parent=11 // pred_region
        _
      $region20: #{vae_forward.1} parent=11 // pred_fallthru
        _
      // Predicated region
      $region21: #{vae_forward.1} parent=11 // pred_check
        %p146 = pneg %p99
      $region22: #{vae_forward.1} parent=11 // pred_check_branch
        %148 = sbr.rel (%p146) target = $region24
      $region23: #{vae_forward.1} parent=11 // pred_region
        _
      $region24: #{vae_forward.1} parent=11 // pred_fallthru
        _
    $region12: #{vae_forward.1} parent=5 // pred_fallthru
      _
    %p149 = scmp.lt.s32.totalorder %s10, 2
    // Predicated region
    $region25: #{vae_forward.1} parent=5 // pred_check
      %p150 = pneg %p149
    $region26: #{vae_forward.1} parent=5 // pred_check_branch
      %152 = sbr.rel (%p150) target = $region28
    $region27: #{vae_forward.1} parent=5 // pred_region
      // Predicated region
      $region29: #{vae_forward.1} parent=27 // pred_check
        %p153 = pneg %p30
      $region30: #{vae_forward.1} parent=27 // pred_check_branch
        %155 = sbr.rel (%p153) target = $region32
      $region31: #{vae_forward.1} parent=27 // pred_region
        %s156 = smul.u32 32, %s10
        %p157 = scmp.lt.s32.totalorder %s156, 63
        %s158 = scalar_select %p157, %s156, 63
        %s159 = smul.addr %s158, 4
        %s160 = scalar_lea.vmem %s0, %s159
        %s161 = smul.u32 32, %s10
      $region32: #{vae_forward.1} parent=27 // pred_fallthru
        _
    $region28: #{vae_forward.1} parent=5 // pred_fallthru
      _
    %p162 = scmp.le.s32.totalorder 1, %s10
    %p163 = scmp.lt.s32.totalorder %s10, 3
    %p164 = pnand %p162, %p163
    %p165 = pneg %p164
    // Predicated region
    $region33: #{vae_forward.1} parent=5 // pred_check
      _
    $region34: #{vae_forward.1} parent=5 // pred_check_branch
      %167 = sbr.rel (%p164) target = $region36
    $region35: #{vae_forward.1} parent=5 // pred_region
      %s168 = ssub.s32 %s10, 1
      %s169 = smul.u32 32, %s15
      %p170 = scmp.lt.s32.totalorder %s169, 63
      %s171 = scalar_select %p170, %s169, 63
      %s172 = smul.addr %s171, 4
      %s173 = scalar_lea.vmem %s0, %s172
      %p174 = pneg %p36
      %p175 = pneg %p33
      %p176 = pneg %p57
      %p177 = pneg %p54
      %p178 = pneg %p78
      %p179 = pneg %p75
      %p180 = pneg %p99
      %p181 = pneg %p96
      %p182 = pneg %p125
      %p183 = pneg %p122
      %s184 = smul.u32 32, %s15
      %p185 = scmp.lt.s32.totalorder %s184, 63
      %s186 = scalar_select %p185, %s184, 63
      %s187 = smul.addr %s186, 8
      %s188 = scalar_lea.vmem %s4, %s187
      %s189 = smul.u32 32, %s15
      %p190 = scmp.lt.s32.totalorder %s189, 63
      %s191 = scalar_select %p190, %s189, 63
      %s192 = smul.addr %s191, 4
      %s193 = scalar_lea.vmem %s0, %s192
      %s194 = smul.u32 32, %s15
      %s195 = smul.u32 32, %s15
      %p196 = scmp.lt.s32.totalorder %s195, 63
      %s197 = scalar_select %p196, %s195, 63
      %s198 = smul.addr %s197, 8
      %s199 = scalar_lea.vmem %s4, %s198
      %s200 = smul.u32 32, %s15
      %v202 = vld [vmem:[%s3] sm:$0xff]
      %v203 = vld [vmem:[%s193] sm:$0xf]
      %v204 = vld [vmem:[%s193 + $0x4] sm:$0xf]
      %v205 = vld [vmem:[%s193 + $0x8] sm:$0xf]
      %v206 = vld [vmem:[%s193 + $0xc] sm:$0xf]
      %v207 = vld [vmem:[%s193 + $0x10] sm:$0xf]
      %v208 = vld [vmem:[%s193 + $0x14] sm:$0xf]
      %v209 = vld [vmem:[%s193 + $0x18] sm:$0xf]
      %v210 = vld [vmem:[%s193 + $0x1c] sm:$0xf]
      %v211 = vld [vmem:[%s193 + $0x20] sm:$0xf]
      %v212 = vld [vmem:[%s193 + $0x24] sm:$0xf]
      %v213 = vld [vmem:[%s193 + $0x28] sm:$0xf]
      %v214 = vld [vmem:[%s193 + $0x2c] sm:$0xf]
      %v215 = vld [vmem:[%s193 + $0x30] sm:$0xf]
      %v216 = vld [vmem:[%s193 + $0x34] sm:$0xf]
      %v217 = vld [vmem:[%s193 + $0x38] sm:$0xf]
      %v218 = vld [vmem:[%s193 + $0x3c] sm:$0xf]
      %v219 = vld [vmem:[%s193 + $0x40] sm:$0xf]
      %v220 = vld [vmem:[%s193 + $0x44] sm:$0xf]
      %v221 = vld [vmem:[%s193 + $0x48] sm:$0xf]
      %v222 = vld [vmem:[%s193 + $0x4c] sm:$0xf]
      %v223 = vld [vmem:[%s193 + $0x50] sm:$0xf]
      %v224 = vld [vmem:[%s193 + $0x54] sm:$0xf]
      %v225 = vld [vmem:[%s193 + $0x58] sm:$0xf]
      %v226 = vld [vmem:[%s193 + $0x5c] sm:$0xf]
      %v227 = vld [vmem:[%s193 + $0x60] sm:$0xf]
      %v228 = vld [vmem:[%s193 + $0x64] sm:$0xf]
      %v229 = vld [vmem:[%s193 + $0x68] sm:$0xf]
      %v230 = vld [vmem:[%s193 + $0x6c] sm:$0xf]
      %v231 = vld [vmem:[%s193 + $0x70] sm:$0xf]
      %v232 = vld [vmem:[%s193 + $0x74] sm:$0xf]
      %v233 = vld [vmem:[%s193 + $0x78] sm:$0xf]
      %v234 = vld [vmem:[%s193 + $0x7c] sm:$0xf]
      %v235 = vld [vmem:[%s1] sm:$0xf]
      %v236 = vld [vmem:[%s1 + $0x4] sm:$0xf]
      %v237 = vld [vmem:[%s1 + $0x8] sm:$0xf]
      %v238 = vld [vmem:[%s1 + $0xc] sm:$0xf]
      %v239 = vld [vmem:[%s1 + $0x10] sm:$0xf]
      %v240 = vld [vmem:[%s1 + $0x14] sm:$0xf]
      %v241 = vld [vmem:[%s1 + $0x18] sm:$0xf]
      %v242 = vld [vmem:[%s1 + $0x1c] sm:$0xf]
      %v243 = vld [vmem:[%s1 + $0x20] sm:$0xf]
      %v244 = vld [vmem:[%s1 + $0x24] sm:$0xf]
      %v245 = vld [vmem:[%s1 + $0x28] sm:$0xf]
      %v246 = vld [vmem:[%s1 + $0x2c] sm:$0xf]
      %v247 = vld [vmem:[%s1 + $0x30] sm:$0xf]
      %v248 = vld [vmem:[%s1 + $0x34] sm:$0xf]
      %v249 = vld [vmem:[%s1 + $0x38] sm:$0xf]
      %v250 = vld [vmem:[%s1 + $0x3c] sm:$0xf]
      %v251 = vlaneseq
      %v252 = vshrl.u32 %v251, 7
      %v253 = vsub.s32 0, %v252
      %v254 = vrot.slane %v202, %v253
      %v287 = vunpack.c.l.b16 %v203
      %v288 = vunpack.c.l.b16 %v204
      %v289 = vunpack.c.l.b16 %v205
      %v290 = vunpack.c.l.b16 %v206
      %v291 = vunpack.c.l.b16 %v207
      %v292 = vunpack.c.l.b16 %v208
      %v293 = vunpack.c.l.b16 %v209
      %v294 = vunpack.c.l.b16 %v210
      %v295 = vunpack.c.l.b16 %v211
      %v296 = vunpack.c.l.b16 %v212
      %v297 = vunpack.c.l.b16 %v213
      %v298 = vunpack.c.l.b16 %v214
      %v299 = vunpack.c.l.b16 %v215
      %v300 = vunpack.c.l.b16 %v216
      %v301 = vunpack.c.l.b16 %v217
      %v302 = vunpack.c.l.b16 %v218
      %v303 = vunpack.c.l.b16 %v219
      %v304 = vunpack.c.l.b16 %v220
      %v305 = vunpack.c.l.b16 %v221
      %v306 = vunpack.c.l.b16 %v222
      %v307 = vunpack.c.l.b16 %v223
      %v308 = vunpack.c.l.b16 %v224
      %v309 = vunpack.c.l.b16 %v225
      %v310 = vunpack.c.l.b16 %v226
      %v311 = vunpack.c.l.b16 %v227
      %v312 = vunpack.c.l.b16 %v228
      %v313 = vunpack.c.l.b16 %v229
      %v314 = vunpack.c.l.b16 %v230
      %v315 = vunpack.c.l.b16 %v231
      %v316 = vunpack.c.l.b16 %v232
      %v317 = vunpack.c.l.b16 %v233
      %v318 = vunpack.c.l.b16 %v234
      %v319 = vpack.c.b16 %v288, %v287
      %v320 = vpack.c.b16 %v290, %v289
      %v321 = vpack.c.b16 %v292, %v291
      %v322 = vpack.c.b16 %v294, %v293
      %v323 = vpack.c.b16 %v296, %v295
      %v324 = vpack.c.b16 %v298, %v297
      %v325 = vpack.c.b16 %v300, %v299
      %v326 = vpack.c.b16 %v302, %v301
      %v327 = vpack.c.b16 %v304, %v303
      %v328 = vpack.c.b16 %v306, %v305
      %v329 = vpack.c.b16 %v308, %v307
      %v330 = vpack.c.b16 %v310, %v309
      %v331 = vpack.c.b16 %v312, %v311
      %v332 = vpack.c.b16 %v314, %v313
      %v333 = vpack.c.b16 %v316, %v315
      %v334 = vpack.c.b16 %v318, %v317
      %v367 = vunpack.c.l.b16 %v235
      %v368 = vunpack.c.l.b16 %v236
      %v369 = vunpack.c.l.b16 %v237
      %v370 = vunpack.c.l.b16 %v238
      %v371 = vunpack.c.l.b16 %v239
      %v372 = vunpack.c.l.b16 %v240
      %v373 = vunpack.c.l.b16 %v241
      %v374 = vunpack.c.l.b16 %v242
      %v375 = vunpack.c.l.b16 %v243
      %v376 = vunpack.c.l.b16 %v244
      %v377 = vunpack.c.l.b16 %v245
      %v378 = vunpack.c.l.b16 %v246
      %v379 = vunpack.c.l.b16 %v247
      %v380 = vunpack.c.l.b16 %v248
      %v381 = vunpack.c.l.b16 %v249
      %v382 = vunpack.c.l.b16 %v250
      %v383 = vpack.c.b16 %v368, %v367
      %v384 = vpack.c.b16 %v370, %v369
      %v385 = vpack.c.b16 %v372, %v371
      %v386 = vpack.c.b16 %v374, %v373
      %v387 = vpack.c.b16 %v376, %v375
      %v388 = vpack.c.b16 %v378, %v377
      %v389 = vpack.c.b16 %v380, %v379
      %v390 = vpack.c.b16 %v382, %v381
      %399 = vmatprep.subr.bf16.mxu0 0
      %400 = vmatpush1.bf16.msra.mxu0 %v383
      %401 = vmatprep.subr.bf16.mxu0 0
      %402 = vmatpush1.bf16.msra.mxu0 %v384
      %403 = vmatprep.subr.bf16.mxu0 0
      %404 = vmatpush1.bf16.msra.mxu0 %v385
      %405 = vmatprep.subr.bf16.mxu0 0
      %406 = vmatpush1.bf16.msra.mxu0 %v386
      %407 = vmatprep.subr.bf16.mxu0 0
      %408 = vmatpush1.bf16.msra.mxu0 %v387
      %409 = vmatprep.subr.bf16.mxu0 0
      %410 = vmatpush1.bf16.msra.mxu0 %v388
      %411 = vmatprep.subr.bf16.mxu0 0
      %412 = vmatpush1.bf16.msra.mxu0 %v389
      %413 = vmatprep.subr.bf16.mxu0 0
      %414 = vmatpush1.bf16.msra.mxu0 %v390
      %415 = vmatprep.subr.bf16.mxu0 0
      %416 = vmatpush1.bf16.msra.mxu0 0
      %417 = vmatprep.subr.bf16.mxu0 0
      %418 = vmatpush1.bf16.msra.mxu0 0
      %419 = vmatprep.subr.bf16.mxu0 0
      %420 = vmatpush1.bf16.msra.mxu0 0
      %421 = vmatprep.subr.bf16.mxu0 0
      %422 = vmatpush1.bf16.msra.mxu0 0
      %423 = vmatprep.subr.bf16.mxu0 0
      %424 = vmatpush1.bf16.msra.mxu0 0
      %425 = vmatprep.subr.bf16.mxu0 0
      %426 = vmatpush1.bf16.msra.mxu0 0
      %427 = vmatprep.subr.bf16.mxu0 0
      %428 = vmatpush1.bf16.msra.mxu0 0
      %429 = vmatprep.subr.bf16.mxu0 0
      %430 = vmatpush1.bf16.msra.mxu0 0
      %431 = vmatprep.mubr.bf16.mxu0 0
      %432 = vmatmul.mubr.bf16.gmra.mrb[0].mxu0 %v319
      %v433 = vpop.f32.mrb[0].mxu0
      %v434 = vadd.f32 %v254, %v433
      %v435 = vpop.f32.mrb[0].mxu0
      %v436 = vpop.f32.mrb[0].mxu0
      %v437 = vadd.f32 %v254, %v436
      %v438 = vpop.f32.mrb[0].mxu0
      %439 = vmatprep.mubr.bf16.mxu0 0
      %440 = vmatmul.mubr.bf16.gmra.mrb[0].mxu0 %v320
      %v441 = vpop.f32.mrb[0].mxu0
      %v442 = vadd.f32 %v254, %v441
      %v443 = vpop.f32.mrb[0].mxu0
      %v444 = vpop.f32.mrb[0].mxu0
      %v445 = vadd.f32 %v254, %v444
      %v446 = vpop.f32.mrb[0].mxu0
      %447 = vmatprep.mubr.bf16.mxu0 0
      %448 = vmatmul.mubr.bf16.gmra.mrb[0].mxu0 %v321
      %v449 = vpop.f32.mrb[0].mxu0
      %v450 = vadd.f32 %v254, %v449
      %v451 = vpop.f32.mrb[0].mxu0
      %v452 = vpop.f32.mrb[0].mxu0
      %v453 = vadd.f32 %v254, %v452
      %v454 = vpop.f32.mrb[0].mxu0
      %455 = vmatprep.mubr.bf16.mxu0 0
      %456 = vmatmul.mubr.bf16.gmra.mrb[0].mxu0 %v322
      %v457 = vpop.f32.mrb[0].mxu0
      %v458 = vadd.f32 %v254, %v457
      %v459 = vpop.f32.mrb[0].mxu0
      %v460 = vpop.f32.mrb[0].mxu0
      %v461 = vadd.f32 %v254, %v460
      %v462 = vpop.f32.mrb[0].mxu0
      %463 = vmatprep.mubr.bf16.mxu0 0
      %464 = vmatmul.mubr.bf16.gmra.mrb[0].mxu0 %v323
      %v465 = vpop.f32.mrb[0].mxu0
      %v466 = vadd.f32 %v254, %v465
      %v467 = vpop.f32.mrb[0].mxu0
      %v468 = vpop.f32.mrb[0].mxu0
      %v469 = vadd.f32 %v254, %v468
      %v470 = vpop.f32.mrb[0].mxu0
      %471 = vmatprep.mubr.bf16.mxu0 0
      %472 = vmatmul.mubr.bf16.gmra.mrb[0].mxu0 %v324
      %v473 = vpop.f32.mrb[0].mxu0
      %v474 = vadd.f32 %v254, %v473
      %v475 = vpop.f32.mrb[0].mxu0
      %v476 = vpop.f32.mrb[0].mxu0
      %v477 = vadd.f32 %v254, %v476
      %v478 = vpop.f32.mrb[0].mxu0
      %479 = vmatprep.mubr.bf16.mxu0 0
      %480 = vmatmul.mubr.bf16.gmra.mrb[0].mxu0 %v325
      %v481 = vpop.f32.mrb[0].mxu0
      %v482 = vadd.f32 %v254, %v481
      %v483 = vpop.f32.mrb[0].mxu0
      %v484 = vpop.f32.mrb[0].mxu0
      %v485 = vadd.f32 %v254, %v484
      %v486 = vpop.f32.mrb[0].mxu0
      %487 = vmatprep.mubr.bf16.mxu0 0
      %488 = vmatmul.mubr.bf16.gmra.mrb[0].mxu0 %v326
      %v489 = vpop.f32.mrb[0].mxu0
      %v490 = vadd.f32 %v254, %v489
      %v491 = vpop.f32.mrb[0].mxu0
      %v492 = vpop.f32.mrb[0].mxu0
      %v493 = vadd.f32 %v254, %v492
      %v494 = vpop.f32.mrb[0].mxu0
      %495 = vmatprep.mubr.bf16.mxu0 0
      %496 = vmatmul.mubr.bf16.gmra.mrb[0].mxu0 %v327
      %v497 = vpop.f32.mrb[0].mxu0
      %v498 = vadd.f32 %v254, %v497
      %v499 = vpop.f32.mrb[0].mxu0
      %v500 = vpop.f32.mrb[0].mxu0
      %v501 = vadd.f32 %v254, %v500
      %v502 = vpop.f32.mrb[0].mxu0
      %503 = vmatprep.mubr.bf16.mxu0 0
      %504 = vmatmul.mubr.bf16.gmra.mrb[0].mxu0 %v328
      %v505 = vpop.f32.mrb[0].mxu0
      %v506 = vadd.f32 %v254, %v505
      %v507 = vpop.f32.mrb[0].mxu0
      %v508 = vpop.f32.mrb[0].mxu0
      %v509 = vadd.f32 %v254, %v508
      %v510 = vpop.f32.mrb[0].mxu0
      %511 = vmatprep.mubr.bf16.mxu0 0
      %512 = vmatmul.mubr.bf16.gmra.mrb[0].mxu0 %v329
      %v513 = vpop.f32.mrb[0].mxu0
      %v514 = vadd.f32 %v254, %v513
      %v515 = vpop.f32.mrb[0].mxu0
      %v516 = vpop.f32.mrb[0].mxu0
      %v517 = vadd.f32 %v254, %v516
      %v518 = vpop.f32.mrb[0].mxu0
      %519 = vmatprep.mubr.bf16.mxu0 0
      %520 = vmatmul.mubr.bf16.gmra.mrb[0].mxu0 %v330
      %v521 = vpop.f32.mrb[0].mxu0
      %v522 = vadd.f32 %v254, %v521
      %v523 = vpop.f32.mrb[0].mxu0
      %v524 = vpop.f32.mrb[0].mxu0
      %v525 = vadd.f32 %v254, %v524
      %v526 = vpop.f32.mrb[0].mxu0
      %527 = vmatprep.mubr.bf16.mxu0 0
      %528 = vmatmul.mubr.bf16.gmra.mrb[0].mxu0 %v331
      %v529 = vpop.f32.mrb[0].mxu0
      %v530 = vadd.f32 %v254, %v529
      %v531 = vpop.f32.mrb[0].mxu0
      %v532 = vpop.f32.mrb[0].mxu0
      %v533 = vadd.f32 %v254, %v532
      %v534 = vpop.f32.mrb[0].mxu0
      %535 = vmatprep.mubr.bf16.mxu0 0
      %536 = vmatmul.mubr.bf16.gmra.mrb[0].mxu0 %v332
      %v537 = vpop.f32.mrb[0].mxu0
      %v538 = vadd.f32 %v254, %v537
      %v539 = vpop.f32.mrb[0].mxu0
      %v540 = vpop.f32.mrb[0].mxu0
      %v541 = vadd.f32 %v254, %v540
      %v542 = vpop.f32.mrb[0].mxu0
      %543 = vmatprep.mubr.bf16.mxu0 0
      %544 = vmatmul.mubr.bf16.gmra.mrb[0].mxu0 %v333
      %v545 = vpop.f32.mrb[0].mxu0
      %v546 = vadd.f32 %v254, %v545
      %v547 = vpop.f32.mrb[0].mxu0
      %v548 = vpop.f32.mrb[0].mxu0
      %v549 = vadd.f32 %v254, %v548
      %v550 = vpop.f32.mrb[0].mxu0
      %551 = vmatprep.mubr.bf16.mxu0 0
      %552 = vmatmul.mubr.bf16.gmra.mrb[0].mxu0 %v334
      %v553 = vpop.f32.mrb[0].mxu0
      %v554 = vadd.f32 %v254, %v553
      %v555 = vpop.f32.mrb[0].mxu0
      %v556 = vpop.f32.mrb[0].mxu0
      %v557 = vadd.f32 %v254, %v556
      %v558 = vpop.f32.mrb[0].mxu0
      %559 = vdwg.mxu0
      %v560 = vmul.f32 %v434, 0.5
      %v561 = vmul.f32 %v437, 0.5
      %v562 = vmul.f32 %v442, 0.5
      %v563 = vmul.f32 %v445, 0.5
      %v564 = vmul.f32 %v450, 0.5
      %v565 = vmul.f32 %v453, 0.5
      %v566 = vmul.f32 %v458, 0.5
      %v567 = vmul.f32 %v461, 0.5
      %v568 = vmul.f32 %v466, 0.5
      %v569 = vmul.f32 %v469, 0.5
      %v570 = vmul.f32 %v474, 0.5
      %v571 = vmul.f32 %v477, 0.5
      %v572 = vmul.f32 %v482, 0.5
      %v573 = vmul.f32 %v485, 0.5
      %v574 = vmul.f32 %v490, 0.5
      %v575 = vmul.f32 %v493, 0.5
      %v576 = vmul.f32 %v498, 0.5
      %v577 = vmul.f32 %v501, 0.5
      %v578 = vmul.f32 %v506, 0.5
      %v579 = vmul.f32 %v509, 0.5
      %v580 = vmul.f32 %v514, 0.5
      %v581 = vmul.f32 %v517, 0.5
      %v582 = vmul.f32 %v522, 0.5
      %v583 = vmul.f32 %v525, 0.5
      %v584 = vmul.f32 %v530, 0.5
      %v585 = vmul.f32 %v533, 0.5
      %v586 = vmul.f32 %v538, 0.5
      %v587 = vmul.f32 %v541, 0.5
      %v588 = vmul.f32 %v546, 0.5
      %v589 = vmul.f32 %v549, 0.5
      %v590 = vmul.f32 %v554, 0.5
      %v591 = vmul.f32 %v557, 0.5
      %v592 = vmul.f32 %v434, 0.044715
      %v593 = vmul.f32 %v437, 0.044715
      %v594 = vmul.f32 %v442, 0.044715
      %v595 = vmul.f32 %v445, 0.044715
      %v596 = vmul.f32 %v450, 0.044715
      %v597 = vmul.f32 %v453, 0.044715
      %v598 = vmul.f32 %v458, 0.044715
      %v599 = vmul.f32 %v461, 0.044715
      %v600 = vmul.f32 %v466, 0.044715
      %v601 = vmul.f32 %v469, 0.044715
      %v602 = vmul.f32 %v474, 0.044715
      %v603 = vmul.f32 %v477, 0.044715
      %v604 = vmul.f32 %v482, 0.044715
      %v605 = vmul.f32 %v485, 0.044715
      %v606 = vmul.f32 %v490, 0.044715
      %v607 = vmul.f32 %v493, 0.044715
      %v608 = vmul.f32 %v498, 0.044715
      %v609 = vmul.f32 %v501, 0.044715
      %v610 = vmul.f32 %v506, 0.044715
      %v611 = vmul.f32 %v509, 0.044715
      %v612 = vmul.f32 %v514, 0.044715
      %v613 = vmul.f32 %v517, 0.044715
      %v614 = vmul.f32 %v522, 0.044715
      %v615 = vmul.f32 %v525, 0.044715
      %v616 = vmul.f32 %v530, 0.044715
      %v617 = vmul.f32 %v533, 0.044715
      %v618 = vmul.f32 %v538, 0.044715
      %v619 = vmul.f32 %v541, 0.044715
      %v620 = vmul.f32 %v546, 0.044715
      %v621 = vmul.f32 %v549, 0.044715
      %v622 = vmul.f32 %v554, 0.044715
      %v623 = vmul.f32 %v557, 0.044715
      %v624 = vmul.f32 %v592, %v434
      %v625 = vmul.f32 %v593, %v437
      %v626 = vmul.f32 %v594, %v442
      %v627 = vmul.f32 %v595, %v445
      %v628 = vmul.f32 %v596, %v450
      %v629 = vmul.f32 %v597, %v453
      %v630 = vmul.f32 %v598, %v458
      %v631 = vmul.f32 %v599, %v461
      %v632 = vmul.f32 %v600, %v466
      %v633 = vmul.f32 %v601, %v469
      %v634 = vmul.f32 %v602, %v474
      %v635 = vmul.f32 %v603, %v477
      %v636 = vmul.f32 %v604, %v482
      %v637 = vmul.f32 %v605, %v485
      %v638 = vmul.f32 %v606, %v490
      %v639 = vmul.f32 %v607, %v493
      %v640 = vmul.f32 %v608, %v498
      %v641 = vmul.f32 %v609, %v501
      %v642 = vmul.f32 %v610, %v506
      %v643 = vmul.f32 %v611, %v509
      %v644 = vmul.f32 %v612, %v514
      %v645 = vmul.f32 %v613, %v517
      %v646 = vmul.f32 %v614, %v522
      %v647 = vmul.f32 %v615, %v525
      %v648 = vmul.f32 %v616, %v530
      %v649 = vmul.f32 %v617, %v533
      %v650 = vmul.f32 %v618, %v538
      %v651 = vmul.f32 %v619, %v541
      %v652 = vmul.f32 %v620, %v546
      %v653 = vmul.f32 %v621, %v549
      %v654 = vmul.f32 %v622, %v554
      %v655 = vmul.f32 %v623, %v557
      %v656 = vmul.f32 %v624, %v434
      %v657 = vmul.f32 %v625, %v437
      %v658 = vmul.f32 %v626, %v442
      %v659 = vmul.f32 %v627, %v445
      %v660 = vmul.f32 %v628, %v450
      %v661 = vmul.f32 %v629, %v453
      %v662 = vmul.f32 %v630, %v458
      %v663 = vmul.f32 %v631, %v461
      %v664 = vmul.f32 %v632, %v466
      %v665 = vmul.f32 %v633, %v469
      %v666 = vmul.f32 %v634, %v474
      %v667 = vmul.f32 %v635, %v477
      %v668 = vmul.f32 %v636, %v482
      %v669 = vmul.f32 %v637, %v485
      %v670 = vmul.f32 %v638, %v490
      %v671 = vmul.f32 %v639, %v493
      %v672 = vmul.f32 %v640, %v498
      %v673 = vmul.f32 %v641, %v501
      %v674 = vmul.f32 %v642, %v506
      %v675 = vmul.f32 %v643, %v509
      %v676 = vmul.f32 %v644, %v514
      %v677 = vmul.f32 %v645, %v517
      %v678 = vmul.f32 %v646, %v522
      %v679 = vmul.f32 %v647, %v525
      %v680 = vmul.f32 %v648, %v530
      %v681 = vmul.f32 %v649, %v533
      %v682 = vmul.f32 %v650, %v538
      %v683 = vmul.f32 %v651, %v541
      %v684 = vmul.f32 %v652, %v546
      %v685 = vmul.f32 %v653, %v549
      %v686 = vmul.f32 %v654, %v554
      %v687 = vmul.f32 %v655, %v557
      %v688 = vadd.f32 %v434, %v656
      %v689 = vadd.f32 %v437, %v657
      %v690 = vadd.f32 %v442, %v658
      %v691 = vadd.f32 %v445, %v659
      %v692 = vadd.f32 %v450, %v660
      %v693 = vadd.f32 %v453, %v661
      %v694 = vadd.f32 %v458, %v662
      %v695 = vadd.f32 %v461, %v663
      %v696 = vadd.f32 %v466, %v664
      %v697 = vadd.f32 %v469, %v665
      %v698 = vadd.f32 %v474, %v666
      %v699 = vadd.f32 %v477, %v667
      %v700 = vadd.f32 %v482, %v668
      %v701 = vadd.f32 %v485, %v669
      %v702 = vadd.f32 %v490, %v670
      %v703 = vadd.f32 %v493, %v671
      %v704 = vadd.f32 %v498, %v672
      %v705 = vadd.f32 %v501, %v673
      %v706 = vadd.f32 %v506, %v674
      %v707 = vadd.f32 %v509, %v675
      %v708 = vadd.f32 %v514, %v676
      %v709 = vadd.f32 %v517, %v677
      %v710 = vadd.f32 %v522, %v678
      %v711 = vadd.f32 %v525, %v679
      %v712 = vadd.f32 %v530, %v680
      %v713 = vadd.f32 %v533, %v681
      %v714 = vadd.f32 %v538, %v682
      %v715 = vadd.f32 %v541, %v683
      %v716 = vadd.f32 %v546, %v684
      %v717 = vadd.f32 %v549, %v685
      %v718 = vadd.f32 %v554, %v686
      %v719 = vadd.f32 %v557, %v687
      %v720 = vmul.f32 %v688, 0.7978846
      %v721 = vmul.f32 %v689, 0.7978846
      %v722 = vmul.f32 %v690, 0.7978846
      %v723 = vmul.f32 %v691, 0.7978846
      %v724 = vmul.f32 %v692, 0.7978846
      %v725 = vmul.f32 %v693, 0.7978846
      %v726 = vmul.f32 %v694, 0.7978846
      %v727 = vmul.f32 %v695, 0.7978846
      %v728 = vmul.f32 %v696, 0.7978846
      %v729 = vmul.f32 %v697, 0.7978846
      %v730 = vmul.f32 %v698, 0.7978846
      %v731 = vmul.f32 %v699, 0.7978846
      %v732 = vmul.f32 %v700, 0.7978846
      %v733 = vmul.f32 %v701, 0.7978846
      %v734 = vmul.f32 %v702, 0.7978846
      %v735 = vmul.f32 %v703, 0.7978846
      %v736 = vmul.f32 %v704, 0.7978846
      %v737 = vmul.f32 %v705, 0.7978846
      %v738 = vmul.f32 %v706, 0.7978846
      %v739 = vmul.f32 %v707, 0.7978846
      %v740 = vmul.f32 %v708, 0.7978846
      %v741 = vmul.f32 %v709, 0.7978846
      %v742 = vmul.f32 %v710, 0.7978846
      %v743 = vmul.f32 %v711, 0.7978846
      %v744 = vmul.f32 %v712, 0.7978846
      %v745 = vmul.f32 %v713, 0.7978846
      %v746 = vmul.f32 %v714, 0.7978846
      %v747 = vmul.f32 %v715, 0.7978846
      %v748 = vmul.f32 %v716, 0.7978846
      %v749 = vmul.f32 %v717, 0.7978846
      %v750 = vmul.f32 %v718, 0.7978846
      %v751 = vmul.f32 %v719, 0.7978846
      %v752 = vtanh.pop %v720
      %v753 = vtanh.pop %v721
      %v754 = vtanh.pop %v722
      %v755 = vtanh.pop %v723
      %v756 = vtanh.pop %v724
      %v757 = vtanh.pop %v725
      %v758 = vtanh.pop %v726
      %v759 = vtanh.pop %v727
      %v760 = vtanh.pop %v728
      %v761 = vtanh.pop %v729
      %v762 = vtanh.pop %v730
      %v763 = vtanh.pop %v731
      %v764 = vtanh.pop %v732
      %v765 = vtanh.pop %v733
      %v766 = vtanh.pop %v734
      %v767 = vtanh.pop %v735
      %v768 = vtanh.pop %v736
      %v769 = vtanh.pop %v737
      %v770 = vtanh.pop %v738
      %v771 = vtanh.pop %v739
      %v772 = vtanh.pop %v740
      %v773 = vtanh.pop %v741
      %v774 = vtanh.pop %v742
      %v775 = vtanh.pop %v743
      %v776 = vtanh.pop %v744
      %v777 = vtanh.pop %v745
      %v778 = vtanh.pop %v746
      %v779 = vtanh.pop %v747
      %v780 = vtanh.pop %v748
      %v781 = vtanh.pop %v749
      %v782 = vtanh.pop %v750
      %v783 = vtanh.pop %v751
      %v784 = vadd.f32 %v752, 1.0
      %v785 = vadd.f32 %v753, 1.0
      %v786 = vadd.f32 %v754, 1.0
      %v787 = vadd.f32 %v755, 1.0
      %v788 = vadd.f32 %v756, 1.0
      %v789 = vadd.f32 %v757, 1.0
      %v790 = vadd.f32 %v758, 1.0
      %v791 = vadd.f32 %v759, 1.0
      %v792 = vadd.f32 %v760, 1.0
      %v793 = vadd.f32 %v761, 1.0
      %v794 = vadd.f32 %v762, 1.0
      %v795 = vadd.f32 %v763, 1.0
      %v796 = vadd.f32 %v764, 1.0
      %v797 = vadd.f32 %v765, 1.0
      %v798 = vadd.f32 %v766, 1.0
      %v799 = vadd.f32 %v767, 1.0
      %v800 = vadd.f32 %v768, 1.0
      %v801 = vadd.f32 %v769, 1.0
      %v802 = vadd.f32 %v770, 1.0
      %v803 = vadd.f32 %v771, 1.0
      %v804 = vadd.f32 %v772, 1.0
      %v805 = vadd.f32 %v773, 1.0
      %v806 = vadd.f32 %v774, 1.0
      %v807 = vadd.f32 %v775, 1.0
      %v808 = vadd.f32 %v776, 1.0
      %v809 = vadd.f32 %v777, 1.0
      %v810 = vadd.f32 %v778, 1.0
      %v811 = vadd.f32 %v779, 1.0
      %v812 = vadd.f32 %v780, 1.0
      %v813 = vadd.f32 %v781, 1.0
      %v814 = vadd.f32 %v782, 1.0
      %v815 = vadd.f32 %v783, 1.0
      %v816 = vmul.f32 %v560, %v784
      %v817 = vmul.f32 %v561, %v785
      %v818 = vmul.f32 %v562, %v786
      %v819 = vmul.f32 %v563, %v787
      %v820 = vmul.f32 %v564, %v788
      %v821 = vmul.f32 %v565, %v789
      %v822 = vmul.f32 %v566, %v790
      %v823 = vmul.f32 %v567, %v791
      %v824 = vmul.f32 %v568, %v792
      %v825 = vmul.f32 %v569, %v793
      %v826 = vmul.f32 %v570, %v794
      %v827 = vmul.f32 %v571, %v795
      %v828 = vmul.f32 %v572, %v796
      %v829 = vmul.f32 %v573, %v797
      %v830 = vmul.f32 %v574, %v798
      %v831 = vmul.f32 %v575, %v799
      %v832 = vmul.f32 %v576, %v800
      %v833 = vmul.f32 %v577, %v801
      %v834 = vmul.f32 %v578, %v802
      %v835 = vmul.f32 %v579, %v803
      %v836 = vmul.f32 %v580, %v804
      %v837 = vmul.f32 %v581, %v805
      %v838 = vmul.f32 %v582, %v806
      %v839 = vmul.f32 %v583, %v807
      %v840 = vmul.f32 %v584, %v808
      %v841 = vmul.f32 %v585, %v809
      %v842 = vmul.f32 %v586, %v810
      %v843 = vmul.f32 %v587, %v811
      %v844 = vmul.f32 %v588, %v812
      %v845 = vmul.f32 %v589, %v813
      %v846 = vmul.f32 %v590, %v814
      %v847 = vmul.f32 %v591, %v815
      %s848 = scalar_lea.vmem %s1, 64
      %v849 = vld [vmem:[%s848] sm:$0xf]
      %v850 = vld [vmem:[%s848 + $0x4] sm:$0xf]
      %v851 = vld [vmem:[%s848 + $0x8] sm:$0xf]
      %v852 = vld [vmem:[%s848 + $0xc] sm:$0xf]
      %v853 = vld [vmem:[%s848 + $0x10] sm:$0xf]
      %v854 = vld [vmem:[%s848 + $0x14] sm:$0xf]
      %v855 = vld [vmem:[%s848 + $0x18] sm:$0xf]
      %v856 = vld [vmem:[%s848 + $0x1c] sm:$0xf]
      %v857 = vld [vmem:[%s848 + $0x20] sm:$0xf]
      %v858 = vld [vmem:[%s848 + $0x24] sm:$0xf]
      %v859 = vld [vmem:[%s848 + $0x28] sm:$0xf]
      %v860 = vld [vmem:[%s848 + $0x2c] sm:$0xf]
      %v861 = vld [vmem:[%s848 + $0x30] sm:$0xf]
      %v862 = vld [vmem:[%s848 + $0x34] sm:$0xf]
      %v863 = vld [vmem:[%s848 + $0x38] sm:$0xf]
      %v864 = vld [vmem:[%s848 + $0x3c] sm:$0xf]
      %v865 = vpack.c.bf16 %v817, %v816
      %v866 = vpack.c.bf16 %v819, %v818
      %v867 = vpack.c.bf16 %v821, %v820
      %v868 = vpack.c.bf16 %v823, %v822
      %v869 = vpack.c.bf16 %v825, %v824
      %v870 = vpack.c.bf16 %v827, %v826
      %v871 = vpack.c.bf16 %v829, %v828
      %v872 = vpack.c.bf16 %v831, %v830
      %v873 = vpack.c.bf16 %v833, %v832
      %v874 = vpack.c.bf16 %v835, %v834
      %v875 = vpack.c.bf16 %v837, %v836
      %v876 = vpack.c.bf16 %v839, %v838
      %v877 = vpack.c.bf16 %v841, %v840
      %v878 = vpack.c.bf16 %v843, %v842
      %v879 = vpack.c.bf16 %v845, %v844
      %v880 = vpack.c.bf16 %v847, %v846
      %v881 = vlaneseq
      %v882 = vshrl.u32 %v881, 7
      %v883 = vsub.s32 1, %v882
      %v884 = vrot.slane %v202, %v883
      %v901 = vunpack.c.l.b16 %v849
      %v902 = vunpack.c.l.b16 %v850
      %v903 = vunpack.c.l.b16 %v851
      %v904 = vunpack.c.l.b16 %v852
      %v905 = vunpack.c.l.b16 %v853
      %v906 = vunpack.c.l.b16 %v854
      %v907 = vunpack.c.l.b16 %v855
      %v908 = vunpack.c.l.b16 %v856
      %v909 = vunpack.c.l.b16 %v857
      %v910 = vunpack.c.l.b16 %v858
      %v911 = vunpack.c.l.b16 %v859
      %v912 = vunpack.c.l.b16 %v860
      %v913 = vunpack.c.l.b16 %v861
      %v914 = vunpack.c.l.b16 %v862
      %v915 = vunpack.c.l.b16 %v863
      %v916 = vunpack.c.l.b16 %v864
      %v917 = vpack.c.b16 %v902, %v901
      %v918 = vpack.c.b16 %v904, %v903
      %v919 = vpack.c.b16 %v906, %v905
      %v920 = vpack.c.b16 %v908, %v907
      %v921 = vpack.c.b16 %v910, %v909
      %v922 = vpack.c.b16 %v912, %v911
      %v923 = vpack.c.b16 %v914, %v913
      %v924 = vpack.c.b16 %v916, %v915
      %933 = vmatprep.subr.bf16.mxu0 0
      %934 = vmatpush1.bf16.msra.mxu0 %v917
      %935 = vmatprep.subr.bf16.mxu0 0
      %936 = vmatpush1.bf16.msra.mxu0 %v918
      %937 = vmatprep.subr.bf16.mxu0 0
      %938 = vmatpush1.bf16.msra.mxu0 %v919
      %939 = vmatprep.subr.bf16.mxu0 0
      %940 = vmatpush1.bf16.msra.mxu0 %v920
      %941 = vmatprep.subr.bf16.mxu0 0
      %942 = vmatpush1.bf16.msra.mxu0 %v921
      %943 = vmatprep.subr.bf16.mxu0 0
      %944 = vmatpush1.bf16.msra.mxu0 %v922
      %945 = vmatprep.subr.bf16.mxu0 0
      %946 = vmatpush1.bf16.msra.mxu0 %v923
      %947 = vmatprep.subr.bf16.mxu0 0
      %948 = vmatpush1.bf16.msra.mxu0 %v924
      %949 = vmatprep.subr.bf16.mxu0 0
      %950 = vmatpush1.bf16.msra.mxu0 0
      %951 = vmatprep.subr.bf16.mxu0 0
      %952 = vmatpush1.bf16.msra.mxu0 0
      %953 = vmatprep.subr.bf16.mxu0 0
      %954 = vmatpush1.bf16.msra.mxu0 0
      %955 = vmatprep.subr.bf16.mxu0 0
      %956 = vmatpush1.bf16.msra.mxu0 0
      %957 = vmatprep.subr.bf16.mxu0 0
      %958 = vmatpush1.bf16.msra.mxu0 0
      %959 = vmatprep.subr.bf16.mxu0 0
      %960 = vmatpush1.bf16.msra.mxu0 0
      %961 = vmatprep.subr.bf16.mxu0 0
      %962 = vmatpush1.bf16.msra.mxu0 0
      %963 = vmatprep.subr.bf16.mxu0 0
      %964 = vmatpush1.bf16.msra.mxu0 0
      %965 = vmatprep.mubr.bf16.mxu0 0
      %966 = vmatmul.mubr.bf16.gmra.mrb[0].mxu0 %v865
      %v967 = vpop.f32.mrb[0].mxu0
      %v968 = vadd.f32 %v884, %v967
      %v969 = vpop.f32.mrb[0].mxu0
      %v970 = vpop.f32.mrb[0].mxu0
      %v971 = vadd.f32 %v884, %v970
      %v972 = vpop.f32.mrb[0].mxu0
      %973 = vmatprep.mubr.bf16.mxu0 0
      %974 = vmatmul.mubr.bf16.gmra.mrb[0].mxu0 %v866
      %v975 = vpop.f32.mrb[0].mxu0
      %v976 = vadd.f32 %v884, %v975
      %v977 = vpop.f32.mrb[0].mxu0
      %v978 = vpop.f32.mrb[0].mxu0
      %v979 = vadd.f32 %v884, %v978
      %v980 = vpop.f32.mrb[0].mxu0
      %981 = vmatprep.mubr.bf16.mxu0 0
      %982 = vmatmul.mubr.bf16.gmra.mrb[0].mxu0 %v867
      %v983 = vpop.f32.mrb[0].mxu0
      %v984 = vadd.f32 %v884, %v983
      %v985 = vpop.f32.mrb[0].mxu0
      %v986 = vpop.f32.mrb[0].mxu0
      %v987 = vadd.f32 %v884, %v986
      %v988 = vpop.f32.mrb[0].mxu0
      %989 = vmatprep.mubr.bf16.mxu0 0
      %990 = vmatmul.mubr.bf16.gmra.mrb[0].mxu0 %v868
      %v991 = vpop.f32.mrb[0].mxu0
      %v992 = vadd.f32 %v884, %v991
      %v993 = vpop.f32.mrb[0].mxu0
      %v994 = vpop.f32.mrb[0].mxu0
      %v995 = vadd.f32 %v884, %v994
      %v996 = vpop.f32.mrb[0].mxu0
      %997 = vmatprep.mubr.bf16.mxu0 0
      %998 = vmatmul.mubr.bf16.gmra.mrb[0].mxu0 %v869
      %v999 = vpop.f32.mrb[0].mxu0
      %v1000 = vadd.f32 %v884, %v999
      %v1001 = vpop.f32.mrb[0].mxu0
      %v1002 = vpop.f32.mrb[0].mxu0
      %v1003 = vadd.f32 %v884, %v1002
      %v1004 = vpop.f32.mrb[0].mxu0
      %1005 = vmatprep.mubr.bf16.mxu0 0
      %1006 = vmatmul.mubr.bf16.gmra.mrb[0].mxu0 %v870
      %v1007 = vpop.f32.mrb[0].mxu0
      %v1008 = vadd.f32 %v884, %v1007
      %v1009 = vpop.f32.mrb[0].mxu0
      %v1010 = vpop.f32.mrb[0].mxu0
      %v1011 = vadd.f32 %v884, %v1010
      %v1012 = vpop.f32.mrb[0].mxu0
      %1013 = vmatprep.mubr.bf16.mxu0 0
      %1014 = vmatmul.mubr.bf16.gmra.mrb[0].mxu0 %v871
      %v1015 = vpop.f32.mrb[0].mxu0
      %v1016 = vadd.f32 %v884, %v1015
      %v1017 = vpop.f32.mrb[0].mxu0
      %v1018 = vpop.f32.mrb[0].mxu0
      %v1019 = vadd.f32 %v884, %v1018
      %v1020 = vpop.f32.mrb[0].mxu0
      %1021 = vmatprep.mubr.bf16.mxu0 0
      %1022 = vmatmul.mubr.bf16.gmra.mrb[0].mxu0 %v872
      %v1023 = vpop.f32.mrb[0].mxu0
      %v1024 = vadd.f32 %v884, %v1023
      %v1025 = vpop.f32.mrb[0].mxu0
      %v1026 = vpop.f32.mrb[0].mxu0
      %v1027 = vadd.f32 %v884, %v1026
      %v1028 = vpop.f32.mrb[0].mxu0
      %1029 = vmatprep.mubr.bf16.mxu0 0
      %1030 = vmatmul.mubr.bf16.gmra.mrb[0].mxu0 %v873
      %v1031 = vpop.f32.mrb[0].mxu0
      %v1032 = vadd.f32 %v884, %v1031
      %v1033 = vpop.f32.mrb[0].mxu0
      %v1034 = vpop.f32.mrb[0].mxu0
      %v1035 = vadd.f32 %v884, %v1034
      %v1036 = vpop.f32.mrb[0].mxu0
      %1037 = vmatprep.mubr.bf16.mxu0 0
      %1038 = vmatmul.mubr.bf16.gmra.mrb[0].mxu0 %v874
      %v1039 = vpop.f32.mrb[0].mxu0
      %v1040 = vadd.f32 %v884, %v1039
      %v1041 = vpop.f32.mrb[0].mxu0
      %v1042 = vpop.f32.mrb[0].mxu0
      %v1043 = vadd.f32 %v884, %v1042
      %v1044 = vpop.f32.mrb[0].mxu0
      %1045 = vmatprep.mubr.bf16.mxu0 0
      %1046 = vmatmul.mubr.bf16.gmra.mrb[0].mxu0 %v875
      %v1047 = vpop.f32.mrb[0].mxu0
      %v1048 = vadd.f32 %v884, %v1047
      %v1049 = vpop.f32.mrb[0].mxu0
      %v1050 = vpop.f32.mrb[0].mxu0
      %v1051 = vadd.f32 %v884, %v1050
      %v1052 = vpop.f32.mrb[0].mxu0
      %1053 = vmatprep.mubr.bf16.mxu0 0
      %1054 = vmatmul.mubr.bf16.gmra.mrb[0].mxu0 %v876
      %v1055 = vpop.f32.mrb[0].mxu0
      %v1056 = vadd.f32 %v884, %v1055
      %v1057 = vpop.f32.mrb[0].mxu0
      %v1058 = vpop.f32.mrb[0].mxu0
      %v1059 = vadd.f32 %v884, %v1058
      %v1060 = vpop.f32.mrb[0].mxu0
      %1061 = vmatprep.mubr.bf16.mxu0 0
      %1062 = vmatmul.mubr.bf16.gmra.mrb[0].mxu0 %v877
      %v1063 = vpop.f32.mrb[0].mxu0
      %v1064 = vadd.f32 %v884, %v1063
      %v1065 = vpop.f32.mrb[0].mxu0
      %v1066 = vpop.f32.mrb[0].mxu0
      %v1067 = vadd.f32 %v884, %v1066
      %v1068 = vpop.f32.mrb[0].mxu0
      %1069 = vmatprep.mubr.bf16.mxu0 0
      %1070 = vmatmul.mubr.bf16.gmra.mrb[0].mxu0 %v878
      %v1071 = vpop.f32.mrb[0].mxu0
      %v1072 = vadd.f32 %v884, %v1071
      %v1073 = vpop.f32.mrb[0].mxu0
      %v1074 = vpop.f32.mrb[0].mxu0
      %v1075 = vadd.f32 %v884, %v1074
      %v1076 = vpop.f32.mrb[0].mxu0
      %1077 = vmatprep.mubr.bf16.mxu0 0
      %1078 = vmatmul.mubr.bf16.gmra.mrb[0].mxu0 %v879
      %v1079 = vpop.f32.mrb[0].mxu0
      %v1080 = vadd.f32 %v884, %v1079
      %v1081 = vpop.f32.mrb[0].mxu0
      %v1082 = vpop.f32.mrb[0].mxu0
      %v1083 = vadd.f32 %v884, %v1082
      %v1084 = vpop.f32.mrb[0].mxu0
      %1085 = vmatprep.mubr.bf16.mxu0 0
      %1086 = vmatmul.mubr.bf16.gmra.mrb[0].mxu0 %v880
      %v1087 = vpop.f32.mrb[0].mxu0
      %v1088 = vadd.f32 %v884, %v1087
      %v1089 = vpop.f32.mrb[0].mxu0
      %v1090 = vpop.f32.mrb[0].mxu0
      %v1091 = vadd.f32 %v884, %v1090
      %v1092 = vpop.f32.mrb[0].mxu0
      %1093 = vdwg.mxu0
      %v1094 = vmul.f32 %v968, 0.5
      %v1095 = vmul.f32 %v971, 0.5
      %v1096 = vmul.f32 %v976, 0.5
      %v1097 = vmul.f32 %v979, 0.5
      %v1098 = vmul.f32 %v984, 0.5
      %v1099 = vmul.f32 %v987, 0.5
      %v1100 = vmul.f32 %v992, 0.5
      %v1101 = vmul.f32 %v995, 0.5
      %v1102 = vmul.f32 %v1000, 0.5
      %v1103 = vmul.f32 %v1003, 0.5
      %v1104 = vmul.f32 %v1008, 0.5
      %v1105 = vmul.f32 %v1011, 0.5
      %v1106 = vmul.f32 %v1016, 0.5
      %v1107 = vmul.f32 %v1019, 0.5
      %v1108 = vmul.f32 %v1024, 0.5
      %v1109 = vmul.f32 %v1027, 0.5
      %v1110 = vmul.f32 %v1032, 0.5
      %v1111 = vmul.f32 %v1035, 0.5
      %v1112 = vmul.f32 %v1040, 0.5
      %v1113 = vmul.f32 %v1043, 0.5
      %v1114 = vmul.f32 %v1048, 0.5
      %v1115 = vmul.f32 %v1051, 0.5
      %v1116 = vmul.f32 %v1056, 0.5
      %v1117 = vmul.f32 %v1059, 0.5
      %v1118 = vmul.f32 %v1064, 0.5
      %v1119 = vmul.f32 %v1067, 0.5
      %v1120 = vmul.f32 %v1072, 0.5
      %v1121 = vmul.f32 %v1075, 0.5
      %v1122 = vmul.f32 %v1080, 0.5
      %v1123 = vmul.f32 %v1083, 0.5
      %v1124 = vmul.f32 %v1088, 0.5
      %v1125 = vmul.f32 %v1091, 0.5
      %v1126 = vmul.f32 %v968, 0.044715
      %v1127 = vmul.f32 %v971, 0.044715
      %v1128 = vmul.f32 %v976, 0.044715
      %v1129 = vmul.f32 %v979, 0.044715
      %v1130 = vmul.f32 %v984, 0.044715
      %v1131 = vmul.f32 %v987, 0.044715
      %v1132 = vmul.f32 %v992, 0.044715
      %v1133 = vmul.f32 %v995, 0.044715
      %v1134 = vmul.f32 %v1000, 0.044715
      %v1135 = vmul.f32 %v1003, 0.044715
      %v1136 = vmul.f32 %v1008, 0.044715
      %v1137 = vmul.f32 %v1011, 0.044715
      %v1138 = vmul.f32 %v1016, 0.044715
      %v1139 = vmul.f32 %v1019, 0.044715
      %v1140 = vmul.f32 %v1024, 0.044715
      %v1141 = vmul.f32 %v1027, 0.044715
      %v1142 = vmul.f32 %v1032, 0.044715
      %v1143 = vmul.f32 %v1035, 0.044715
      %v1144 = vmul.f32 %v1040, 0.044715
      %v1145 = vmul.f32 %v1043, 0.044715
      %v1146 = vmul.f32 %v1048, 0.044715
      %v1147 = vmul.f32 %v1051, 0.044715
      %v1148 = vmul.f32 %v1056, 0.044715
      %v1149 = vmul.f32 %v1059, 0.044715
      %v1150 = vmul.f32 %v1064, 0.044715
      %v1151 = vmul.f32 %v1067, 0.044715
      %v1152 = vmul.f32 %v1072, 0.044715
      %v1153 = vmul.f32 %v1075, 0.044715
      %v1154 = vmul.f32 %v1080, 0.044715
      %v1155 = vmul.f32 %v1083, 0.044715
      %v1156 = vmul.f32 %v1088, 0.044715
      %v1157 = vmul.f32 %v1091, 0.044715
      %v1158 = vmul.f32 %v1126, %v968
      %v1159 = vmul.f32 %v1127, %v971
      %v1160 = vmul.f32 %v1128, %v976
      %v1161 = vmul.f32 %v1129, %v979
      %v1162 = vmul.f32 %v1130, %v984
      %v1163 = vmul.f32 %v1131, %v987
      %v1164 = vmul.f32 %v1132, %v992
      %v1165 = vmul.f32 %v1133, %v995
      %v1166 = vmul.f32 %v1134, %v1000
      %v1167 = vmul.f32 %v1135, %v1003
      %v1168 = vmul.f32 %v1136, %v1008
      %v1169 = vmul.f32 %v1137, %v1011
      %v1170 = vmul.f32 %v1138, %v1016
      %v1171 = vmul.f32 %v1139, %v1019
      %v1172 = vmul.f32 %v1140, %v1024
      %v1173 = vmul.f32 %v1141, %v1027
      %v1174 = vmul.f32 %v1142, %v1032
      %v1175 = vmul.f32 %v1143, %v1035
      %v1176 = vmul.f32 %v1144, %v1040
      %v1177 = vmul.f32 %v1145, %v1043
      %v1178 = vmul.f32 %v1146, %v1048
      %v1179 = vmul.f32 %v1147, %v1051
      %v1180 = vmul.f32 %v1148, %v1056
      %v1181 = vmul.f32 %v1149, %v1059
      %v1182 = vmul.f32 %v1150, %v1064
      %v1183 = vmul.f32 %v1151, %v1067
      %v1184 = vmul.f32 %v1152, %v1072
      %v1185 = vmul.f32 %v1153, %v1075
      %v1186 = vmul.f32 %v1154, %v1080
      %v1187 = vmul.f32 %v1155, %v1083
      %v1188 = vmul.f32 %v1156, %v1088
      %v1189 = vmul.f32 %v1157, %v1091
      %v1190 = vmul.f32 %v1158, %v968
      %v1191 = vmul.f32 %v1159, %v971
      %v1192 = vmul.f32 %v1160, %v976
      %v1193 = vmul.f32 %v1161, %v979
      %v1194 = vmul.f32 %v1162, %v984
      %v1195 = vmul.f32 %v1163, %v987
      %v1196 = vmul.f32 %v1164, %v992
      %v1197 = vmul.f32 %v1165, %v995
      %v1198 = vmul.f32 %v1166, %v1000
      %v1199 = vmul.f32 %v1167, %v1003
      %v1200 = vmul.f32 %v1168, %v1008
      %v1201 = vmul.f32 %v1169, %v1011
      %v1202 = vmul.f32 %v1170, %v1016
      %v1203 = vmul.f32 %v1171, %v1019
      %v1204 = vmul.f32 %v1172, %v1024
      %v1205 = vmul.f32 %v1173, %v1027
      %v1206 = vmul.f32 %v1174, %v1032
      %v1207 = vmul.f32 %v1175, %v1035
      %v1208 = vmul.f32 %v1176, %v1040
      %v1209 = vmul.f32 %v1177, %v1043
      %v1210 = vmul.f32 %v1178, %v1048
      %v1211 = vmul.f32 %v1179, %v1051
      %v1212 = vmul.f32 %v1180, %v1056
      %v1213 = vmul.f32 %v1181, %v1059
      %v1214 = vmul.f32 %v1182, %v1064
      %v1215 = vmul.f32 %v1183, %v1067
      %v1216 = vmul.f32 %v1184, %v1072
      %v1217 = vmul.f32 %v1185, %v1075
      %v1218 = vmul.f32 %v1186, %v1080
      %v1219 = vmul.f32 %v1187, %v1083
      %v1220 = vmul.f32 %v1188, %v1088
      %v1221 = vmul.f32 %v1189, %v1091
      %v1222 = vadd.f32 %v968, %v1190
      %v1223 = vadd.f32 %v971, %v1191
      %v1224 = vadd.f32 %v976, %v1192
      %v1225 = vadd.f32 %v979, %v1193
      %v1226 = vadd.f32 %v984, %v1194
      %v1227 = vadd.f32 %v987, %v1195
      %v1228 = vadd.f32 %v992, %v1196
      %v1229 = vadd.f32 %v995, %v1197
      %v1230 = vadd.f32 %v1000, %v1198
      %v1231 = vadd.f32 %v1003, %v1199
      %v1232 = vadd.f32 %v1008, %v1200
      %v1233 = vadd.f32 %v1011, %v1201
      %v1234 = vadd.f32 %v1016, %v1202
      %v1235 = vadd.f32 %v1019, %v1203
      %v1236 = vadd.f32 %v1024, %v1204
      %v1237 = vadd.f32 %v1027, %v1205
      %v1238 = vadd.f32 %v1032, %v1206
      %v1239 = vadd.f32 %v1035, %v1207
      %v1240 = vadd.f32 %v1040, %v1208
      %v1241 = vadd.f32 %v1043, %v1209
      %v1242 = vadd.f32 %v1048, %v1210
      %v1243 = vadd.f32 %v1051, %v1211
      %v1244 = vadd.f32 %v1056, %v1212
      %v1245 = vadd.f32 %v1059, %v1213
      %v1246 = vadd.f32 %v1064, %v1214
      %v1247 = vadd.f32 %v1067, %v1215
      %v1248 = vadd.f32 %v1072, %v1216
      %v1249 = vadd.f32 %v1075, %v1217
      %v1250 = vadd.f32 %v1080, %v1218
      %v1251 = vadd.f32 %v1083, %v1219
      %v1252 = vadd.f32 %v1088, %v1220
      %v1253 = vadd.f32 %v1091, %v1221
      %v1254 = vmul.f32 %v1222, 0.7978846
      %v1255 = vmul.f32 %v1223, 0.7978846
      %v1256 = vmul.f32 %v1224, 0.7978846
      %v1257 = vmul.f32 %v1225, 0.7978846
      %v1258 = vmul.f32 %v1226, 0.7978846
      %v1259 = vmul.f32 %v1227, 0.7978846
      %v1260 = vmul.f32 %v1228, 0.7978846
      %v1261 = vmul.f32 %v1229, 0.7978846
      %v1262 = vmul.f32 %v1230, 0.7978846
      %v1263 = vmul.f32 %v1231, 0.7978846
      %v1264 = vmul.f32 %v1232, 0.7978846
      %v1265 = vmul.f32 %v1233, 0.7978846
      %v1266 = vmul.f32 %v1234, 0.7978846
      %v1267 = vmul.f32 %v1235, 0.7978846
      %v1268 = vmul.f32 %v1236, 0.7978846
      %v1269 = vmul.f32 %v1237, 0.7978846
      %v1270 = vmul.f32 %v1238, 0.7978846
      %v1271 = vmul.f32 %v1239, 0.7978846
      %v1272 = vmul.f32 %v1240, 0.7978846
      %v1273 = vmul.f32 %v1241, 0.7978846
      %v1274 = vmul.f32 %v1242, 0.7978846
      %v1275 = vmul.f32 %v1243, 0.7978846
      %v1276 = vmul.f32 %v1244, 0.7978846
      %v1277 = vmul.f32 %v1245, 0.7978846
      %v1278 = vmul.f32 %v1246, 0.7978846
      %v1279 = vmul.f32 %v1247, 0.7978846
      %v1280 = vmul.f32 %v1248, 0.7978846
      %v1281 = vmul.f32 %v1249, 0.7978846
      %v1282 = vmul.f32 %v1250, 0.7978846
      %v1283 = vmul.f32 %v1251, 0.7978846
      %v1284 = vmul.f32 %v1252, 0.7978846
      %v1285 = vmul.f32 %v1253, 0.7978846
      %v1286 = vtanh.pop %v1254
      %v1287 = vtanh.pop %v1255
      %v1288 = vtanh.pop %v1256
      %v1289 = vtanh.pop %v1257
      %v1290 = vtanh.pop %v1258
      %v1291 = vtanh.pop %v1259
      %v1292 = vtanh.pop %v1260
      %v1293 = vtanh.pop %v1261
      %v1294 = vtanh.pop %v1262
      %v1295 = vtanh.pop %v1263
      %v1296 = vtanh.pop %v1264
      %v1297 = vtanh.pop %v1265
      %v1298 = vtanh.pop %v1266
      %v1299 = vtanh.pop %v1267
      %v1300 = vtanh.pop %v1268
      %v1301 = vtanh.pop %v1269
      %v1302 = vtanh.pop %v1270
      %v1303 = vtanh.pop %v1271
      %v1304 = vtanh.pop %v1272
      %v1305 = vtanh.pop %v1273
      %v1306 = vtanh.pop %v1274
      %v1307 = vtanh.pop %v1275
      %v1308 = vtanh.pop %v1276
      %v1309 = vtanh.pop %v1277
      %v1310 = vtanh.pop %v1278
      %v1311 = vtanh.pop %v1279
      %v1312 = vtanh.pop %v1280
      %v1313 = vtanh.pop %v1281
      %v1314 = vtanh.pop %v1282
      %v1315 = vtanh.pop %v1283
      %v1316 = vtanh.pop %v1284
      %v1317 = vtanh.pop %v1285
      %v1318 = vadd.f32 %v1286, 1.0
      %v1319 = vadd.f32 %v1287, 1.0
      %v1320 = vadd.f32 %v1288, 1.0
      %v1321 = vadd.f32 %v1289, 1.0
      %v1322 = vadd.f32 %v1290, 1.0
      %v1323 = vadd.f32 %v1291, 1.0
      %v1324 = vadd.f32 %v1292, 1.0
      %v1325 = vadd.f32 %v1293, 1.0
      %v1326 = vadd.f32 %v1294, 1.0
      %v1327 = vadd.f32 %v1295, 1.0
      %v1328 = vadd.f32 %v1296, 1.0
      %v1329 = vadd.f32 %v1297, 1.0
      %v1330 = vadd.f32 %v1298, 1.0
      %v1331 = vadd.f32 %v1299, 1.0
      %v1332 = vadd.f32 %v1300, 1.0
      %v1333 = vadd.f32 %v1301, 1.0
      %v1334 = vadd.f32 %v1302, 1.0
      %v1335 = vadd.f32 %v1303, 1.0
      %v1336 = vadd.f32 %v1304, 1.0
      %v1337 = vadd.f32 %v1305, 1.0
      %v1338 = vadd.f32 %v1306, 1.0
      %v1339 = vadd.f32 %v1307, 1.0
      %v1340 = vadd.f32 %v1308, 1.0
      %v1341 = vadd.f32 %v1309, 1.0
      %v1342 = vadd.f32 %v1310, 1.0
      %v1343 = vadd.f32 %v1311, 1.0
      %v1344 = vadd.f32 %v1312, 1.0
      %v1345 = vadd.f32 %v1313, 1.0
      %v1346 = vadd.f32 %v1314, 1.0
      %v1347 = vadd.f32 %v1315, 1.0
      %v1348 = vadd.f32 %v1316, 1.0
      %v1349 = vadd.f32 %v1317, 1.0
      %v1350 = vmul.f32 %v1094, %v1318
      %v1351 = vmul.f32 %v1095, %v1319
      %v1352 = vmul.f32 %v1096, %v1320
      %v1353 = vmul.f32 %v1097, %v1321
      %v1354 = vmul.f32 %v1098, %v1322
      %v1355 = vmul.f32 %v1099, %v1323
      %v1356 = vmul.f32 %v1100, %v1324
      %v1357 = vmul.f32 %v1101, %v1325
      %v1358 = vmul.f32 %v1102, %v1326
      %v1359 = vmul.f32 %v1103, %v1327
      %v1360 = vmul.f32 %v1104, %v1328
      %v1361 = vmul.f32 %v1105, %v1329
      %v1362 = vmul.f32 %v1106, %v1330
      %v1363 = vmul.f32 %v1107, %v1331
      %v1364 = vmul.f32 %v1108, %v1332
      %v1365 = vmul.f32 %v1109, %v1333
      %v1366 = vmul.f32 %v1110, %v1334
      %v1367 = vmul.f32 %v1111, %v1335
      %v1368 = vmul.f32 %v1112, %v1336
      %v1369 = vmul.f32 %v1113, %v1337
      %v1370 = vmul.f32 %v1114, %v1338
      %v1371 = vmul.f32 %v1115, %v1339
      %v1372 = vmul.f32 %v1116, %v1340
      %v1373 = vmul.f32 %v1117, %v1341
      %v1374 = vmul.f32 %v1118, %v1342
      %v1375 = vmul.f32 %v1119, %v1343
      %v1376 = vmul.f32 %v1120, %v1344
      %v1377 = vmul.f32 %v1121, %v1345
      %v1378 = vmul.f32 %v1122, %v1346
      %v1379 = vmul.f32 %v1123, %v1347
      %v1380 = vmul.f32 %v1124, %v1348
      %v1381 = vmul.f32 %v1125, %v1349
      %v1382 = vpack.c.bf16 %v1351, %v1350
      %v1383 = vpack.c.bf16 %v1353, %v1352
      %v1384 = vpack.c.bf16 %v1355, %v1354
      %v1385 = vpack.c.bf16 %v1357, %v1356
      %v1386 = vpack.c.bf16 %v1359, %v1358
      %v1387 = vpack.c.bf16 %v1361, %v1360
      %v1388 = vpack.c.bf16 %v1363, %v1362
      %v1389 = vpack.c.bf16 %v1365, %v1364
      %v1390 = vpack.c.bf16 %v1367, %v1366
      %v1391 = vpack.c.bf16 %v1369, %v1368
      %v1392 = vpack.c.bf16 %v1371, %v1370
      %v1393 = vpack.c.bf16 %v1373, %v1372
      %v1394 = vpack.c.bf16 %v1375, %v1374
      %v1395 = vpack.c.bf16 %v1377, %v1376
      %v1396 = vpack.c.bf16 %v1379, %v1378
      %v1397 = vpack.c.bf16 %v1381, %v1380
      %v1398 = vld [vmem:[%s2] sm:$0xff]
      %v1399 = vld [vmem:[%s2 + $0x8] sm:$0xff]
      %v1400 = vld [vmem:[%s2 + $0x10] sm:$0xff]
      %v1401 = vld [vmem:[%s2 + $0x18] sm:$0xff]
      %v1402 = vld [vmem:[%s2 + $0x20] sm:$0xff]
      %v1403 = vld [vmem:[%s2 + $0x28] sm:$0xff]
      %v1404 = vld [vmem:[%s2 + $0x30] sm:$0xff]
      %v1405 = vld [vmem:[%s2 + $0x38] sm:$0xff]
      %v1406 = vld [vmem:[%s2 + $0x40] sm:$0xff]
      %v1407 = vld [vmem:[%s2 + $0x48] sm:$0xff]
      %v1408 = vld [vmem:[%s2 + $0x50] sm:$0xff]
      %v1409 = vld [vmem:[%s2 + $0x58] sm:$0xff]
      %v1410 = vld [vmem:[%s2 + $0x60] sm:$0xff]
      %v1411 = vld [vmem:[%s2 + $0x68] sm:$0xff]
      %v1412 = vld [vmem:[%s2 + $0x70] sm:$0xff]
      %v1413 = vld [vmem:[%s2 + $0x78] sm:$0xff]
      %v1430 = vunpack.c.l.b16 %v1398
      %v1431 = vunpack.c.h.b16 %v1398
      %v1432 = vunpack.c.l.b16 %v1399
      %v1433 = vunpack.c.h.b16 %v1399
      %v1434 = vunpack.c.l.b16 %v1400
      %v1435 = vunpack.c.h.b16 %v1400
      %v1436 = vunpack.c.l.b16 %v1401
      %v1437 = vunpack.c.h.b16 %v1401
      %v1438 = vunpack.c.l.b16 %v1402
      %v1439 = vunpack.c.h.b16 %v1402
      %v1440 = vunpack.c.l.b16 %v1403
      %v1441 = vunpack.c.h.b16 %v1403
      %v1442 = vunpack.c.l.b16 %v1404
      %v1443 = vunpack.c.h.b16 %v1404
      %v1444 = vunpack.c.l.b16 %v1405
      %v1445 = vunpack.c.h.b16 %v1405
      %v1446 = vunpack.c.l.b16 %v1406
      %v1447 = vunpack.c.h.b16 %v1406
      %v1448 = vunpack.c.l.b16 %v1407
      %v1449 = vunpack.c.h.b16 %v1407
      %v1450 = vunpack.c.l.b16 %v1408
      %v1451 = vunpack.c.h.b16 %v1408
      %v1452 = vunpack.c.l.b16 %v1409
      %v1453 = vunpack.c.h.b16 %v1409
      %v1454 = vunpack.c.l.b16 %v1410
      %v1455 = vunpack.c.h.b16 %v1410
      %v1456 = vunpack.c.l.b16 %v1411
      %v1457 = vunpack.c.h.b16 %v1411
      %v1458 = vunpack.c.l.b16 %v1412
      %v1459 = vunpack.c.h.b16 %v1412
      %v1460 = vunpack.c.l.b16 %v1413
      %v1461 = vunpack.c.h.b16 %v1413
      %v1462 = vpack.c.b16 %v1432, %v1430
      %v1463 = vpack.c.b16 %v1433, %v1431
      %v1464 = vpack.c.b16 %v1436, %v1434
      %v1465 = vpack.c.b16 %v1437, %v1435
      %v1466 = vpack.c.b16 %v1440, %v1438
      %v1467 = vpack.c.b16 %v1441, %v1439
      %v1468 = vpack.c.b16 %v1444, %v1442
      %v1469 = vpack.c.b16 %v1445, %v1443
      %v1470 = vpack.c.b16 %v1448, %v1446
      %v1471 = vpack.c.b16 %v1449, %v1447
      %v1472 = vpack.c.b16 %v1452, %v1450
      %v1473 = vpack.c.b16 %v1453, %v1451
      %v1474 = vpack.c.b16 %v1456, %v1454
      %v1475 = vpack.c.b16 %v1457, %v1455
      %v1476 = vpack.c.b16 %v1460, %v1458
      %v1477 = vpack.c.b16 %v1461, %v1459
      %1494 = vmatprep.subr.bf16.mxu0 %v1463
      %1495 = vmatpush1.bf16.msra.mxu0 %v1462
      %1496 = vmatprep.subr.bf16.mxu0 %v1465
      %1497 = vmatpush1.bf16.msra.mxu0 %v1464
      %1498 = vmatprep.subr.bf16.mxu0 %v1467
      %1499 = vmatpush1.bf16.msra.mxu0 %v1466
      %1500 = vmatprep.subr.bf16.mxu0 %v1469
      %1501 = vmatpush1.bf16.msra.mxu0 %v1468
      %1502 = vmatprep.subr.bf16.mxu0 %v1471
      %1503 = vmatpush1.bf16.msra.mxu0 %v1470
      %1504 = vmatprep.subr.bf16.mxu0 %v1473
      %1505 = vmatpush1.bf16.msra.mxu0 %v1472
      %1506 = vmatprep.subr.bf16.mxu0 %v1475
      %1507 = vmatpush1.bf16.msra.mxu0 %v1474
      %1508 = vmatprep.subr.bf16.mxu0 %v1477
      %1509 = vmatpush1.bf16.msra.mxu0 %v1476
      %1510 = vmatprep.subr.bf16.mxu0 0
      %1511 = vmatpush1.bf16.msra.mxu0 0
      %1512 = vmatprep.subr.bf16.mxu0 0
      %1513 = vmatpush1.bf16.msra.mxu0 0
      %1514 = vmatprep.subr.bf16.mxu0 0
      %1515 = vmatpush1.bf16.msra.mxu0 0
      %1516 = vmatprep.subr.bf16.mxu0 0
      %1517 = vmatpush1.bf16.msra.mxu0 0
      %1518 = vmatprep.subr.bf16.mxu0 0
      %1519 = vmatpush1.bf16.msra.mxu0 0
      %1520 = vmatprep.subr.bf16.mxu0 0
      %1521 = vmatpush1.bf16.msra.mxu0 0
      %1522 = vmatprep.subr.bf16.mxu0 0
      %1523 = vmatpush1.bf16.msra.mxu0 0
      %1524 = vmatprep.subr.bf16.mxu0 0
      %1525 = vmatpush1.bf16.msra.mxu0 0
      %1526 = vmatprep.mubr.bf16.mxu0 0
      %1527 = vmatmul.mubr.bf16.gmra.mrb[0].mxu0 %v1382
      %v1528 = vpop.f32.mrb[0].mxu0
      %v1529 = vadd.f32 0.0, %v1528
      %v1530 = vpop.f32.mrb[0].mxu0
      %v1531 = vadd.f32 0.0, %v1530
      %v1532 = vpop.f32.mrb[0].mxu0
      %v1533 = vadd.f32 0.0, %v1532
      %v1534 = vpop.f32.mrb[0].mxu0
      %v1535 = vadd.f32 0.0, %v1534
      %1536 = vmatprep.mubr.bf16.mxu0 0
      %1537 = vmatmul.mubr.bf16.gmra.mrb[0].mxu0 %v1383
      %v1538 = vpop.f32.mrb[0].mxu0
      %v1539 = vadd.f32 0.0, %v1538
      %v1540 = vpop.f32.mrb[0].mxu0
      %v1541 = vadd.f32 0.0, %v1540
      %v1542 = vpop.f32.mrb[0].mxu0
      %v1543 = vadd.f32 0.0, %v1542
      %v1544 = vpop.f32.mrb[0].mxu0
      %v1545 = vadd.f32 0.0, %v1544
      %1546 = vmatprep.mubr.bf16.mxu0 0
      %1547 = vmatmul.mubr.bf16.gmra.mrb[0].mxu0 %v1384
      %v1548 = vpop.f32.mrb[0].mxu0
      %v1549 = vadd.f32 0.0, %v1548
      %v1550 = vpop.f32.mrb[0].mxu0
      %v1551 = vadd.f32 0.0, %v1550
      %v1552 = vpop.f32.mrb[0].mxu0
      %v1553 = vadd.f32 0.0, %v1552
      %v1554 = vpop.f32.mrb[0].mxu0
      %v1555 = vadd.f32 0.0, %v1554
      %1556 = vmatprep.mubr.bf16.mxu0 0
      %1557 = vmatmul.mubr.bf16.gmra.mrb[0].mxu0 %v1385
      %v1558 = vpop.f32.mrb[0].mxu0
      %v1559 = vadd.f32 0.0, %v1558
      %v1560 = vpop.f32.mrb[0].mxu0
      %v1561 = vadd.f32 0.0, %v1560
      %v1562 = vpop.f32.mrb[0].mxu0
      %v1563 = vadd.f32 0.0, %v1562
      %v1564 = vpop.f32.mrb[0].mxu0
      %v1565 = vadd.f32 0.0, %v1564
      %1566 = vmatprep.mubr.bf16.mxu0 0
      %1567 = vmatmul.mubr.bf16.gmra.mrb[0].mxu0 %v1386
      %v1568 = vpop.f32.mrb[0].mxu0
      %v1569 = vadd.f32 0.0, %v1568
      %v1570 = vpop.f32.mrb[0].mxu0
      %v1571 = vadd.f32 0.0, %v1570
      %v1572 = vpop.f32.mrb[0].mxu0
      %v1573 = vadd.f32 0.0, %v1572
      %v1574 = vpop.f32.mrb[0].mxu0
      %v1575 = vadd.f32 0.0, %v1574
      %1576 = vmatprep.mubr.bf16.mxu0 0
      %1577 = vmatmul.mubr.bf16.gmra.mrb[0].mxu0 %v1387
      %v1578 = vpop.f32.mrb[0].mxu0
      %v1579 = vadd.f32 0.0, %v1578
      %v1580 = vpop.f32.mrb[0].mxu0
      %v1581 = vadd.f32 0.0, %v1580
      %v1582 = vpop.f32.mrb[0].mxu0
      %v1583 = vadd.f32 0.0, %v1582
      %v1584 = vpop.f32.mrb[0].mxu0
      %v1585 = vadd.f32 0.0, %v1584
      %1586 = vmatprep.mubr.bf16.mxu0 0
      %1587 = vmatmul.mubr.bf16.gmra.mrb[0].mxu0 %v1388
      %v1588 = vpop.f32.mrb[0].mxu0
      %v1589 = vadd.f32 0.0, %v1588
      %v1590 = vpop.f32.mrb[0].mxu0
      %v1591 = vadd.f32 0.0, %v1590
      %v1592 = vpop.f32.mrb[0].mxu0
      %v1593 = vadd.f32 0.0, %v1592
      %v1594 = vpop.f32.mrb[0].mxu0
      %v1595 = vadd.f32 0.0, %v1594
      %1596 = vmatprep.mubr.bf16.mxu0 0
      %1597 = vmatmul.mubr.bf16.gmra.mrb[0].mxu0 %v1389
      %v1598 = vpop.f32.mrb[0].mxu0
      %v1599 = vadd.f32 0.0, %v1598
      %v1600 = vpop.f32.mrb[0].mxu0
      %v1601 = vadd.f32 0.0, %v1600
      %v1602 = vpop.f32.mrb[0].mxu0
      %v1603 = vadd.f32 0.0, %v1602
      %v1604 = vpop.f32.mrb[0].mxu0
      %v1605 = vadd.f32 0.0, %v1604
      %1606 = vmatprep.mubr.bf16.mxu0 0
      %1607 = vmatmul.mubr.bf16.gmra.mrb[0].mxu0 %v1390
      %v1608 = vpop.f32.mrb[0].mxu0
      %v1609 = vadd.f32 0.0, %v1608
      %v1610 = vpop.f32.mrb[0].mxu0
      %v1611 = vadd.f32 0.0, %v1610
      %v1612 = vpop.f32.mrb[0].mxu0
      %v1613 = vadd.f32 0.0, %v1612
      %v1614 = vpop.f32.mrb[0].mxu0
      %v1615 = vadd.f32 0.0, %v1614
      %1616 = vmatprep.mubr.bf16.mxu0 0
      %1617 = vmatmul.mubr.bf16.gmra.mrb[0].mxu0 %v1391
      %v1618 = vpop.f32.mrb[0].mxu0
      %v1619 = vadd.f32 0.0, %v1618
      %v1620 = vpop.f32.mrb[0].mxu0
      %v1621 = vadd.f32 0.0, %v1620
      %v1622 = vpop.f32.mrb[0].mxu0
      %v1623 = vadd.f32 0.0, %v1622
      %v1624 = vpop.f32.mrb[0].mxu0
      %v1625 = vadd.f32 0.0, %v1624
      %1626 = vmatprep.mubr.bf16.mxu0 0
      %1627 = vmatmul.mubr.bf16.gmra.mrb[0].mxu0 %v1392
      %v1628 = vpop.f32.mrb[0].mxu0
      %v1629 = vadd.f32 0.0, %v1628
      %v1630 = vpop.f32.mrb[0].mxu0
      %v1631 = vadd.f32 0.0, %v1630
      %v1632 = vpop.f32.mrb[0].mxu0
      %v1633 = vadd.f32 0.0, %v1632
      %v1634 = vpop.f32.mrb[0].mxu0
      %v1635 = vadd.f32 0.0, %v1634
      %1636 = vmatprep.mubr.bf16.mxu0 0
      %1637 = vmatmul.mubr.bf16.gmra.mrb[0].mxu0 %v1393
      %v1638 = vpop.f32.mrb[0].mxu0
      %v1639 = vadd.f32 0.0, %v1638
      %v1640 = vpop.f32.mrb[0].mxu0
      %v1641 = vadd.f32 0.0, %v1640
      %v1642 = vpop.f32.mrb[0].mxu0
      %v1643 = vadd.f32 0.0, %v1642
      %v1644 = vpop.f32.mrb[0].mxu0
      %v1645 = vadd.f32 0.0, %v1644
      %1646 = vmatprep.mubr.bf16.mxu0 0
      %1647 = vmatmul.mubr.bf16.gmra.mrb[0].mxu0 %v1394
      %v1648 = vpop.f32.mrb[0].mxu0
      %v1649 = vadd.f32 0.0, %v1648
      %v1650 = vpop.f32.mrb[0].mxu0
      %v1651 = vadd.f32 0.0, %v1650
      %v1652 = vpop.f32.mrb[0].mxu0
      %v1653 = vadd.f32 0.0, %v1652
      %v1654 = vpop.f32.mrb[0].mxu0
      %v1655 = vadd.f32 0.0, %v1654
      %1656 = vmatprep.mubr.bf16.mxu0 0
      %1657 = vmatmul.mubr.bf16.gmra.mrb[0].mxu0 %v1395
      %v1658 = vpop.f32.mrb[0].mxu0
      %v1659 = vadd.f32 0.0, %v1658
      %v1660 = vpop.f32.mrb[0].mxu0
      %v1661 = vadd.f32 0.0, %v1660
      %v1662 = vpop.f32.mrb[0].mxu0
      %v1663 = vadd.f32 0.0, %v1662
      %v1664 = vpop.f32.mrb[0].mxu0
      %v1665 = vadd.f32 0.0, %v1664
      %1666 = vmatprep.mubr.bf16.mxu0 0
      %1667 = vmatmul.mubr.bf16.gmra.mrb[0].mxu0 %v1396
      %v1668 = vpop.f32.mrb[0].mxu0
      %v1669 = vadd.f32 0.0, %v1668
      %v1670 = vpop.f32.mrb[0].mxu0
      %v1671 = vadd.f32 0.0, %v1670
      %v1672 = vpop.f32.mrb[0].mxu0
      %v1673 = vadd.f32 0.0, %v1672
      %v1674 = vpop.f32.mrb[0].mxu0
      %v1675 = vadd.f32 0.0, %v1674
      %1676 = vmatprep.mubr.bf16.mxu0 0
      %1677 = vmatmul.mubr.bf16.gmra.mrb[0].mxu0 %v1397
      %v1678 = vpop.f32.mrb[0].mxu0
      %v1679 = vadd.f32 0.0, %v1678
      %v1680 = vpop.f32.mrb[0].mxu0
      %v1681 = vadd.f32 0.0, %v1680
      %v1682 = vpop.f32.mrb[0].mxu0
      %v1683 = vadd.f32 0.0, %v1682
      %v1684 = vpop.f32.mrb[0].mxu0
      %v1685 = vadd.f32 0.0, %v1684
      %1686 = vdwg.mxu0
      %v1687 = vlaneseq
      %v1688 = vshrl.u32 %v1687, 7
      %v1689 = vsub.s32 2, %v1688
      %v1690 = vrot.slane %v202, %v1689
      %v1691 = vadd.f32 %v1529, %v1690
      %v1692 = vadd.f32 %v1533, %v1690
      %v1693 = vadd.f32 %v1539, %v1690
      %v1694 = vadd.f32 %v1543, %v1690
      %v1695 = vadd.f32 %v1549, %v1690
      %v1696 = vadd.f32 %v1553, %v1690
      %v1697 = vadd.f32 %v1559, %v1690
      %v1698 = vadd.f32 %v1563, %v1690
      %v1699 = vadd.f32 %v1569, %v1690
      %v1700 = vadd.f32 %v1573, %v1690
      %v1701 = vadd.f32 %v1579, %v1690
      %v1702 = vadd.f32 %v1583, %v1690
      %v1703 = vadd.f32 %v1589, %v1690
      %v1704 = vadd.f32 %v1593, %v1690
      %v1705 = vadd.f32 %v1599, %v1690
      %v1706 = vadd.f32 %v1603, %v1690
      %v1707 = vadd.f32 %v1609, %v1690
      %v1708 = vadd.f32 %v1613, %v1690
      %v1709 = vadd.f32 %v1619, %v1690
      %v1710 = vadd.f32 %v1623, %v1690
      %v1711 = vadd.f32 %v1629, %v1690
      %v1712 = vadd.f32 %v1633, %v1690
      %v1713 = vadd.f32 %v1639, %v1690
      %v1714 = vadd.f32 %v1643, %v1690
      %v1715 = vadd.f32 %v1649, %v1690
      %v1716 = vadd.f32 %v1653, %v1690
      %v1717 = vadd.f32 %v1659, %v1690
      %v1718 = vadd.f32 %v1663, %v1690
      %v1719 = vadd.f32 %v1669, %v1690
      %v1720 = vadd.f32 %v1673, %v1690
      %v1721 = vadd.f32 %v1679, %v1690
      %v1722 = vadd.f32 %v1683, %v1690
      %v1723 = vlaneseq
      %v1724 = vshrl.u32 %v1723, 7
      %v1725 = vsub.s32 3, %v1724
      %v1726 = vrot.slane %v202, %v1725
      %v1727 = vadd.f32 %v1531, %v1726
      %v1728 = vadd.f32 %v1535, %v1726
      %v1729 = vadd.f32 %v1541, %v1726
      %v1730 = vadd.f32 %v1545, %v1726
      %v1731 = vadd.f32 %v1551, %v1726
      %v1732 = vadd.f32 %v1555, %v1726
      %v1733 = vadd.f32 %v1561, %v1726
      %v1734 = vadd.f32 %v1565, %v1726
      %v1735 = vadd.f32 %v1571, %v1726
      %v1736 = vadd.f32 %v1575, %v1726
      %v1737 = vadd.f32 %v1581, %v1726
      %v1738 = vadd.f32 %v1585, %v1726
      %v1739 = vadd.f32 %v1591, %v1726
      %v1740 = vadd.f32 %v1595, %v1726
      %v1741 = vadd.f32 %v1601, %v1726
      %v1742 = vadd.f32 %v1605, %v1726
      %v1743 = vadd.f32 %v1611, %v1726
      %v1744 = vadd.f32 %v1615, %v1726
      %v1745 = vadd.f32 %v1621, %v1726
      %v1746 = vadd.f32 %v1625, %v1726
      %v1747 = vadd.f32 %v1631, %v1726
      %v1748 = vadd.f32 %v1635, %v1726
      %v1749 = vadd.f32 %v1641, %v1726
      %v1750 = vadd.f32 %v1645, %v1726
      %v1751 = vadd.f32 %v1651, %v1726
      %v1752 = vadd.f32 %v1655, %v1726
      %v1753 = vadd.f32 %v1661, %v1726
      %v1754 = vadd.f32 %v1665, %v1726
      %v1755 = vadd.f32 %v1671, %v1726
      %v1756 = vadd.f32 %v1675, %v1726
      %v1757 = vadd.f32 %v1681, %v1726
      %v1758 = vadd.f32 %v1685, %v1726
      %v1759 = vlaneseq
      %v1760 = vand.u32 %v1759, 127
      %vm1761 = vcmp.ge.s32.totalorder %v1760, 64
      %vm1762 = vcmp.lt.s32.totalorder %v1760, 72
      %vm1763 = vmand %vm1761, %vm1762
      %v1764 = vunpack.c.l.bf16 %v203
      %v1765 = vunpack.c.l.bf16 %v204
      %v1766 = vunpack.c.l.bf16 %v205
      %v1767 = vunpack.c.l.bf16 %v206
      %v1768 = vunpack.c.l.bf16 %v207
      %v1769 = vunpack.c.l.bf16 %v208
      %v1770 = vunpack.c.l.bf16 %v209
      %v1771 = vunpack.c.l.bf16 %v210
      %v1772 = vunpack.c.l.bf16 %v211
      %v1773 = vunpack.c.l.bf16 %v212
      %v1774 = vunpack.c.l.bf16 %v213
      %v1775 = vunpack.c.l.bf16 %v214
      %v1776 = vunpack.c.l.bf16 %v215
      %v1777 = vunpack.c.l.bf16 %v216
      %v1778 = vunpack.c.l.bf16 %v217
      %v1779 = vunpack.c.l.bf16 %v218
      %v1780 = vunpack.c.l.bf16 %v219
      %v1781 = vunpack.c.l.bf16 %v220
      %v1782 = vunpack.c.l.bf16 %v221
      %v1783 = vunpack.c.l.bf16 %v222
      %v1784 = vunpack.c.l.bf16 %v223
      %v1785 = vunpack.c.l.bf16 %v224
      %v1786 = vunpack.c.l.bf16 %v225
      %v1787 = vunpack.c.l.bf16 %v226
      %v1788 = vunpack.c.l.bf16 %v227
      %v1789 = vunpack.c.l.bf16 %v228
      %v1790 = vunpack.c.l.bf16 %v229
      %v1791 = vunpack.c.l.bf16 %v230
      %v1792 = vunpack.c.l.bf16 %v231
      %v1793 = vunpack.c.l.bf16 %v232
      %v1794 = vunpack.c.l.bf16 %v233
      %v1795 = vunpack.c.l.bf16 %v234
      %v1796 = vsel %vm1763, %v1764, 0.0
      %v1797 = vsel %vm1763, %v1765, 0.0
      %v1798 = vsel %vm1763, %v1766, 0.0
      %v1799 = vsel %vm1763, %v1767, 0.0
      %v1800 = vsel %vm1763, %v1768, 0.0
      %v1801 = vsel %vm1763, %v1769, 0.0
      %v1802 = vsel %vm1763, %v1770, 0.0
      %v1803 = vsel %vm1763, %v1771, 0.0
      %v1804 = vsel %vm1763, %v1772, 0.0
      %v1805 = vsel %vm1763, %v1773, 0.0
      %v1806 = vsel %vm1763, %v1774, 0.0
      %v1807 = vsel %vm1763, %v1775, 0.0
      %v1808 = vsel %vm1763, %v1776, 0.0
      %v1809 = vsel %vm1763, %v1777, 0.0
      %v1810 = vsel %vm1763, %v1778, 0.0
      %v1811 = vsel %vm1763, %v1779, 0.0
      %v1812 = vsel %vm1763, %v1780, 0.0
      %v1813 = vsel %vm1763, %v1781, 0.0
      %v1814 = vsel %vm1763, %v1782, 0.0
      %v1815 = vsel %vm1763, %v1783, 0.0
      %v1816 = vsel %vm1763, %v1784, 0.0
      %v1817 = vsel %vm1763, %v1785, 0.0
      %v1818 = vsel %vm1763, %v1786, 0.0
      %v1819 = vsel %vm1763, %v1787, 0.0
      %v1820 = vsel %vm1763, %v1788, 0.0
      %v1821 = vsel %vm1763, %v1789, 0.0
      %v1822 = vsel %vm1763, %v1790, 0.0
      %v1823 = vsel %vm1763, %v1791, 0.0
      %v1824 = vsel %vm1763, %v1792, 0.0
      %v1825 = vsel %vm1763, %v1793, 0.0
      %v1826 = vsel %vm1763, %v1794, 0.0
      %v1827 = vsel %vm1763, %v1795, 0.0
      %v1828 = vmul.f32 %v1727, 0.5
      %v1829 = vmul.f32 %v1728, 0.5
      %v1830 = vmul.f32 %v1729, 0.5
      %v1831 = vmul.f32 %v1730, 0.5
      %v1832 = vmul.f32 %v1731, 0.5
      %v1833 = vmul.f32 %v1732, 0.5
      %v1834 = vmul.f32 %v1733, 0.5
      %v1835 = vmul.f32 %v1734, 0.5
      %v1836 = vmul.f32 %v1735, 0.5
      %v1837 = vmul.f32 %v1736, 0.5
      %v1838 = vmul.f32 %v1737, 0.5
      %v1839 = vmul.f32 %v1738, 0.5
      %v1840 = vmul.f32 %v1739, 0.5
      %v1841 = vmul.f32 %v1740, 0.5
      %v1842 = vmul.f32 %v1741, 0.5
      %v1843 = vmul.f32 %v1742, 0.5
      %v1844 = vmul.f32 %v1743, 0.5
      %v1845 = vmul.f32 %v1744, 0.5
      %v1846 = vmul.f32 %v1745, 0.5
      %v1847 = vmul.f32 %v1746, 0.5
      %v1848 = vmul.f32 %v1747, 0.5
      %v1849 = vmul.f32 %v1748, 0.5
      %v1850 = vmul.f32 %v1749, 0.5
      %v1851 = vmul.f32 %v1750, 0.5
      %v1852 = vmul.f32 %v1751, 0.5
      %v1853 = vmul.f32 %v1752, 0.5
      %v1854 = vmul.f32 %v1753, 0.5
      %v1855 = vmul.f32 %v1754, 0.5
      %v1856 = vmul.f32 %v1755, 0.5
      %v1857 = vmul.f32 %v1756, 0.5
      %v1858 = vmul.f32 %v1757, 0.5
      %v1859 = vmul.f32 %v1758, 0.5
      %v1860 = vmul.f32 %v1828, 1.442695
      %v1861 = vpow.pop %v1860
      %v1862 = vmul.f32 %v1829, 1.442695
      %v1863 = vpow.pop %v1862
      %v1864 = vmul.f32 %v1830, 1.442695
      %v1865 = vpow.pop %v1864
      %v1866 = vmul.f32 %v1831, 1.442695
      %v1867 = vpow.pop %v1866
      %v1868 = vmul.f32 %v1832, 1.442695
      %v1869 = vpow.pop %v1868
      %v1870 = vmul.f32 %v1833, 1.442695
      %v1871 = vpow.pop %v1870
      %v1872 = vmul.f32 %v1834, 1.442695
      %v1873 = vpow.pop %v1872
      %v1874 = vmul.f32 %v1835, 1.442695
      %v1875 = vpow.pop %v1874
      %v1876 = vmul.f32 %v1836, 1.442695
      %v1877 = vpow.pop %v1876
      %v1878 = vmul.f32 %v1837, 1.442695
      %v1879 = vpow.pop %v1878
      %v1880 = vmul.f32 %v1838, 1.442695
      %v1881 = vpow.pop %v1880
      %v1882 = vmul.f32 %v1839, 1.442695
      %v1883 = vpow.pop %v1882
      %v1884 = vmul.f32 %v1840, 1.442695
      %v1885 = vpow.pop %v1884
      %v1886 = vmul.f32 %v1841, 1.442695
      %v1887 = vpow.pop %v1886
      %v1888 = vmul.f32 %v1842, 1.442695
      %v1889 = vpow.pop %v1888
      %v1890 = vmul.f32 %v1843, 1.442695
      %v1891 = vpow.pop %v1890
      %v1892 = vmul.f32 %v1844, 1.442695
      %v1893 = vpow.pop %v1892
      %v1894 = vmul.f32 %v1845, 1.442695
      %v1895 = vpow.pop %v1894
      %v1896 = vmul.f32 %v1846, 1.442695
      %v1897 = vpow.pop %v1896
      %v1898 = vmul.f32 %v1847, 1.442695
      %v1899 = vpow.pop %v1898
      %v1900 = vmul.f32 %v1848, 1.442695
      %v1901 = vpow.pop %v1900
      %v1902 = vmul.f32 %v1849, 1.442695
      %v1903 = vpow.pop %v1902
      %v1904 = vmul.f32 %v1850, 1.442695
      %v1905 = vpow.pop %v1904
      %v1906 = vmul.f32 %v1851, 1.442695
      %v1907 = vpow.pop %v1906
      %v1908 = vmul.f32 %v1852, 1.442695
      %v1909 = vpow.pop %v1908
      %v1910 = vmul.f32 %v1853, 1.442695
      %v1911 = vpow.pop %v1910
      %v1912 = vmul.f32 %v1854, 1.442695
      %v1913 = vpow.pop %v1912
      %v1914 = vmul.f32 %v1855, 1.442695
      %v1915 = vpow.pop %v1914
      %v1916 = vmul.f32 %v1856, 1.442695
      %v1917 = vpow.pop %v1916
      %v1918 = vmul.f32 %v1857, 1.442695
      %v1919 = vpow.pop %v1918
      %v1920 = vmul.f32 %v1858, 1.442695
      %v1921 = vpow.pop %v1920
      %v1922 = vmul.f32 %v1859, 1.442695
      %v1923 = vpow.pop %v1922
      %v1924 = vmul.f32 %v1796, %v1861
      %v1925 = vmul.f32 %v1797, %v1863
      %v1926 = vmul.f32 %v1798, %v1865
      %v1927 = vmul.f32 %v1799, %v1867
      %v1928 = vmul.f32 %v1800, %v1869
      %v1929 = vmul.f32 %v1801, %v1871
      %v1930 = vmul.f32 %v1802, %v1873
      %v1931 = vmul.f32 %v1803, %v1875
      %v1932 = vmul.f32 %v1804, %v1877
      %v1933 = vmul.f32 %v1805, %v1879
      %v1934 = vmul.f32 %v1806, %v1881
      %v1935 = vmul.f32 %v1807, %v1883
      %v1936 = vmul.f32 %v1808, %v1885
      %v1937 = vmul.f32 %v1809, %v1887
      %v1938 = vmul.f32 %v1810, %v1889
      %v1939 = vmul.f32 %v1811, %v1891
      %v1940 = vmul.f32 %v1812, %v1893
      %v1941 = vmul.f32 %v1813, %v1895
      %v1942 = vmul.f32 %v1814, %v1897
      %v1943 = vmul.f32 %v1815, %v1899
      %v1944 = vmul.f32 %v1816, %v1901
      %v1945 = vmul.f32 %v1817, %v1903
      %v1946 = vmul.f32 %v1818, %v1905
      %v1947 = vmul.f32 %v1819, %v1907
      %v1948 = vmul.f32 %v1820, %v1909
      %v1949 = vmul.f32 %v1821, %v1911
      %v1950 = vmul.f32 %v1822, %v1913
      %v1951 = vmul.f32 %v1823, %v1915
      %v1952 = vmul.f32 %v1824, %v1917
      %v1953 = vmul.f32 %v1825, %v1919
      %v1954 = vmul.f32 %v1826, %v1921
      %v1955 = vmul.f32 %v1827, %v1923
      %v1956 = vadd.f32 %v1691, %v1924
      %v1957 = vadd.f32 %v1692, %v1925
      %v1958 = vadd.f32 %v1693, %v1926
      %v1959 = vadd.f32 %v1694, %v1927
      %v1960 = vadd.f32 %v1695, %v1928
      %v1961 = vadd.f32 %v1696, %v1929
      %v1962 = vadd.f32 %v1697, %v1930
      %v1963 = vadd.f32 %v1698, %v1931
      %v1964 = vadd.f32 %v1699, %v1932
      %v1965 = vadd.f32 %v1700, %v1933
      %v1966 = vadd.f32 %v1701, %v1934
      %v1967 = vadd.f32 %v1702, %v1935
      %v1968 = vadd.f32 %v1703, %v1936
      %v1969 = vadd.f32 %v1704, %v1937
      %v1970 = vadd.f32 %v1705, %v1938
      %v1971 = vadd.f32 %v1706, %v1939
      %v1972 = vadd.f32 %v1707, %v1940
      %v1973 = vadd.f32 %v1708, %v1941
      %v1974 = vadd.f32 %v1709, %v1942
      %v1975 = vadd.f32 %v1710, %v1943
      %v1976 = vadd.f32 %v1711, %v1944
      %v1977 = vadd.f32 %v1712, %v1945
      %v1978 = vadd.f32 %v1713, %v1946
      %v1979 = vadd.f32 %v1714, %v1947
      %v1980 = vadd.f32 %v1715, %v1948
      %v1981 = vadd.f32 %v1716, %v1949
      %v1982 = vadd.f32 %v1717, %v1950
      %v1983 = vadd.f32 %v1718, %v1951
      %v1984 = vadd.f32 %v1719, %v1952
      %v1985 = vadd.f32 %v1720, %v1953
      %v1986 = vadd.f32 %v1721, %v1954
      %v1987 = vadd.f32 %v1722, %v1955
      %s1988 = scalar_lea.vmem %s1, 128
      %v1989 = vld [vmem:[%s1988] sm:$0xf]
      %v1990 = vld [vmem:[%s1988 + $0x4] sm:$0xf]
      %v1991 = vld [vmem:[%s1988 + $0x8] sm:$0xf]
      %v1992 = vld [vmem:[%s1988 + $0xc] sm:$0xf]
      %v1993 = vld [vmem:[%s1988 + $0x10] sm:$0xf]
      %v1994 = vld [vmem:[%s1988 + $0x14] sm:$0xf]
      %v1995 = vld [vmem:[%s1988 + $0x18] sm:$0xf]
      %v1996 = vld [vmem:[%s1988 + $0x1c] sm:$0xf]
      %v1997 = vld [vmem:[%s1988 + $0x20] sm:$0xf]
      %v1998 = vld [vmem:[%s1988 + $0x24] sm:$0xf]
      %v1999 = vld [vmem:[%s1988 + $0x28] sm:$0xf]
      %v2000 = vld [vmem:[%s1988 + $0x2c] sm:$0xf]
      %v2001 = vld [vmem:[%s1988 + $0x30] sm:$0xf]
      %v2002 = vld [vmem:[%s1988 + $0x34] sm:$0xf]
      %v2003 = vld [vmem:[%s1988 + $0x38] sm:$0xf]
      %v2004 = vld [vmem:[%s1988 + $0x3c] sm:$0xf]
      %v2005 = vpack.c.bf16 %v1957, %v1956
      %v2006 = vpack.c.bf16 %v1959, %v1958
      %v2007 = vpack.c.bf16 %v1961, %v1960
      %v2008 = vpack.c.bf16 %v1963, %v1962
      %v2009 = vpack.c.bf16 %v1965, %v1964
      %v2010 = vpack.c.bf16 %v1967, %v1966
      %v2011 = vpack.c.bf16 %v1969, %v1968
      %v2012 = vpack.c.bf16 %v1971, %v1970
      %v2013 = vpack.c.bf16 %v1973, %v1972
      %v2014 = vpack.c.bf16 %v1975, %v1974
      %v2015 = vpack.c.bf16 %v1977, %v1976
      %v2016 = vpack.c.bf16 %v1979, %v1978
      %v2017 = vpack.c.bf16 %v1981, %v1980
      %v2018 = vpack.c.bf16 %v1983, %v1982
      %v2019 = vpack.c.bf16 %v1985, %v1984
      %v2020 = vpack.c.bf16 %v1987, %v1986
      %v2021 = vlaneseq
      %v2022 = vshrl.u32 %v2021, 7
      %v2023 = vsub.s32 4, %v2022
      %v2024 = vrot.slane %v202, %v2023
      %v2041 = vunpack.c.l.b16 %v1989
      %v2042 = vunpack.c.l.b16 %v1990
      %v2043 = vunpack.c.l.b16 %v1991
      %v2044 = vunpack.c.l.b16 %v1992
      %v2045 = vunpack.c.l.b16 %v1993
      %v2046 = vunpack.c.l.b16 %v1994
      %v2047 = vunpack.c.l.b16 %v1995
      %v2048 = vunpack.c.l.b16 %v1996
      %v2049 = vunpack.c.l.b16 %v1997
      %v2050 = vunpack.c.l.b16 %v1998
      %v2051 = vunpack.c.l.b16 %v1999
      %v2052 = vunpack.c.l.b16 %v2000
      %v2053 = vunpack.c.l.b16 %v2001
      %v2054 = vunpack.c.l.b16 %v2002
      %v2055 = vunpack.c.l.b16 %v2003
      %v2056 = vunpack.c.l.b16 %v2004
      %v2057 = vpack.c.b16 %v2042, %v2041
      %v2058 = vpack.c.b16 %v2044, %v2043
      %v2059 = vpack.c.b16 %v2046, %v2045
      %v2060 = vpack.c.b16 %v2048, %v2047
      %v2061 = vpack.c.b16 %v2050, %v2049
      %v2062 = vpack.c.b16 %v2052, %v2051
      %v2063 = vpack.c.b16 %v2054, %v2053
      %v2064 = vpack.c.b16 %v2056, %v2055
      %2073 = vmatprep.subr.bf16.mxu0 0
      %2074 = vmatpush1.bf16.msra.mxu0 %v2057
      %2075 = vmatprep.subr.bf16.mxu0 0
      %2076 = vmatpush1.bf16.msra.mxu0 %v2058
      %2077 = vmatprep.subr.bf16.mxu0 0
      %2078 = vmatpush1.bf16.msra.mxu0 %v2059
      %2079 = vmatprep.subr.bf16.mxu0 0
      %2080 = vmatpush1.bf16.msra.mxu0 %v2060
      %2081 = vmatprep.subr.bf16.mxu0 0
      %2082 = vmatpush1.bf16.msra.mxu0 %v2061
      %2083 = vmatprep.subr.bf16.mxu0 0
      %2084 = vmatpush1.bf16.msra.mxu0 %v2062
      %2085 = vmatprep.subr.bf16.mxu0 0
      %2086 = vmatpush1.bf16.msra.mxu0 %v2063
      %2087 = vmatprep.subr.bf16.mxu0 0
      %2088 = vmatpush1.bf16.msra.mxu0 %v2064
      %2089 = vmatprep.subr.bf16.mxu0 0
      %2090 = vmatpush1.bf16.msra.mxu0 0
      %2091 = vmatprep.subr.bf16.mxu0 0
      %2092 = vmatpush1.bf16.msra.mxu0 0
      %2093 = vmatprep.subr.bf16.mxu0 0
      %2094 = vmatpush1.bf16.msra.mxu0 0
      %2095 = vmatprep.subr.bf16.mxu0 0
      %2096 = vmatpush1.bf16.msra.mxu0 0
      %2097 = vmatprep.subr.bf16.mxu0 0
      %2098 = vmatpush1.bf16.msra.mxu0 0
      %2099 = vmatprep.subr.bf16.mxu0 0
      %2100 = vmatpush1.bf16.msra.mxu0 0
      %2101 = vmatprep.subr.bf16.mxu0 0
      %2102 = vmatpush1.bf16.msra.mxu0 0
      %2103 = vmatprep.subr.bf16.mxu0 0
      %2104 = vmatpush1.bf16.msra.mxu0 0
      %2105 = vmatprep.mubr.bf16.mxu0 0
      %2106 = vmatmul.mubr.bf16.gmra.mrb[0].mxu0 %v2005
      %v2107 = vpop.f32.mrb[0].mxu0
      %v2108 = vadd.f32 %v2024, %v2107
      %v2109 = vpop.f32.mrb[0].mxu0
      %v2110 = vpop.f32.mrb[0].mxu0
      %v2111 = vadd.f32 %v2024, %v2110
      %v2112 = vpop.f32.mrb[0].mxu0
      %2113 = vmatprep.mubr.bf16.mxu0 0
      %2114 = vmatmul.mubr.bf16.gmra.mrb[0].mxu0 %v2006
      %v2115 = vpop.f32.mrb[0].mxu0
      %v2116 = vadd.f32 %v2024, %v2115
      %v2117 = vpop.f32.mrb[0].mxu0
      %v2118 = vpop.f32.mrb[0].mxu0
      %v2119 = vadd.f32 %v2024, %v2118
      %v2120 = vpop.f32.mrb[0].mxu0
      %2121 = vmatprep.mubr.bf16.mxu0 0
      %2122 = vmatmul.mubr.bf16.gmra.mrb[0].mxu0 %v2007
      %v2123 = vpop.f32.mrb[0].mxu0
      %v2124 = vadd.f32 %v2024, %v2123
      %v2125 = vpop.f32.mrb[0].mxu0
      %v2126 = vpop.f32.mrb[0].mxu0
      %v2127 = vadd.f32 %v2024, %v2126
      %v2128 = vpop.f32.mrb[0].mxu0
      %2129 = vmatprep.mubr.bf16.mxu0 0
      %2130 = vmatmul.mubr.bf16.gmra.mrb[0].mxu0 %v2008
      %v2131 = vpop.f32.mrb[0].mxu0
      %v2132 = vadd.f32 %v2024, %v2131
      %v2133 = vpop.f32.mrb[0].mxu0
      %v2134 = vpop.f32.mrb[0].mxu0
      %v2135 = vadd.f32 %v2024, %v2134
      %v2136 = vpop.f32.mrb[0].mxu0
      %2137 = vmatprep.mubr.bf16.mxu0 0
      %2138 = vmatmul.mubr.bf16.gmra.mrb[0].mxu0 %v2009
      %v2139 = vpop.f32.mrb[0].mxu0
      %v2140 = vadd.f32 %v2024, %v2139
      %v2141 = vpop.f32.mrb[0].mxu0
      %v2142 = vpop.f32.mrb[0].mxu0
      %v2143 = vadd.f32 %v2024, %v2142
      %v2144 = vpop.f32.mrb[0].mxu0
      %2145 = vmatprep.mubr.bf16.mxu0 0
      %2146 = vmatmul.mubr.bf16.gmra.mrb[0].mxu0 %v2010
      %v2147 = vpop.f32.mrb[0].mxu0
      %v2148 = vadd.f32 %v2024, %v2147
      %v2149 = vpop.f32.mrb[0].mxu0
      %v2150 = vpop.f32.mrb[0].mxu0
      %v2151 = vadd.f32 %v2024, %v2150
      %v2152 = vpop.f32.mrb[0].mxu0
      %2153 = vmatprep.mubr.bf16.mxu0 0
      %2154 = vmatmul.mubr.bf16.gmra.mrb[0].mxu0 %v2011
      %v2155 = vpop.f32.mrb[0].mxu0
      %v2156 = vadd.f32 %v2024, %v2155
      %v2157 = vpop.f32.mrb[0].mxu0
      %v2158 = vpop.f32.mrb[0].mxu0
      %v2159 = vadd.f32 %v2024, %v2158
      %v2160 = vpop.f32.mrb[0].mxu0
      %2161 = vmatprep.mubr.bf16.mxu0 0
      %2162 = vmatmul.mubr.bf16.gmra.mrb[0].mxu0 %v2012
      %v2163 = vpop.f32.mrb[0].mxu0
      %v2164 = vadd.f32 %v2024, %v2163
      %v2165 = vpop.f32.mrb[0].mxu0
      %v2166 = vpop.f32.mrb[0].mxu0
      %v2167 = vadd.f32 %v2024, %v2166
      %v2168 = vpop.f32.mrb[0].mxu0
      %2169 = vmatprep.mubr.bf16.mxu0 0
      %2170 = vmatmul.mubr.bf16.gmra.mrb[0].mxu0 %v2013
      %v2171 = vpop.f32.mrb[0].mxu0
      %v2172 = vadd.f32 %v2024, %v2171
      %v2173 = vpop.f32.mrb[0].mxu0
      %v2174 = vpop.f32.mrb[0].mxu0
      %v2175 = vadd.f32 %v2024, %v2174
      %v2176 = vpop.f32.mrb[0].mxu0
      %2177 = vmatprep.mubr.bf16.mxu0 0
      %2178 = vmatmul.mubr.bf16.gmra.mrb[0].mxu0 %v2014
      %v2179 = vpop.f32.mrb[0].mxu0
      %v2180 = vadd.f32 %v2024, %v2179
      %v2181 = vpop.f32.mrb[0].mxu0
      %v2182 = vpop.f32.mrb[0].mxu0
      %v2183 = vadd.f32 %v2024, %v2182
      %v2184 = vpop.f32.mrb[0].mxu0
      %2185 = vmatprep.mubr.bf16.mxu0 0
      %2186 = vmatmul.mubr.bf16.gmra.mrb[0].mxu0 %v2015
      %v2187 = vpop.f32.mrb[0].mxu0
      %v2188 = vadd.f32 %v2024, %v2187
      %v2189 = vpop.f32.mrb[0].mxu0
      %v2190 = vpop.f32.mrb[0].mxu0
      %v2191 = vadd.f32 %v2024, %v2190
      %v2192 = vpop.f32.mrb[0].mxu0
      %2193 = vmatprep.mubr.bf16.mxu0 0
      %2194 = vmatmul.mubr.bf16.gmra.mrb[0].mxu0 %v2016
      %v2195 = vpop.f32.mrb[0].mxu0
      %v2196 = vadd.f32 %v2024, %v2195
      %v2197 = vpop.f32.mrb[0].mxu0
      %v2198 = vpop.f32.mrb[0].mxu0
      %v2199 = vadd.f32 %v2024, %v2198
      %v2200 = vpop.f32.mrb[0].mxu0
      %2201 = vmatprep.mubr.bf16.mxu0 0
      %2202 = vmatmul.mubr.bf16.gmra.mrb[0].mxu0 %v2017
      %v2203 = vpop.f32.mrb[0].mxu0
      %v2204 = vadd.f32 %v2024, %v2203
      %v2205 = vpop.f32.mrb[0].mxu0
      %v2206 = vpop.f32.mrb[0].mxu0
      %v2207 = vadd.f32 %v2024, %v2206
      %v2208 = vpop.f32.mrb[0].mxu0
      %2209 = vmatprep.mubr.bf16.mxu0 0
      %2210 = vmatmul.mubr.bf16.gmra.mrb[0].mxu0 %v2018
      %v2211 = vpop.f32.mrb[0].mxu0
      %v2212 = vadd.f32 %v2024, %v2211
      %v2213 = vpop.f32.mrb[0].mxu0
      %v2214 = vpop.f32.mrb[0].mxu0
      %v2215 = vadd.f32 %v2024, %v2214
      %v2216 = vpop.f32.mrb[0].mxu0
      %2217 = vmatprep.mubr.bf16.mxu0 0
      %2218 = vmatmul.mubr.bf16.gmra.mrb[0].mxu0 %v2019
      %v2219 = vpop.f32.mrb[0].mxu0
      %v2220 = vadd.f32 %v2024, %v2219
      %v2221 = vpop.f32.mrb[0].mxu0
      %v2222 = vpop.f32.mrb[0].mxu0
      %v2223 = vadd.f32 %v2024, %v2222
      %v2224 = vpop.f32.mrb[0].mxu0
      %2225 = vmatprep.mubr.bf16.mxu0 0
      %2226 = vmatmul.mubr.bf16.gmra.mrb[0].mxu0 %v2020
      %v2227 = vpop.f32.mrb[0].mxu0
      %v2228 = vadd.f32 %v2024, %v2227
      %v2229 = vpop.f32.mrb[0].mxu0
      %v2230 = vpop.f32.mrb[0].mxu0
      %v2231 = vadd.f32 %v2024, %v2230
      %v2232 = vpop.f32.mrb[0].mxu0
      %2233 = vdwg.mxu0
      %v2234 = vmul.f32 %v2108, 0.5
      %v2235 = vmul.f32 %v2111, 0.5
      %v2236 = vmul.f32 %v2116, 0.5
      %v2237 = vmul.f32 %v2119, 0.5
      %v2238 = vmul.f32 %v2124, 0.5
      %v2239 = vmul.f32 %v2127, 0.5
      %v2240 = vmul.f32 %v2132, 0.5
      %v2241 = vmul.f32 %v2135, 0.5
      %v2242 = vmul.f32 %v2140, 0.5
      %v2243 = vmul.f32 %v2143, 0.5
      %v2244 = vmul.f32 %v2148, 0.5
      %v2245 = vmul.f32 %v2151, 0.5
      %v2246 = vmul.f32 %v2156, 0.5
      %v2247 = vmul.f32 %v2159, 0.5
      %v2248 = vmul.f32 %v2164, 0.5
      %v2249 = vmul.f32 %v2167, 0.5
      %v2250 = vmul.f32 %v2172, 0.5
      %v2251 = vmul.f32 %v2175, 0.5
      %v2252 = vmul.f32 %v2180, 0.5
      %v2253 = vmul.f32 %v2183, 0.5
      %v2254 = vmul.f32 %v2188, 0.5
      %v2255 = vmul.f32 %v2191, 0.5
      %v2256 = vmul.f32 %v2196, 0.5
      %v2257 = vmul.f32 %v2199, 0.5
      %v2258 = vmul.f32 %v2204, 0.5
      %v2259 = vmul.f32 %v2207, 0.5
      %v2260 = vmul.f32 %v2212, 0.5
      %v2261 = vmul.f32 %v2215, 0.5
      %v2262 = vmul.f32 %v2220, 0.5
      %v2263 = vmul.f32 %v2223, 0.5
      %v2264 = vmul.f32 %v2228, 0.5
      %v2265 = vmul.f32 %v2231, 0.5
      %v2266 = vmul.f32 %v2108, 0.044715
      %v2267 = vmul.f32 %v2111, 0.044715
      %v2268 = vmul.f32 %v2116, 0.044715
      %v2269 = vmul.f32 %v2119, 0.044715
      %v2270 = vmul.f32 %v2124, 0.044715
      %v2271 = vmul.f32 %v2127, 0.044715
      %v2272 = vmul.f32 %v2132, 0.044715
      %v2273 = vmul.f32 %v2135, 0.044715
      %v2274 = vmul.f32 %v2140, 0.044715
      %v2275 = vmul.f32 %v2143, 0.044715
      %v2276 = vmul.f32 %v2148, 0.044715
      %v2277 = vmul.f32 %v2151, 0.044715
      %v2278 = vmul.f32 %v2156, 0.044715
      %v2279 = vmul.f32 %v2159, 0.044715
      %v2280 = vmul.f32 %v2164, 0.044715
      %v2281 = vmul.f32 %v2167, 0.044715
      %v2282 = vmul.f32 %v2172, 0.044715
      %v2283 = vmul.f32 %v2175, 0.044715
      %v2284 = vmul.f32 %v2180, 0.044715
      %v2285 = vmul.f32 %v2183, 0.044715
      %v2286 = vmul.f32 %v2188, 0.044715
      %v2287 = vmul.f32 %v2191, 0.044715
      %v2288 = vmul.f32 %v2196, 0.044715
      %v2289 = vmul.f32 %v2199, 0.044715
      %v2290 = vmul.f32 %v2204, 0.044715
      %v2291 = vmul.f32 %v2207, 0.044715
      %v2292 = vmul.f32 %v2212, 0.044715
      %v2293 = vmul.f32 %v2215, 0.044715
      %v2294 = vmul.f32 %v2220, 0.044715
      %v2295 = vmul.f32 %v2223, 0.044715
      %v2296 = vmul.f32 %v2228, 0.044715
      %v2297 = vmul.f32 %v2231, 0.044715
      %v2298 = vmul.f32 %v2266, %v2108
      %v2299 = vmul.f32 %v2267, %v2111
      %v2300 = vmul.f32 %v2268, %v2116
      %v2301 = vmul.f32 %v2269, %v2119
      %v2302 = vmul.f32 %v2270, %v2124
      %v2303 = vmul.f32 %v2271, %v2127
      %v2304 = vmul.f32 %v2272, %v2132
      %v2305 = vmul.f32 %v2273, %v2135
      %v2306 = vmul.f32 %v2274, %v2140
      %v2307 = vmul.f32 %v2275, %v2143
      %v2308 = vmul.f32 %v2276, %v2148
      %v2309 = vmul.f32 %v2277, %v2151
      %v2310 = vmul.f32 %v2278, %v2156
      %v2311 = vmul.f32 %v2279, %v2159
      %v2312 = vmul.f32 %v2280, %v2164
      %v2313 = vmul.f32 %v2281, %v2167
      %v2314 = vmul.f32 %v2282, %v2172
      %v2315 = vmul.f32 %v2283, %v2175
      %v2316 = vmul.f32 %v2284, %v2180
      %v2317 = vmul.f32 %v2285, %v2183
      %v2318 = vmul.f32 %v2286, %v2188
      %v2319 = vmul.f32 %v2287, %v2191
      %v2320 = vmul.f32 %v2288, %v2196
      %v2321 = vmul.f32 %v2289, %v2199
      %v2322 = vmul.f32 %v2290, %v2204
      %v2323 = vmul.f32 %v2291, %v2207
      %v2324 = vmul.f32 %v2292, %v2212
      %v2325 = vmul.f32 %v2293, %v2215
      %v2326 = vmul.f32 %v2294, %v2220
      %v2327 = vmul.f32 %v2295, %v2223
      %v2328 = vmul.f32 %v2296, %v2228
      %v2329 = vmul.f32 %v2297, %v2231
      %v2330 = vmul.f32 %v2298, %v2108
      %v2331 = vmul.f32 %v2299, %v2111
      %v2332 = vmul.f32 %v2300, %v2116
      %v2333 = vmul.f32 %v2301, %v2119
      %v2334 = vmul.f32 %v2302, %v2124
      %v2335 = vmul.f32 %v2303, %v2127
      %v2336 = vmul.f32 %v2304, %v2132
      %v2337 = vmul.f32 %v2305, %v2135
      %v2338 = vmul.f32 %v2306, %v2140
      %v2339 = vmul.f32 %v2307, %v2143
      %v2340 = vmul.f32 %v2308, %v2148
      %v2341 = vmul.f32 %v2309, %v2151
      %v2342 = vmul.f32 %v2310, %v2156
      %v2343 = vmul.f32 %v2311, %v2159
      %v2344 = vmul.f32 %v2312, %v2164
      %v2345 = vmul.f32 %v2313, %v2167
      %v2346 = vmul.f32 %v2314, %v2172
      %v2347 = vmul.f32 %v2315, %v2175
      %v2348 = vmul.f32 %v2316, %v2180
      %v2349 = vmul.f32 %v2317, %v2183
      %v2350 = vmul.f32 %v2318, %v2188
      %v2351 = vmul.f32 %v2319, %v2191
      %v2352 = vmul.f32 %v2320, %v2196
      %v2353 = vmul.f32 %v2321, %v2199
      %v2354 = vmul.f32 %v2322, %v2204
      %v2355 = vmul.f32 %v2323, %v2207
      %v2356 = vmul.f32 %v2324, %v2212
      %v2357 = vmul.f32 %v2325, %v2215
      %v2358 = vmul.f32 %v2326, %v2220
      %v2359 = vmul.f32 %v2327, %v2223
      %v2360 = vmul.f32 %v2328, %v2228
      %v2361 = vmul.f32 %v2329, %v2231
      %v2362 = vadd.f32 %v2108, %v2330
      %v2363 = vadd.f32 %v2111, %v2331
      %v2364 = vadd.f32 %v2116, %v2332
      %v2365 = vadd.f32 %v2119, %v2333
      %v2366 = vadd.f32 %v2124, %v2334
      %v2367 = vadd.f32 %v2127, %v2335
      %v2368 = vadd.f32 %v2132, %v2336
      %v2369 = vadd.f32 %v2135, %v2337
      %v2370 = vadd.f32 %v2140, %v2338
      %v2371 = vadd.f32 %v2143, %v2339
      %v2372 = vadd.f32 %v2148, %v2340
      %v2373 = vadd.f32 %v2151, %v2341
      %v2374 = vadd.f32 %v2156, %v2342
      %v2375 = vadd.f32 %v2159, %v2343
      %v2376 = vadd.f32 %v2164, %v2344
      %v2377 = vadd.f32 %v2167, %v2345
      %v2378 = vadd.f32 %v2172, %v2346
      %v2379 = vadd.f32 %v2175, %v2347
      %v2380 = vadd.f32 %v2180, %v2348
      %v2381 = vadd.f32 %v2183, %v2349
      %v2382 = vadd.f32 %v2188, %v2350
      %v2383 = vadd.f32 %v2191, %v2351
      %v2384 = vadd.f32 %v2196, %v2352
      %v2385 = vadd.f32 %v2199, %v2353
      %v2386 = vadd.f32 %v2204, %v2354
      %v2387 = vadd.f32 %v2207, %v2355
      %v2388 = vadd.f32 %v2212, %v2356
      %v2389 = vadd.f32 %v2215, %v2357
      %v2390 = vadd.f32 %v2220, %v2358
      %v2391 = vadd.f32 %v2223, %v2359
      %v2392 = vadd.f32 %v2228, %v2360
      %v2393 = vadd.f32 %v2231, %v2361
      %v2394 = vmul.f32 %v2362, 0.7978846
      %v2395 = vmul.f32 %v2363, 0.7978846
      %v2396 = vmul.f32 %v2364, 0.7978846
      %v2397 = vmul.f32 %v2365, 0.7978846
      %v2398 = vmul.f32 %v2366, 0.7978846
      %v2399 = vmul.f32 %v2367, 0.7978846
      %v2400 = vmul.f32 %v2368, 0.7978846
      %v2401 = vmul.f32 %v2369, 0.7978846
      %v2402 = vmul.f32 %v2370, 0.7978846
      %v2403 = vmul.f32 %v2371, 0.7978846
      %v2404 = vmul.f32 %v2372, 0.7978846
      %v2405 = vmul.f32 %v2373, 0.7978846
      %v2406 = vmul.f32 %v2374, 0.7978846
      %v2407 = vmul.f32 %v2375, 0.7978846
      %v2408 = vmul.f32 %v2376, 0.7978846
      %v2409 = vmul.f32 %v2377, 0.7978846
      %v2410 = vmul.f32 %v2378, 0.7978846
      %v2411 = vmul.f32 %v2379, 0.7978846
      %v2412 = vmul.f32 %v2380, 0.7978846
      %v2413 = vmul.f32 %v2381, 0.7978846
      %v2414 = vmul.f32 %v2382, 0.7978846
      %v2415 = vmul.f32 %v2383, 0.7978846
      %v2416 = vmul.f32 %v2384, 0.7978846
      %v2417 = vmul.f32 %v2385, 0.7978846
      %v2418 = vmul.f32 %v2386, 0.7978846
      %v2419 = vmul.f32 %v2387, 0.7978846
      %v2420 = vmul.f32 %v2388, 0.7978846
      %v2421 = vmul.f32 %v2389, 0.7978846
      %v2422 = vmul.f32 %v2390, 0.7978846
      %v2423 = vmul.f32 %v2391, 0.7978846
      %v2424 = vmul.f32 %v2392, 0.7978846
      %v2425 = vmul.f32 %v2393, 0.7978846
      %v2426 = vtanh.pop %v2394
      %v2427 = vtanh.pop %v2395
      %v2428 = vtanh.pop %v2396
      %v2429 = vtanh.pop %v2397
      %v2430 = vtanh.pop %v2398
      %v2431 = vtanh.pop %v2399
      %v2432 = vtanh.pop %v2400
      %v2433 = vtanh.pop %v2401
      %v2434 = vtanh.pop %v2402
      %v2435 = vtanh.pop %v2403
      %v2436 = vtanh.pop %v2404
      %v2437 = vtanh.pop %v2405
      %v2438 = vtanh.pop %v2406
      %v2439 = vtanh.pop %v2407
      %v2440 = vtanh.pop %v2408
      %v2441 = vtanh.pop %v2409
      %v2442 = vtanh.pop %v2410
      %v2443 = vtanh.pop %v2411
      %v2444 = vtanh.pop %v2412
      %v2445 = vtanh.pop %v2413
      %v2446 = vtanh.pop %v2414
      %v2447 = vtanh.pop %v2415
      %v2448 = vtanh.pop %v2416
      %v2449 = vtanh.pop %v2417
      %v2450 = vtanh.pop %v2418
      %v2451 = vtanh.pop %v2419
      %v2452 = vtanh.pop %v2420
      %v2453 = vtanh.pop %v2421
      %v2454 = vtanh.pop %v2422
      %v2455 = vtanh.pop %v2423
      %v2456 = vtanh.pop %v2424
      %v2457 = vtanh.pop %v2425
      %v2458 = vadd.f32 %v2426, 1.0
      %v2459 = vadd.f32 %v2427, 1.0
      %v2460 = vadd.f32 %v2428, 1.0
      %v2461 = vadd.f32 %v2429, 1.0
      %v2462 = vadd.f32 %v2430, 1.0
      %v2463 = vadd.f32 %v2431, 1.0
      %v2464 = vadd.f32 %v2432, 1.0
      %v2465 = vadd.f32 %v2433, 1.0
      %v2466 = vadd.f32 %v2434, 1.0
      %v2467 = vadd.f32 %v2435, 1.0
      %v2468 = vadd.f32 %v2436, 1.0
      %v2469 = vadd.f32 %v2437, 1.0
      %v2470 = vadd.f32 %v2438, 1.0
      %v2471 = vadd.f32 %v2439, 1.0
      %v2472 = vadd.f32 %v2440, 1.0
      %v2473 = vadd.f32 %v2441, 1.0
      %v2474 = vadd.f32 %v2442, 1.0
      %v2475 = vadd.f32 %v2443, 1.0
      %v2476 = vadd.f32 %v2444, 1.0
      %v2477 = vadd.f32 %v2445, 1.0
      %v2478 = vadd.f32 %v2446, 1.0
      %v2479 = vadd.f32 %v2447, 1.0
      %v2480 = vadd.f32 %v2448, 1.0
      %v2481 = vadd.f32 %v2449, 1.0
      %v2482 = vadd.f32 %v2450, 1.0
      %v2483 = vadd.f32 %v2451, 1.0
      %v2484 = vadd.f32 %v2452, 1.0
      %v2485 = vadd.f32 %v2453, 1.0
      %v2486 = vadd.f32 %v2454, 1.0
      %v2487 = vadd.f32 %v2455, 1.0
      %v2488 = vadd.f32 %v2456, 1.0
      %v2489 = vadd.f32 %v2457, 1.0
      %v2490 = vmul.f32 %v2234, %v2458
      %v2491 = vmul.f32 %v2235, %v2459
      %v2492 = vmul.f32 %v2236, %v2460
      %v2493 = vmul.f32 %v2237, %v2461
      %v2494 = vmul.f32 %v2238, %v2462
      %v2495 = vmul.f32 %v2239, %v2463
      %v2496 = vmul.f32 %v2240, %v2464
      %v2497 = vmul.f32 %v2241, %v2465
      %v2498 = vmul.f32 %v2242, %v2466
      %v2499 = vmul.f32 %v2243, %v2467
      %v2500 = vmul.f32 %v2244, %v2468
      %v2501 = vmul.f32 %v2245, %v2469
      %v2502 = vmul.f32 %v2246, %v2470
      %v2503 = vmul.f32 %v2247, %v2471
      %v2504 = vmul.f32 %v2248, %v2472
      %v2505 = vmul.f32 %v2249, %v2473
      %v2506 = vmul.f32 %v2250, %v2474
      %v2507 = vmul.f32 %v2251, %v2475
      %v2508 = vmul.f32 %v2252, %v2476
      %v2509 = vmul.f32 %v2253, %v2477
      %v2510 = vmul.f32 %v2254, %v2478
      %v2511 = vmul.f32 %v2255, %v2479
      %v2512 = vmul.f32 %v2256, %v2480
      %v2513 = vmul.f32 %v2257, %v2481
      %v2514 = vmul.f32 %v2258, %v2482
      %v2515 = vmul.f32 %v2259, %v2483
      %v2516 = vmul.f32 %v2260, %v2484
      %v2517 = vmul.f32 %v2261, %v2485
      %v2518 = vmul.f32 %v2262, %v2486
      %v2519 = vmul.f32 %v2263, %v2487
      %v2520 = vmul.f32 %v2264, %v2488
      %v2521 = vmul.f32 %v2265, %v2489
      %s2522 = scalar_lea.vmem %s1, 192
      %v2523 = vld [vmem:[%s2522] sm:$0xf]
      %v2524 = vld [vmem:[%s2522 + $0x4] sm:$0xf]
      %v2525 = vld [vmem:[%s2522 + $0x8] sm:$0xf]
      %v2526 = vld [vmem:[%s2522 + $0xc] sm:$0xf]
      %v2527 = vld [vmem:[%s2522 + $0x10] sm:$0xf]
      %v2528 = vld [vmem:[%s2522 + $0x14] sm:$0xf]
      %v2529 = vld [vmem:[%s2522 + $0x18] sm:$0xf]
      %v2530 = vld [vmem:[%s2522 + $0x1c] sm:$0xf]
      %v2531 = vld [vmem:[%s2522 + $0x20] sm:$0xf]
      %v2532 = vld [vmem:[%s2522 + $0x24] sm:$0xf]
      %v2533 = vld [vmem:[%s2522 + $0x28] sm:$0xf]
      %v2534 = vld [vmem:[%s2522 + $0x2c] sm:$0xf]
      %v2535 = vld [vmem:[%s2522 + $0x30] sm:$0xf]
      %v2536 = vld [vmem:[%s2522 + $0x34] sm:$0xf]
      %v2537 = vld [vmem:[%s2522 + $0x38] sm:$0xf]
      %v2538 = vld [vmem:[%s2522 + $0x3c] sm:$0xf]
      %v2539 = vpack.c.bf16 %v2491, %v2490
      %v2540 = vpack.c.bf16 %v2493, %v2492
      %v2541 = vpack.c.bf16 %v2495, %v2494
      %v2542 = vpack.c.bf16 %v2497, %v2496
      %v2543 = vpack.c.bf16 %v2499, %v2498
      %v2544 = vpack.c.bf16 %v2501, %v2500
      %v2545 = vpack.c.bf16 %v2503, %v2502
      %v2546 = vpack.c.bf16 %v2505, %v2504
      %v2547 = vpack.c.bf16 %v2507, %v2506
      %v2548 = vpack.c.bf16 %v2509, %v2508
      %v2549 = vpack.c.bf16 %v2511, %v2510
      %v2550 = vpack.c.bf16 %v2513, %v2512
      %v2551 = vpack.c.bf16 %v2515, %v2514
      %v2552 = vpack.c.bf16 %v2517, %v2516
      %v2553 = vpack.c.bf16 %v2519, %v2518
      %v2554 = vpack.c.bf16 %v2521, %v2520
      %v2555 = vlaneseq
      %v2556 = vshrl.u32 %v2555, 7
      %v2557 = vsub.s32 5, %v2556
      %v2558 = vrot.slane %v202, %v2557
      %v2575 = vunpack.c.l.b16 %v2523
      %v2576 = vunpack.c.l.b16 %v2524
      %v2577 = vunpack.c.l.b16 %v2525
      %v2578 = vunpack.c.l.b16 %v2526
      %v2579 = vunpack.c.l.b16 %v2527
      %v2580 = vunpack.c.l.b16 %v2528
      %v2581 = vunpack.c.l.b16 %v2529
      %v2582 = vunpack.c.l.b16 %v2530
      %v2583 = vunpack.c.l.b16 %v2531
      %v2584 = vunpack.c.l.b16 %v2532
      %v2585 = vunpack.c.l.b16 %v2533
      %v2586 = vunpack.c.l.b16 %v2534
      %v2587 = vunpack.c.l.b16 %v2535
      %v2588 = vunpack.c.l.b16 %v2536
      %v2589 = vunpack.c.l.b16 %v2537
      %v2590 = vunpack.c.l.b16 %v2538
      %v2591 = vpack.c.b16 %v2576, %v2575
      %v2592 = vpack.c.b16 %v2578, %v2577
      %v2593 = vpack.c.b16 %v2580, %v2579
      %v2594 = vpack.c.b16 %v2582, %v2581
      %v2595 = vpack.c.b16 %v2584, %v2583
      %v2596 = vpack.c.b16 %v2586, %v2585
      %v2597 = vpack.c.b16 %v2588, %v2587
      %v2598 = vpack.c.b16 %v2590, %v2589
      %2607 = vmatprep.subr.bf16.mxu0 0
      %2608 = vmatpush1.bf16.msra.mxu0 %v2591
      %2609 = vmatprep.subr.bf16.mxu0 0
      %2610 = vmatpush1.bf16.msra.mxu0 %v2592
      %2611 = vmatprep.subr.bf16.mxu0 0
      %2612 = vmatpush1.bf16.msra.mxu0 %v2593
      %2613 = vmatprep.subr.bf16.mxu0 0
      %2614 = vmatpush1.bf16.msra.mxu0 %v2594
      %2615 = vmatprep.subr.bf16.mxu0 0
      %2616 = vmatpush1.bf16.msra.mxu0 %v2595
      %2617 = vmatprep.subr.bf16.mxu0 0
      %2618 = vmatpush1.bf16.msra.mxu0 %v2596
      %2619 = vmatprep.subr.bf16.mxu0 0
      %2620 = vmatpush1.bf16.msra.mxu0 %v2597
      %2621 = vmatprep.subr.bf16.mxu0 0
      %2622 = vmatpush1.bf16.msra.mxu0 %v2598
      %2623 = vmatprep.subr.bf16.mxu0 0
      %2624 = vmatpush1.bf16.msra.mxu0 0
      %2625 = vmatprep.subr.bf16.mxu0 0
      %2626 = vmatpush1.bf16.msra.mxu0 0
      %2627 = vmatprep.subr.bf16.mxu0 0
      %2628 = vmatpush1.bf16.msra.mxu0 0
      %2629 = vmatprep.subr.bf16.mxu0 0
      %2630 = vmatpush1.bf16.msra.mxu0 0
      %2631 = vmatprep.subr.bf16.mxu0 0
      %2632 = vmatpush1.bf16.msra.mxu0 0
      %2633 = vmatprep.subr.bf16.mxu0 0
      %2634 = vmatpush1.bf16.msra.mxu0 0
      %2635 = vmatprep.subr.bf16.mxu0 0
      %2636 = vmatpush1.bf16.msra.mxu0 0
      %2637 = vmatprep.subr.bf16.mxu0 0
      %2638 = vmatpush1.bf16.msra.mxu0 0
      %2639 = vmatprep.mubr.bf16.mxu0 0
      %2640 = vmatmul.mubr.bf16.gmra.mrb[0].mxu0 %v2539
      %v2641 = vpop.f32.mrb[0].mxu0
      %v2642 = vadd.f32 %v2558, %v2641
      %v2643 = vpop.f32.mrb[0].mxu0
      %v2644 = vpop.f32.mrb[0].mxu0
      %v2645 = vadd.f32 %v2558, %v2644
      %v2646 = vpop.f32.mrb[0].mxu0
      %2647 = vmatprep.mubr.bf16.mxu0 0
      %2648 = vmatmul.mubr.bf16.gmra.mrb[0].mxu0 %v2540
      %v2649 = vpop.f32.mrb[0].mxu0
      %v2650 = vadd.f32 %v2558, %v2649
      %v2651 = vpop.f32.mrb[0].mxu0
      %v2652 = vpop.f32.mrb[0].mxu0
      %v2653 = vadd.f32 %v2558, %v2652
      %v2654 = vpop.f32.mrb[0].mxu0
      %2655 = vmatprep.mubr.bf16.mxu0 0
      %2656 = vmatmul.mubr.bf16.gmra.mrb[0].mxu0 %v2541
      %v2657 = vpop.f32.mrb[0].mxu0
      %v2658 = vadd.f32 %v2558, %v2657
      %v2659 = vpop.f32.mrb[0].mxu0
      %v2660 = vpop.f32.mrb[0].mxu0
      %v2661 = vadd.f32 %v2558, %v2660
      %v2662 = vpop.f32.mrb[0].mxu0
      %2663 = vmatprep.mubr.bf16.mxu0 0
      %2664 = vmatmul.mubr.bf16.gmra.mrb[0].mxu0 %v2542
      %v2665 = vpop.f32.mrb[0].mxu0
      %v2666 = vadd.f32 %v2558, %v2665
      %v2667 = vpop.f32.mrb[0].mxu0
      %v2668 = vpop.f32.mrb[0].mxu0
      %v2669 = vadd.f32 %v2558, %v2668
      %v2670 = vpop.f32.mrb[0].mxu0
      %2671 = vmatprep.mubr.bf16.mxu0 0
      %2672 = vmatmul.mubr.bf16.gmra.mrb[0].mxu0 %v2543
      %v2673 = vpop.f32.mrb[0].mxu0
      %v2674 = vadd.f32 %v2558, %v2673
      %v2675 = vpop.f32.mrb[0].mxu0
      %v2676 = vpop.f32.mrb[0].mxu0
      %v2677 = vadd.f32 %v2558, %v2676
      %v2678 = vpop.f32.mrb[0].mxu0
      %2679 = vmatprep.mubr.bf16.mxu0 0
      %2680 = vmatmul.mubr.bf16.gmra.mrb[0].mxu0 %v2544
      %v2681 = vpop.f32.mrb[0].mxu0
      %v2682 = vadd.f32 %v2558, %v2681
      %v2683 = vpop.f32.mrb[0].mxu0
      %v2684 = vpop.f32.mrb[0].mxu0
      %v2685 = vadd.f32 %v2558, %v2684
      %v2686 = vpop.f32.mrb[0].mxu0
      %2687 = vmatprep.mubr.bf16.mxu0 0
      %2688 = vmatmul.mubr.bf16.gmra.mrb[0].mxu0 %v2545
      %v2689 = vpop.f32.mrb[0].mxu0
      %v2690 = vadd.f32 %v2558, %v2689
      %v2691 = vpop.f32.mrb[0].mxu0
      %v2692 = vpop.f32.mrb[0].mxu0
      %v2693 = vadd.f32 %v2558, %v2692
      %v2694 = vpop.f32.mrb[0].mxu0
      %2695 = vmatprep.mubr.bf16.mxu0 0
      %2696 = vmatmul.mubr.bf16.gmra.mrb[0].mxu0 %v2546
      %v2697 = vpop.f32.mrb[0].mxu0
      %v2698 = vadd.f32 %v2558, %v2697
      %v2699 = vpop.f32.mrb[0].mxu0
      %v2700 = vpop.f32.mrb[0].mxu0
      %v2701 = vadd.f32 %v2558, %v2700
      %v2702 = vpop.f32.mrb[0].mxu0
      %2703 = vmatprep.mubr.bf16.mxu0 0
      %2704 = vmatmul.mubr.bf16.gmra.mrb[0].mxu0 %v2547
      %v2705 = vpop.f32.mrb[0].mxu0
      %v2706 = vadd.f32 %v2558, %v2705
      %v2707 = vpop.f32.mrb[0].mxu0
      %v2708 = vpop.f32.mrb[0].mxu0
      %v2709 = vadd.f32 %v2558, %v2708
      %v2710 = vpop.f32.mrb[0].mxu0
      %2711 = vmatprep.mubr.bf16.mxu0 0
      %2712 = vmatmul.mubr.bf16.gmra.mrb[0].mxu0 %v2548
      %v2713 = vpop.f32.mrb[0].mxu0
      %v2714 = vadd.f32 %v2558, %v2713
      %v2715 = vpop.f32.mrb[0].mxu0
      %v2716 = vpop.f32.mrb[0].mxu0
      %v2717 = vadd.f32 %v2558, %v2716
      %v2718 = vpop.f32.mrb[0].mxu0
      %2719 = vmatprep.mubr.bf16.mxu0 0
      %2720 = vmatmul.mubr.bf16.gmra.mrb[0].mxu0 %v2549
      %v2721 = vpop.f32.mrb[0].mxu0
      %v2722 = vadd.f32 %v2558, %v2721
      %v2723 = vpop.f32.mrb[0].mxu0
      %v2724 = vpop.f32.mrb[0].mxu0
      %v2725 = vadd.f32 %v2558, %v2724
      %v2726 = vpop.f32.mrb[0].mxu0
      %2727 = vmatprep.mubr.bf16.mxu0 0
      %2728 = vmatmul.mubr.bf16.gmra.mrb[0].mxu0 %v2550
      %v2729 = vpop.f32.mrb[0].mxu0
      %v2730 = vadd.f32 %v2558, %v2729
      %v2731 = vpop.f32.mrb[0].mxu0
      %v2732 = vpop.f32.mrb[0].mxu0
      %v2733 = vadd.f32 %v2558, %v2732
      %v2734 = vpop.f32.mrb[0].mxu0
      %2735 = vmatprep.mubr.bf16.mxu0 0
      %2736 = vmatmul.mubr.bf16.gmra.mrb[0].mxu0 %v2551
      %v2737 = vpop.f32.mrb[0].mxu0
      %v2738 = vadd.f32 %v2558, %v2737
      %v2739 = vpop.f32.mrb[0].mxu0
      %v2740 = vpop.f32.mrb[0].mxu0
      %v2741 = vadd.f32 %v2558, %v2740
      %v2742 = vpop.f32.mrb[0].mxu0
      %2743 = vmatprep.mubr.bf16.mxu0 0
      %2744 = vmatmul.mubr.bf16.gmra.mrb[0].mxu0 %v2552
      %v2745 = vpop.f32.mrb[0].mxu0
      %v2746 = vadd.f32 %v2558, %v2745
      %v2747 = vpop.f32.mrb[0].mxu0
      %v2748 = vpop.f32.mrb[0].mxu0
      %v2749 = vadd.f32 %v2558, %v2748
      %v2750 = vpop.f32.mrb[0].mxu0
      %2751 = vmatprep.mubr.bf16.mxu0 0
      %2752 = vmatmul.mubr.bf16.gmra.mrb[0].mxu0 %v2553
      %v2753 = vpop.f32.mrb[0].mxu0
      %v2754 = vadd.f32 %v2558, %v2753
      %v2755 = vpop.f32.mrb[0].mxu0
      %v2756 = vpop.f32.mrb[0].mxu0
      %v2757 = vadd.f32 %v2558, %v2756
      %v2758 = vpop.f32.mrb[0].mxu0
      %2759 = vmatprep.mubr.bf16.mxu0 0
      %2760 = vmatmul.mubr.bf16.gmra.mrb[0].mxu0 %v2554
      %v2761 = vpop.f32.mrb[0].mxu0
      %v2762 = vadd.f32 %v2558, %v2761
      %v2763 = vpop.f32.mrb[0].mxu0
      %v2764 = vpop.f32.mrb[0].mxu0
      %v2765 = vadd.f32 %v2558, %v2764
      %v2766 = vpop.f32.mrb[0].mxu0
      %2767 = vdwg.mxu0
      %v2768 = vmul.f32 %v2642, 0.5
      %v2769 = vmul.f32 %v2645, 0.5
      %v2770 = vmul.f32 %v2650, 0.5
      %v2771 = vmul.f32 %v2653, 0.5
      %v2772 = vmul.f32 %v2658, 0.5
      %v2773 = vmul.f32 %v2661, 0.5
      %v2774 = vmul.f32 %v2666, 0.5
      %v2775 = vmul.f32 %v2669, 0.5
      %v2776 = vmul.f32 %v2674, 0.5
      %v2777 = vmul.f32 %v2677, 0.5
      %v2778 = vmul.f32 %v2682, 0.5
      %v2779 = vmul.f32 %v2685, 0.5
      %v2780 = vmul.f32 %v2690, 0.5
      %v2781 = vmul.f32 %v2693, 0.5
      %v2782 = vmul.f32 %v2698, 0.5
      %v2783 = vmul.f32 %v2701, 0.5
      %v2784 = vmul.f32 %v2706, 0.5
      %v2785 = vmul.f32 %v2709, 0.5
      %v2786 = vmul.f32 %v2714, 0.5
      %v2787 = vmul.f32 %v2717, 0.5
      %v2788 = vmul.f32 %v2722, 0.5
      %v2789 = vmul.f32 %v2725, 0.5
      %v2790 = vmul.f32 %v2730, 0.5
      %v2791 = vmul.f32 %v2733, 0.5
      %v2792 = vmul.f32 %v2738, 0.5
      %v2793 = vmul.f32 %v2741, 0.5
      %v2794 = vmul.f32 %v2746, 0.5
      %v2795 = vmul.f32 %v2749, 0.5
      %v2796 = vmul.f32 %v2754, 0.5
      %v2797 = vmul.f32 %v2757, 0.5
      %v2798 = vmul.f32 %v2762, 0.5
      %v2799 = vmul.f32 %v2765, 0.5
      %v2800 = vmul.f32 %v2642, 0.044715
      %v2801 = vmul.f32 %v2645, 0.044715
      %v2802 = vmul.f32 %v2650, 0.044715
      %v2803 = vmul.f32 %v2653, 0.044715
      %v2804 = vmul.f32 %v2658, 0.044715
      %v2805 = vmul.f32 %v2661, 0.044715
      %v2806 = vmul.f32 %v2666, 0.044715
      %v2807 = vmul.f32 %v2669, 0.044715
      %v2808 = vmul.f32 %v2674, 0.044715
      %v2809 = vmul.f32 %v2677, 0.044715
      %v2810 = vmul.f32 %v2682, 0.044715
      %v2811 = vmul.f32 %v2685, 0.044715
      %v2812 = vmul.f32 %v2690, 0.044715
      %v2813 = vmul.f32 %v2693, 0.044715
      %v2814 = vmul.f32 %v2698, 0.044715
      %v2815 = vmul.f32 %v2701, 0.044715
      %v2816 = vmul.f32 %v2706, 0.044715
      %v2817 = vmul.f32 %v2709, 0.044715
      %v2818 = vmul.f32 %v2714, 0.044715
      %v2819 = vmul.f32 %v2717, 0.044715
      %v2820 = vmul.f32 %v2722, 0.044715
      %v2821 = vmul.f32 %v2725, 0.044715
      %v2822 = vmul.f32 %v2730, 0.044715
      %v2823 = vmul.f32 %v2733, 0.044715
      %v2824 = vmul.f32 %v2738, 0.044715
      %v2825 = vmul.f32 %v2741, 0.044715
      %v2826 = vmul.f32 %v2746, 0.044715
      %v2827 = vmul.f32 %v2749, 0.044715
      %v2828 = vmul.f32 %v2754, 0.044715
      %v2829 = vmul.f32 %v2757, 0.044715
      %v2830 = vmul.f32 %v2762, 0.044715
      %v2831 = vmul.f32 %v2765, 0.044715
      %v2832 = vmul.f32 %v2800, %v2642
      %v2833 = vmul.f32 %v2801, %v2645
      %v2834 = vmul.f32 %v2802, %v2650
      %v2835 = vmul.f32 %v2803, %v2653
      %v2836 = vmul.f32 %v2804, %v2658
      %v2837 = vmul.f32 %v2805, %v2661
      %v2838 = vmul.f32 %v2806, %v2666
      %v2839 = vmul.f32 %v2807, %v2669
      %v2840 = vmul.f32 %v2808, %v2674
      %v2841 = vmul.f32 %v2809, %v2677
      %v2842 = vmul.f32 %v2810, %v2682
      %v2843 = vmul.f32 %v2811, %v2685
      %v2844 = vmul.f32 %v2812, %v2690
      %v2845 = vmul.f32 %v2813, %v2693
      %v2846 = vmul.f32 %v2814, %v2698
      %v2847 = vmul.f32 %v2815, %v2701
      %v2848 = vmul.f32 %v2816, %v2706
      %v2849 = vmul.f32 %v2817, %v2709
      %v2850 = vmul.f32 %v2818, %v2714
      %v2851 = vmul.f32 %v2819, %v2717
      %v2852 = vmul.f32 %v2820, %v2722
      %v2853 = vmul.f32 %v2821, %v2725
      %v2854 = vmul.f32 %v2822, %v2730
      %v2855 = vmul.f32 %v2823, %v2733
      %v2856 = vmul.f32 %v2824, %v2738
      %v2857 = vmul.f32 %v2825, %v2741
      %v2858 = vmul.f32 %v2826, %v2746
      %v2859 = vmul.f32 %v2827, %v2749
      %v2860 = vmul.f32 %v2828, %v2754
      %v2861 = vmul.f32 %v2829, %v2757
      %v2862 = vmul.f32 %v2830, %v2762
      %v2863 = vmul.f32 %v2831, %v2765
      %v2864 = vmul.f32 %v2832, %v2642
      %v2865 = vmul.f32 %v2833, %v2645
      %v2866 = vmul.f32 %v2834, %v2650
      %v2867 = vmul.f32 %v2835, %v2653
      %v2868 = vmul.f32 %v2836, %v2658
      %v2869 = vmul.f32 %v2837, %v2661
      %v2870 = vmul.f32 %v2838, %v2666
      %v2871 = vmul.f32 %v2839, %v2669
      %v2872 = vmul.f32 %v2840, %v2674
      %v2873 = vmul.f32 %v2841, %v2677
      %v2874 = vmul.f32 %v2842, %v2682
      %v2875 = vmul.f32 %v2843, %v2685
      %v2876 = vmul.f32 %v2844, %v2690
      %v2877 = vmul.f32 %v2845, %v2693
      %v2878 = vmul.f32 %v2846, %v2698
      %v2879 = vmul.f32 %v2847, %v2701
      %v2880 = vmul.f32 %v2848, %v2706
      %v2881 = vmul.f32 %v2849, %v2709
      %v2882 = vmul.f32 %v2850, %v2714
      %v2883 = vmul.f32 %v2851, %v2717
      %v2884 = vmul.f32 %v2852, %v2722
      %v2885 = vmul.f32 %v2853, %v2725
      %v2886 = vmul.f32 %v2854, %v2730
      %v2887 = vmul.f32 %v2855, %v2733
      %v2888 = vmul.f32 %v2856, %v2738
      %v2889 = vmul.f32 %v2857, %v2741
      %v2890 = vmul.f32 %v2858, %v2746
      %v2891 = vmul.f32 %v2859, %v2749
      %v2892 = vmul.f32 %v2860, %v2754
      %v2893 = vmul.f32 %v2861, %v2757
      %v2894 = vmul.f32 %v2862, %v2762
      %v2895 = vmul.f32 %v2863, %v2765
      %v2896 = vadd.f32 %v2642, %v2864
      %v2897 = vadd.f32 %v2645, %v2865
      %v2898 = vadd.f32 %v2650, %v2866
      %v2899 = vadd.f32 %v2653, %v2867
      %v2900 = vadd.f32 %v2658, %v2868
      %v2901 = vadd.f32 %v2661, %v2869
      %v2902 = vadd.f32 %v2666, %v2870
      %v2903 = vadd.f32 %v2669, %v2871
      %v2904 = vadd.f32 %v2674, %v2872
      %v2905 = vadd.f32 %v2677, %v2873
      %v2906 = vadd.f32 %v2682, %v2874
      %v2907 = vadd.f32 %v2685, %v2875
      %v2908 = vadd.f32 %v2690, %v2876
      %v2909 = vadd.f32 %v2693, %v2877
      %v2910 = vadd.f32 %v2698, %v2878
      %v2911 = vadd.f32 %v2701, %v2879
      %v2912 = vadd.f32 %v2706, %v2880
      %v2913 = vadd.f32 %v2709, %v2881
      %v2914 = vadd.f32 %v2714, %v2882
      %v2915 = vadd.f32 %v2717, %v2883
      %v2916 = vadd.f32 %v2722, %v2884
      %v2917 = vadd.f32 %v2725, %v2885
      %v2918 = vadd.f32 %v2730, %v2886
      %v2919 = vadd.f32 %v2733, %v2887
      %v2920 = vadd.f32 %v2738, %v2888
      %v2921 = vadd.f32 %v2741, %v2889
      %v2922 = vadd.f32 %v2746, %v2890
      %v2923 = vadd.f32 %v2749, %v2891
      %v2924 = vadd.f32 %v2754, %v2892
      %v2925 = vadd.f32 %v2757, %v2893
      %v2926 = vadd.f32 %v2762, %v2894
      %v2927 = vadd.f32 %v2765, %v2895
      %v2928 = vmul.f32 %v2896, 0.7978846
      %v2929 = vmul.f32 %v2897, 0.7978846
      %v2930 = vmul.f32 %v2898, 0.7978846
      %v2931 = vmul.f32 %v2899, 0.7978846
      %v2932 = vmul.f32 %v2900, 0.7978846
      %v2933 = vmul.f32 %v2901, 0.7978846
      %v2934 = vmul.f32 %v2902, 0.7978846
      %v2935 = vmul.f32 %v2903, 0.7978846
      %v2936 = vmul.f32 %v2904, 0.7978846
      %v2937 = vmul.f32 %v2905, 0.7978846
      %v2938 = vmul.f32 %v2906, 0.7978846
      %v2939 = vmul.f32 %v2907, 0.7978846
      %v2940 = vmul.f32 %v2908, 0.7978846
      %v2941 = vmul.f32 %v2909, 0.7978846
      %v2942 = vmul.f32 %v2910, 0.7978846
      %v2943 = vmul.f32 %v2911, 0.7978846
      %v2944 = vmul.f32 %v2912, 0.7978846
      %v2945 = vmul.f32 %v2913, 0.7978846
      %v2946 = vmul.f32 %v2914, 0.7978846
      %v2947 = vmul.f32 %v2915, 0.7978846
      %v2948 = vmul.f32 %v2916, 0.7978846
      %v2949 = vmul.f32 %v2917, 0.7978846
      %v2950 = vmul.f32 %v2918, 0.7978846
      %v2951 = vmul.f32 %v2919, 0.7978846
      %v2952 = vmul.f32 %v2920, 0.7978846
      %v2953 = vmul.f32 %v2921, 0.7978846
      %v2954 = vmul.f32 %v2922, 0.7978846
      %v2955 = vmul.f32 %v2923, 0.7978846
      %v2956 = vmul.f32 %v2924, 0.7978846
      %v2957 = vmul.f32 %v2925, 0.7978846
      %v2958 = vmul.f32 %v2926, 0.7978846
      %v2959 = vmul.f32 %v2927, 0.7978846
      %v2960 = vtanh.pop %v2928
      %v2961 = vtanh.pop %v2929
      %v2962 = vtanh.pop %v2930
      %v2963 = vtanh.pop %v2931
      %v2964 = vtanh.pop %v2932
      %v2965 = vtanh.pop %v2933
      %v2966 = vtanh.pop %v2934
      %v2967 = vtanh.pop %v2935
      %v2968 = vtanh.pop %v2936
      %v2969 = vtanh.pop %v2937
      %v2970 = vtanh.pop %v2938
      %v2971 = vtanh.pop %v2939
      %v2972 = vtanh.pop %v2940
      %v2973 = vtanh.pop %v2941
      %v2974 = vtanh.pop %v2942
      %v2975 = vtanh.pop %v2943
      %v2976 = vtanh.pop %v2944
      %v2977 = vtanh.pop %v2945
      %v2978 = vtanh.pop %v2946
      %v2979 = vtanh.pop %v2947
      %v2980 = vtanh.pop %v2948
      %v2981 = vtanh.pop %v2949
      %v2982 = vtanh.pop %v2950
      %v2983 = vtanh.pop %v2951
      %v2984 = vtanh.pop %v2952
      %v2985 = vtanh.pop %v2953
      %v2986 = vtanh.pop %v2954
      %v2987 = vtanh.pop %v2955
      %v2988 = vtanh.pop %v2956
      %v2989 = vtanh.pop %v2957
      %v2990 = vtanh.pop %v2958
      %v2991 = vtanh.pop %v2959
      %v2992 = vadd.f32 %v2960, 1.0
      %v2993 = vadd.f32 %v2961, 1.0
      %v2994 = vadd.f32 %v2962, 1.0
      %v2995 = vadd.f32 %v2963, 1.0
      %v2996 = vadd.f32 %v2964, 1.0
      %v2997 = vadd.f32 %v2965, 1.0
      %v2998 = vadd.f32 %v2966, 1.0
      %v2999 = vadd.f32 %v2967, 1.0
      %v3000 = vadd.f32 %v2968, 1.0
      %v3001 = vadd.f32 %v2969, 1.0
      %v3002 = vadd.f32 %v2970, 1.0
      %v3003 = vadd.f32 %v2971, 1.0
      %v3004 = vadd.f32 %v2972, 1.0
      %v3005 = vadd.f32 %v2973, 1.0
      %v3006 = vadd.f32 %v2974, 1.0
      %v3007 = vadd.f32 %v2975, 1.0
      %v3008 = vadd.f32 %v2976, 1.0
      %v3009 = vadd.f32 %v2977, 1.0
      %v3010 = vadd.f32 %v2978, 1.0
      %v3011 = vadd.f32 %v2979, 1.0
      %v3012 = vadd.f32 %v2980, 1.0
      %v3013 = vadd.f32 %v2981, 1.0
      %v3014 = vadd.f32 %v2982, 1.0
      %v3015 = vadd.f32 %v2983, 1.0
      %v3016 = vadd.f32 %v2984, 1.0
      %v3017 = vadd.f32 %v2985, 1.0
      %v3018 = vadd.f32 %v2986, 1.0
      %v3019 = vadd.f32 %v2987, 1.0
      %v3020 = vadd.f32 %v2988, 1.0
      %v3021 = vadd.f32 %v2989, 1.0
      %v3022 = vadd.f32 %v2990, 1.0
      %v3023 = vadd.f32 %v2991, 1.0
      %v3024 = vmul.f32 %v2768, %v2992
      %v3025 = vmul.f32 %v2769, %v2993
      %v3026 = vmul.f32 %v2770, %v2994
      %v3027 = vmul.f32 %v2771, %v2995
      %v3028 = vmul.f32 %v2772, %v2996
      %v3029 = vmul.f32 %v2773, %v2997
      %v3030 = vmul.f32 %v2774, %v2998
      %v3031 = vmul.f32 %v2775, %v2999
      %v3032 = vmul.f32 %v2776, %v3000
      %v3033 = vmul.f32 %v2777, %v3001
      %v3034 = vmul.f32 %v2778, %v3002
      %v3035 = vmul.f32 %v2779, %v3003
      %v3036 = vmul.f32 %v2780, %v3004
      %v3037 = vmul.f32 %v2781, %v3005
      %v3038 = vmul.f32 %v2782, %v3006
      %v3039 = vmul.f32 %v2783, %v3007
      %v3040 = vmul.f32 %v2784, %v3008
      %v3041 = vmul.f32 %v2785, %v3009
      %v3042 = vmul.f32 %v2786, %v3010
      %v3043 = vmul.f32 %v2787, %v3011
      %v3044 = vmul.f32 %v2788, %v3012
      %v3045 = vmul.f32 %v2789, %v3013
      %v3046 = vmul.f32 %v2790, %v3014
      %v3047 = vmul.f32 %v2791, %v3015
      %v3048 = vmul.f32 %v2792, %v3016
      %v3049 = vmul.f32 %v2793, %v3017
      %v3050 = vmul.f32 %v2794, %v3018
      %v3051 = vmul.f32 %v2795, %v3019
      %v3052 = vmul.f32 %v2796, %v3020
      %v3053 = vmul.f32 %v2797, %v3021
      %v3054 = vmul.f32 %v2798, %v3022
      %v3055 = vmul.f32 %v2799, %v3023
      %s3056 = scalar_lea.vmem %s1, 256
      %v3057 = vld [vmem:[%s3056] sm:$0xf]
      %v3058 = vld [vmem:[%s3056 + $0x4] sm:$0xf]
      %v3059 = vld [vmem:[%s3056 + $0x8] sm:$0xf]
      %v3060 = vld [vmem:[%s3056 + $0xc] sm:$0xf]
      %v3061 = vld [vmem:[%s3056 + $0x10] sm:$0xf]
      %v3062 = vld [vmem:[%s3056 + $0x14] sm:$0xf]
      %v3063 = vld [vmem:[%s3056 + $0x18] sm:$0xf]
      %v3064 = vld [vmem:[%s3056 + $0x1c] sm:$0xf]
      %v3065 = vld [vmem:[%s3056 + $0x20] sm:$0xf]
      %v3066 = vld [vmem:[%s3056 + $0x24] sm:$0xf]
      %v3067 = vld [vmem:[%s3056 + $0x28] sm:$0xf]
      %v3068 = vld [vmem:[%s3056 + $0x2c] sm:$0xf]
      %v3069 = vld [vmem:[%s3056 + $0x30] sm:$0xf]
      %v3070 = vld [vmem:[%s3056 + $0x34] sm:$0xf]
      %v3071 = vld [vmem:[%s3056 + $0x38] sm:$0xf]
      %v3072 = vld [vmem:[%s3056 + $0x3c] sm:$0xf]
      %v3073 = vpack.c.bf16 %v3025, %v3024
      %v3074 = vpack.c.bf16 %v3027, %v3026
      %v3075 = vpack.c.bf16 %v3029, %v3028
      %v3076 = vpack.c.bf16 %v3031, %v3030
      %v3077 = vpack.c.bf16 %v3033, %v3032
      %v3078 = vpack.c.bf16 %v3035, %v3034
      %v3079 = vpack.c.bf16 %v3037, %v3036
      %v3080 = vpack.c.bf16 %v3039, %v3038
      %v3081 = vpack.c.bf16 %v3041, %v3040
      %v3082 = vpack.c.bf16 %v3043, %v3042
      %v3083 = vpack.c.bf16 %v3045, %v3044
      %v3084 = vpack.c.bf16 %v3047, %v3046
      %v3085 = vpack.c.bf16 %v3049, %v3048
      %v3086 = vpack.c.bf16 %v3051, %v3050
      %v3087 = vpack.c.bf16 %v3053, %v3052
      %v3088 = vpack.c.bf16 %v3055, %v3054
      %v3089 = vlaneseq
      %v3090 = vshrl.u32 %v3089, 7
      %v3091 = vsub.s32 6, %v3090
      %v3092 = vrot.slane %v202, %v3091
      %v3109 = vunpack.c.l.b16 %v3057
      %v3110 = vunpack.c.l.b16 %v3058
      %v3111 = vunpack.c.l.b16 %v3059
      %v3112 = vunpack.c.l.b16 %v3060
      %v3113 = vunpack.c.l.b16 %v3061
      %v3114 = vunpack.c.l.b16 %v3062
      %v3115 = vunpack.c.l.b16 %v3063
      %v3116 = vunpack.c.l.b16 %v3064
      %v3117 = vunpack.c.l.b16 %v3065
      %v3118 = vunpack.c.l.b16 %v3066
      %v3119 = vunpack.c.l.b16 %v3067
      %v3120 = vunpack.c.l.b16 %v3068
      %v3121 = vunpack.c.l.b16 %v3069
      %v3122 = vunpack.c.l.b16 %v3070
      %v3123 = vunpack.c.l.b16 %v3071
      %v3124 = vunpack.c.l.b16 %v3072
      %v3125 = vpack.c.b16 %v3110, %v3109
      %v3126 = vpack.c.b16 %v3112, %v3111
      %v3127 = vpack.c.b16 %v3114, %v3113
      %v3128 = vpack.c.b16 %v3116, %v3115
      %v3129 = vpack.c.b16 %v3118, %v3117
      %v3130 = vpack.c.b16 %v3120, %v3119
      %v3131 = vpack.c.b16 %v3122, %v3121
      %v3132 = vpack.c.b16 %v3124, %v3123
      %3141 = vmatprep.subr.bf16.mxu0 0
      %3142 = vmatpush1.bf16.msra.mxu0 %v3125
      %3143 = vmatprep.subr.bf16.mxu0 0
      %3144 = vmatpush1.bf16.msra.mxu0 %v3126
      %3145 = vmatprep.subr.bf16.mxu0 0
      %3146 = vmatpush1.bf16.msra.mxu0 %v3127
      %3147 = vmatprep.subr.bf16.mxu0 0
      %3148 = vmatpush1.bf16.msra.mxu0 %v3128
      %3149 = vmatprep.subr.bf16.mxu0 0
      %3150 = vmatpush1.bf16.msra.mxu0 %v3129
      %3151 = vmatprep.subr.bf16.mxu0 0
      %3152 = vmatpush1.bf16.msra.mxu0 %v3130
      %3153 = vmatprep.subr.bf16.mxu0 0
      %3154 = vmatpush1.bf16.msra.mxu0 %v3131
      %3155 = vmatprep.subr.bf16.mxu0 0
      %3156 = vmatpush1.bf16.msra.mxu0 %v3132
      %3157 = vmatprep.subr.bf16.mxu0 0
      %3158 = vmatpush1.bf16.msra.mxu0 0
      %3159 = vmatprep.subr.bf16.mxu0 0
      %3160 = vmatpush1.bf16.msra.mxu0 0
      %3161 = vmatprep.subr.bf16.mxu0 0
      %3162 = vmatpush1.bf16.msra.mxu0 0
      %3163 = vmatprep.subr.bf16.mxu0 0
      %3164 = vmatpush1.bf16.msra.mxu0 0
      %3165 = vmatprep.subr.bf16.mxu0 0
      %3166 = vmatpush1.bf16.msra.mxu0 0
      %3167 = vmatprep.subr.bf16.mxu0 0
      %3168 = vmatpush1.bf16.msra.mxu0 0
      %3169 = vmatprep.subr.bf16.mxu0 0
      %3170 = vmatpush1.bf16.msra.mxu0 0
      %3171 = vmatprep.subr.bf16.mxu0 0
      %3172 = vmatpush1.bf16.msra.mxu0 0
      %3173 = vmatprep.mubr.bf16.mxu0 0
      %3174 = vmatmul.mubr.bf16.gmra.mrb[0].mxu0 %v3073
      %v3175 = vpop.f32.mrb[0].mxu0
      %v3176 = vadd.f32 %v3092, %v3175
      %v3177 = vpop.f32.mrb[0].mxu0
      %v3178 = vpop.f32.mrb[0].mxu0
      %v3179 = vadd.f32 %v3092, %v3178
      %v3180 = vpop.f32.mrb[0].mxu0
      %3181 = vmatprep.mubr.bf16.mxu0 0
      %3182 = vmatmul.mubr.bf16.gmra.mrb[0].mxu0 %v3074
      %v3183 = vpop.f32.mrb[0].mxu0
      %v3184 = vadd.f32 %v3092, %v3183
      %v3185 = vpop.f32.mrb[0].mxu0
      %v3186 = vpop.f32.mrb[0].mxu0
      %v3187 = vadd.f32 %v3092, %v3186
      %v3188 = vpop.f32.mrb[0].mxu0
      %3189 = vmatprep.mubr.bf16.mxu0 0
      %3190 = vmatmul.mubr.bf16.gmra.mrb[0].mxu0 %v3075
      %v3191 = vpop.f32.mrb[0].mxu0
      %v3192 = vadd.f32 %v3092, %v3191
      %v3193 = vpop.f32.mrb[0].mxu0
      %v3194 = vpop.f32.mrb[0].mxu0
      %v3195 = vadd.f32 %v3092, %v3194
      %v3196 = vpop.f32.mrb[0].mxu0
      %3197 = vmatprep.mubr.bf16.mxu0 0
      %3198 = vmatmul.mubr.bf16.gmra.mrb[0].mxu0 %v3076
      %v3199 = vpop.f32.mrb[0].mxu0
      %v3200 = vadd.f32 %v3092, %v3199
      %v3201 = vpop.f32.mrb[0].mxu0
      %v3202 = vpop.f32.mrb[0].mxu0
      %v3203 = vadd.f32 %v3092, %v3202
      %v3204 = vpop.f32.mrb[0].mxu0
      %3205 = vmatprep.mubr.bf16.mxu0 0
      %3206 = vmatmul.mubr.bf16.gmra.mrb[0].mxu0 %v3077
      %v3207 = vpop.f32.mrb[0].mxu0
      %v3208 = vadd.f32 %v3092, %v3207
      %v3209 = vpop.f32.mrb[0].mxu0
      %v3210 = vpop.f32.mrb[0].mxu0
      %v3211 = vadd.f32 %v3092, %v3210
      %v3212 = vpop.f32.mrb[0].mxu0
      %3213 = vmatprep.mubr.bf16.mxu0 0
      %3214 = vmatmul.mubr.bf16.gmra.mrb[0].mxu0 %v3078
      %v3215 = vpop.f32.mrb[0].mxu0
      %v3216 = vadd.f32 %v3092, %v3215
      %v3217 = vpop.f32.mrb[0].mxu0
      %v3218 = vpop.f32.mrb[0].mxu0
      %v3219 = vadd.f32 %v3092, %v3218
      %v3220 = vpop.f32.mrb[0].mxu0
      %3221 = vmatprep.mubr.bf16.mxu0 0
      %3222 = vmatmul.mubr.bf16.gmra.mrb[0].mxu0 %v3079
      %v3223 = vpop.f32.mrb[0].mxu0
      %v3224 = vadd.f32 %v3092, %v3223
      %v3225 = vpop.f32.mrb[0].mxu0
      %v3226 = vpop.f32.mrb[0].mxu0
      %v3227 = vadd.f32 %v3092, %v3226
      %v3228 = vpop.f32.mrb[0].mxu0
      %3229 = vmatprep.mubr.bf16.mxu0 0
      %3230 = vmatmul.mubr.bf16.gmra.mrb[0].mxu0 %v3080
      %v3231 = vpop.f32.mrb[0].mxu0
      %v3232 = vadd.f32 %v3092, %v3231
      %v3233 = vpop.f32.mrb[0].mxu0
      %v3234 = vpop.f32.mrb[0].mxu0
      %v3235 = vadd.f32 %v3092, %v3234
      %v3236 = vpop.f32.mrb[0].mxu0
      %3237 = vmatprep.mubr.bf16.mxu0 0
      %3238 = vmatmul.mubr.bf16.gmra.mrb[0].mxu0 %v3081
      %v3239 = vpop.f32.mrb[0].mxu0
      %v3240 = vadd.f32 %v3092, %v3239
      %v3241 = vpop.f32.mrb[0].mxu0
      %v3242 = vpop.f32.mrb[0].mxu0
      %v3243 = vadd.f32 %v3092, %v3242
      %v3244 = vpop.f32.mrb[0].mxu0
      %3245 = vmatprep.mubr.bf16.mxu0 0
      %3246 = vmatmul.mubr.bf16.gmra.mrb[0].mxu0 %v3082
      %v3247 = vpop.f32.mrb[0].mxu0
      %v3248 = vadd.f32 %v3092, %v3247
      %v3249 = vpop.f32.mrb[0].mxu0
      %v3250 = vpop.f32.mrb[0].mxu0
      %v3251 = vadd.f32 %v3092, %v3250
      %v3252 = vpop.f32.mrb[0].mxu0
      %3253 = vmatprep.mubr.bf16.mxu0 0
      %3254 = vmatmul.mubr.bf16.gmra.mrb[0].mxu0 %v3083
      %v3255 = vpop.f32.mrb[0].mxu0
      %v3256 = vadd.f32 %v3092, %v3255
      %v3257 = vpop.f32.mrb[0].mxu0
      %v3258 = vpop.f32.mrb[0].mxu0
      %v3259 = vadd.f32 %v3092, %v3258
      %v3260 = vpop.f32.mrb[0].mxu0
      %3261 = vmatprep.mubr.bf16.mxu0 0
      %3262 = vmatmul.mubr.bf16.gmra.mrb[0].mxu0 %v3084
      %v3263 = vpop.f32.mrb[0].mxu0
      %v3264 = vadd.f32 %v3092, %v3263
      %v3265 = vpop.f32.mrb[0].mxu0
      %v3266 = vpop.f32.mrb[0].mxu0
      %v3267 = vadd.f32 %v3092, %v3266
      %v3268 = vpop.f32.mrb[0].mxu0
      %3269 = vmatprep.mubr.bf16.mxu0 0
      %3270 = vmatmul.mubr.bf16.gmra.mrb[0].mxu0 %v3085
      %v3271 = vpop.f32.mrb[0].mxu0
      %v3272 = vadd.f32 %v3092, %v3271
      %v3273 = vpop.f32.mrb[0].mxu0
      %v3274 = vpop.f32.mrb[0].mxu0
      %v3275 = vadd.f32 %v3092, %v3274
      %v3276 = vpop.f32.mrb[0].mxu0
      %3277 = vmatprep.mubr.bf16.mxu0 0
      %3278 = vmatmul.mubr.bf16.gmra.mrb[0].mxu0 %v3086
      %v3279 = vpop.f32.mrb[0].mxu0
      %v3280 = vadd.f32 %v3092, %v3279
      %v3281 = vpop.f32.mrb[0].mxu0
      %v3282 = vpop.f32.mrb[0].mxu0
      %v3283 = vadd.f32 %v3092, %v3282
      %v3284 = vpop.f32.mrb[0].mxu0
      %3285 = vmatprep.mubr.bf16.mxu0 0
      %3286 = vmatmul.mubr.bf16.gmra.mrb[0].mxu0 %v3087
      %v3287 = vpop.f32.mrb[0].mxu0
      %v3288 = vadd.f32 %v3092, %v3287
      %v3289 = vpop.f32.mrb[0].mxu0
      %v3290 = vpop.f32.mrb[0].mxu0
      %v3291 = vadd.f32 %v3092, %v3290
      %v3292 = vpop.f32.mrb[0].mxu0
      %3293 = vmatprep.mubr.bf16.mxu0 0
      %3294 = vmatmul.mubr.bf16.gmra.mrb[0].mxu0 %v3088
      %v3295 = vpop.f32.mrb[0].mxu0
      %v3296 = vadd.f32 %v3092, %v3295
      %v3297 = vpop.f32.mrb[0].mxu0
      %v3298 = vpop.f32.mrb[0].mxu0
      %v3299 = vadd.f32 %v3092, %v3298
      %v3300 = vpop.f32.mrb[0].mxu0
      %3301 = vdwg.mxu0
      %v3302 = vmul.f32 %v3176, 0.5
      %v3303 = vmul.f32 %v3179, 0.5
      %v3304 = vmul.f32 %v3184, 0.5
      %v3305 = vmul.f32 %v3187, 0.5
      %v3306 = vmul.f32 %v3192, 0.5
      %v3307 = vmul.f32 %v3195, 0.5
      %v3308 = vmul.f32 %v3200, 0.5
      %v3309 = vmul.f32 %v3203, 0.5
      %v3310 = vmul.f32 %v3208, 0.5
      %v3311 = vmul.f32 %v3211, 0.5
      %v3312 = vmul.f32 %v3216, 0.5
      %v3313 = vmul.f32 %v3219, 0.5
      %v3314 = vmul.f32 %v3224, 0.5
      %v3315 = vmul.f32 %v3227, 0.5
      %v3316 = vmul.f32 %v3232, 0.5
      %v3317 = vmul.f32 %v3235, 0.5
      %v3318 = vmul.f32 %v3240, 0.5
      %v3319 = vmul.f32 %v3243, 0.5
      %v3320 = vmul.f32 %v3248, 0.5
      %v3321 = vmul.f32 %v3251, 0.5
      %v3322 = vmul.f32 %v3256, 0.5
      %v3323 = vmul.f32 %v3259, 0.5
      %v3324 = vmul.f32 %v3264, 0.5
      %v3325 = vmul.f32 %v3267, 0.5
      %v3326 = vmul.f32 %v3272, 0.5
      %v3327 = vmul.f32 %v3275, 0.5
      %v3328 = vmul.f32 %v3280, 0.5
      %v3329 = vmul.f32 %v3283, 0.5
      %v3330 = vmul.f32 %v3288, 0.5
      %v3331 = vmul.f32 %v3291, 0.5
      %v3332 = vmul.f32 %v3296, 0.5
      %v3333 = vmul.f32 %v3299, 0.5
      %v3334 = vmul.f32 %v3176, 0.044715
      %v3335 = vmul.f32 %v3179, 0.044715
      %v3336 = vmul.f32 %v3184, 0.044715
      %v3337 = vmul.f32 %v3187, 0.044715
      %v3338 = vmul.f32 %v3192, 0.044715
      %v3339 = vmul.f32 %v3195, 0.044715
      %v3340 = vmul.f32 %v3200, 0.044715
      %v3341 = vmul.f32 %v3203, 0.044715
      %v3342 = vmul.f32 %v3208, 0.044715
      %v3343 = vmul.f32 %v3211, 0.044715
      %v3344 = vmul.f32 %v3216, 0.044715
      %v3345 = vmul.f32 %v3219, 0.044715
      %v3346 = vmul.f32 %v3224, 0.044715
      %v3347 = vmul.f32 %v3227, 0.044715
      %v3348 = vmul.f32 %v3232, 0.044715
      %v3349 = vmul.f32 %v3235, 0.044715
      %v3350 = vmul.f32 %v3240, 0.044715
      %v3351 = vmul.f32 %v3243, 0.044715
      %v3352 = vmul.f32 %v3248, 0.044715
      %v3353 = vmul.f32 %v3251, 0.044715
      %v3354 = vmul.f32 %v3256, 0.044715
      %v3355 = vmul.f32 %v3259, 0.044715
      %v3356 = vmul.f32 %v3264, 0.044715
      %v3357 = vmul.f32 %v3267, 0.044715
      %v3358 = vmul.f32 %v3272, 0.044715
      %v3359 = vmul.f32 %v3275, 0.044715
      %v3360 = vmul.f32 %v3280, 0.044715
      %v3361 = vmul.f32 %v3283, 0.044715
      %v3362 = vmul.f32 %v3288, 0.044715
      %v3363 = vmul.f32 %v3291, 0.044715
      %v3364 = vmul.f32 %v3296, 0.044715
      %v3365 = vmul.f32 %v3299, 0.044715
      %v3366 = vmul.f32 %v3334, %v3176
      %v3367 = vmul.f32 %v3335, %v3179
      %v3368 = vmul.f32 %v3336, %v3184
      %v3369 = vmul.f32 %v3337, %v3187
      %v3370 = vmul.f32 %v3338, %v3192
      %v3371 = vmul.f32 %v3339, %v3195
      %v3372 = vmul.f32 %v3340, %v3200
      %v3373 = vmul.f32 %v3341, %v3203
      %v3374 = vmul.f32 %v3342, %v3208
      %v3375 = vmul.f32 %v3343, %v3211
      %v3376 = vmul.f32 %v3344, %v3216
      %v3377 = vmul.f32 %v3345, %v3219
      %v3378 = vmul.f32 %v3346, %v3224
      %v3379 = vmul.f32 %v3347, %v3227
      %v3380 = vmul.f32 %v3348, %v3232
      %v3381 = vmul.f32 %v3349, %v3235
      %v3382 = vmul.f32 %v3350, %v3240
      %v3383 = vmul.f32 %v3351, %v3243
      %v3384 = vmul.f32 %v3352, %v3248
      %v3385 = vmul.f32 %v3353, %v3251
      %v3386 = vmul.f32 %v3354, %v3256
      %v3387 = vmul.f32 %v3355, %v3259
      %v3388 = vmul.f32 %v3356, %v3264
      %v3389 = vmul.f32 %v3357, %v3267
      %v3390 = vmul.f32 %v3358, %v3272
      %v3391 = vmul.f32 %v3359, %v3275
      %v3392 = vmul.f32 %v3360, %v3280
      %v3393 = vmul.f32 %v3361, %v3283
      %v3394 = vmul.f32 %v3362, %v3288
      %v3395 = vmul.f32 %v3363, %v3291
      %v3396 = vmul.f32 %v3364, %v3296
      %v3397 = vmul.f32 %v3365, %v3299
      %v3398 = vmul.f32 %v3366, %v3176
      %v3399 = vmul.f32 %v3367, %v3179
      %v3400 = vmul.f32 %v3368, %v3184
      %v3401 = vmul.f32 %v3369, %v3187
      %v3402 = vmul.f32 %v3370, %v3192
      %v3403 = vmul.f32 %v3371, %v3195
      %v3404 = vmul.f32 %v3372, %v3200
      %v3405 = vmul.f32 %v3373, %v3203
      %v3406 = vmul.f32 %v3374, %v3208
      %v3407 = vmul.f32 %v3375, %v3211
      %v3408 = vmul.f32 %v3376, %v3216
      %v3409 = vmul.f32 %v3377, %v3219
      %v3410 = vmul.f32 %v3378, %v3224
      %v3411 = vmul.f32 %v3379, %v3227
      %v3412 = vmul.f32 %v3380, %v3232
      %v3413 = vmul.f32 %v3381, %v3235
      %v3414 = vmul.f32 %v3382, %v3240
      %v3415 = vmul.f32 %v3383, %v3243
      %v3416 = vmul.f32 %v3384, %v3248
      %v3417 = vmul.f32 %v3385, %v3251
      %v3418 = vmul.f32 %v3386, %v3256
      %v3419 = vmul.f32 %v3387, %v3259
      %v3420 = vmul.f32 %v3388, %v3264
      %v3421 = vmul.f32 %v3389, %v3267
      %v3422 = vmul.f32 %v3390, %v3272
      %v3423 = vmul.f32 %v3391, %v3275
      %v3424 = vmul.f32 %v3392, %v3280
      %v3425 = vmul.f32 %v3393, %v3283
      %v3426 = vmul.f32 %v3394, %v3288
      %v3427 = vmul.f32 %v3395, %v3291
      %v3428 = vmul.f32 %v3396, %v3296
      %v3429 = vmul.f32 %v3397, %v3299
      %v3430 = vadd.f32 %v3176, %v3398
      %v3431 = vadd.f32 %v3179, %v3399
      %v3432 = vadd.f32 %v3184, %v3400
      %v3433 = vadd.f32 %v3187, %v3401
      %v3434 = vadd.f32 %v3192, %v3402
      %v3435 = vadd.f32 %v3195, %v3403
      %v3436 = vadd.f32 %v3200, %v3404
      %v3437 = vadd.f32 %v3203, %v3405
      %v3438 = vadd.f32 %v3208, %v3406
      %v3439 = vadd.f32 %v3211, %v3407
      %v3440 = vadd.f32 %v3216, %v3408
      %v3441 = vadd.f32 %v3219, %v3409
      %v3442 = vadd.f32 %v3224, %v3410
      %v3443 = vadd.f32 %v3227, %v3411
      %v3444 = vadd.f32 %v3232, %v3412
      %v3445 = vadd.f32 %v3235, %v3413
      %v3446 = vadd.f32 %v3240, %v3414
      %v3447 = vadd.f32 %v3243, %v3415
      %v3448 = vadd.f32 %v3248, %v3416
      %v3449 = vadd.f32 %v3251, %v3417
      %v3450 = vadd.f32 %v3256, %v3418
      %v3451 = vadd.f32 %v3259, %v3419
      %v3452 = vadd.f32 %v3264, %v3420
      %v3453 = vadd.f32 %v3267, %v3421
      %v3454 = vadd.f32 %v3272, %v3422
      %v3455 = vadd.f32 %v3275, %v3423
      %v3456 = vadd.f32 %v3280, %v3424
      %v3457 = vadd.f32 %v3283, %v3425
      %v3458 = vadd.f32 %v3288, %v3426
      %v3459 = vadd.f32 %v3291, %v3427
      %v3460 = vadd.f32 %v3296, %v3428
      %v3461 = vadd.f32 %v3299, %v3429
      %v3462 = vmul.f32 %v3430, 0.7978846
      %v3463 = vmul.f32 %v3431, 0.7978846
      %v3464 = vmul.f32 %v3432, 0.7978846
      %v3465 = vmul.f32 %v3433, 0.7978846
      %v3466 = vmul.f32 %v3434, 0.7978846
      %v3467 = vmul.f32 %v3435, 0.7978846
      %v3468 = vmul.f32 %v3436, 0.7978846
      %v3469 = vmul.f32 %v3437, 0.7978846
      %v3470 = vmul.f32 %v3438, 0.7978846
      %v3471 = vmul.f32 %v3439, 0.7978846
      %v3472 = vmul.f32 %v3440, 0.7978846
      %v3473 = vmul.f32 %v3441, 0.7978846
      %v3474 = vmul.f32 %v3442, 0.7978846
      %v3475 = vmul.f32 %v3443, 0.7978846
      %v3476 = vmul.f32 %v3444, 0.7978846
      %v3477 = vmul.f32 %v3445, 0.7978846
      %v3478 = vmul.f32 %v3446, 0.7978846
      %v3479 = vmul.f32 %v3447, 0.7978846
      %v3480 = vmul.f32 %v3448, 0.7978846
      %v3481 = vmul.f32 %v3449, 0.7978846
      %v3482 = vmul.f32 %v3450, 0.7978846
      %v3483 = vmul.f32 %v3451, 0.7978846
      %v3484 = vmul.f32 %v3452, 0.7978846
      %v3485 = vmul.f32 %v3453, 0.7978846
      %v3486 = vmul.f32 %v3454, 0.7978846
      %v3487 = vmul.f32 %v3455, 0.7978846
      %v3488 = vmul.f32 %v3456, 0.7978846
      %v3489 = vmul.f32 %v3457, 0.7978846
      %v3490 = vmul.f32 %v3458, 0.7978846
      %v3491 = vmul.f32 %v3459, 0.7978846
      %v3492 = vmul.f32 %v3460, 0.7978846
      %v3493 = vmul.f32 %v3461, 0.7978846
      %v3494 = vtanh.pop %v3462
      %v3495 = vtanh.pop %v3463
      %v3496 = vtanh.pop %v3464
      %v3497 = vtanh.pop %v3465
      %v3498 = vtanh.pop %v3466
      %v3499 = vtanh.pop %v3467
      %v3500 = vtanh.pop %v3468
      %v3501 = vtanh.pop %v3469
      %v3502 = vtanh.pop %v3470
      %v3503 = vtanh.pop %v3471
      %v3504 = vtanh.pop %v3472
      %v3505 = vtanh.pop %v3473
      %v3506 = vtanh.pop %v3474
      %v3507 = vtanh.pop %v3475
      %v3508 = vtanh.pop %v3476
      %v3509 = vtanh.pop %v3477
      %v3510 = vtanh.pop %v3478
      %v3511 = vtanh.pop %v3479
      %v3512 = vtanh.pop %v3480
      %v3513 = vtanh.pop %v3481
      %v3514 = vtanh.pop %v3482
      %v3515 = vtanh.pop %v3483
      %v3516 = vtanh.pop %v3484
      %v3517 = vtanh.pop %v3485
      %v3518 = vtanh.pop %v3486
      %v3519 = vtanh.pop %v3487
      %v3520 = vtanh.pop %v3488
      %v3521 = vtanh.pop %v3489
      %v3522 = vtanh.pop %v3490
      %v3523 = vtanh.pop %v3491
      %v3524 = vtanh.pop %v3492
      %v3525 = vtanh.pop %v3493
      %v3526 = vadd.f32 %v3494, 1.0
      %v3527 = vadd.f32 %v3495, 1.0
      %v3528 = vadd.f32 %v3496, 1.0
      %v3529 = vadd.f32 %v3497, 1.0
      %v3530 = vadd.f32 %v3498, 1.0
      %v3531 = vadd.f32 %v3499, 1.0
      %v3532 = vadd.f32 %v3500, 1.0
      %v3533 = vadd.f32 %v3501, 1.0
      %v3534 = vadd.f32 %v3502, 1.0
      %v3535 = vadd.f32 %v3503, 1.0
      %v3536 = vadd.f32 %v3504, 1.0
      %v3537 = vadd.f32 %v3505, 1.0
      %v3538 = vadd.f32 %v3506, 1.0
      %v3539 = vadd.f32 %v3507, 1.0
      %v3540 = vadd.f32 %v3508, 1.0
      %v3541 = vadd.f32 %v3509, 1.0
      %v3542 = vadd.f32 %v3510, 1.0
      %v3543 = vadd.f32 %v3511, 1.0
      %v3544 = vadd.f32 %v3512, 1.0
      %v3545 = vadd.f32 %v3513, 1.0
      %v3546 = vadd.f32 %v3514, 1.0
      %v3547 = vadd.f32 %v3515, 1.0
      %v3548 = vadd.f32 %v3516, 1.0
      %v3549 = vadd.f32 %v3517, 1.0
      %v3550 = vadd.f32 %v3518, 1.0
      %v3551 = vadd.f32 %v3519, 1.0
      %v3552 = vadd.f32 %v3520, 1.0
      %v3553 = vadd.f32 %v3521, 1.0
      %v3554 = vadd.f32 %v3522, 1.0
      %v3555 = vadd.f32 %v3523, 1.0
      %v3556 = vadd.f32 %v3524, 1.0
      %v3557 = vadd.f32 %v3525, 1.0
      %v3558 = vmul.f32 %v3302, %v3526
      %v3559 = vmul.f32 %v3303, %v3527
      %v3560 = vmul.f32 %v3304, %v3528
      %v3561 = vmul.f32 %v3305, %v3529
      %v3562 = vmul.f32 %v3306, %v3530
      %v3563 = vmul.f32 %v3307, %v3531
      %v3564 = vmul.f32 %v3308, %v3532
      %v3565 = vmul.f32 %v3309, %v3533
      %v3566 = vmul.f32 %v3310, %v3534
      %v3567 = vmul.f32 %v3311, %v3535
      %v3568 = vmul.f32 %v3312, %v3536
      %v3569 = vmul.f32 %v3313, %v3537
      %v3570 = vmul.f32 %v3314, %v3538
      %v3571 = vmul.f32 %v3315, %v3539
      %v3572 = vmul.f32 %v3316, %v3540
      %v3573 = vmul.f32 %v3317, %v3541
      %v3574 = vmul.f32 %v3318, %v3542
      %v3575 = vmul.f32 %v3319, %v3543
      %v3576 = vmul.f32 %v3320, %v3544
      %v3577 = vmul.f32 %v3321, %v3545
      %v3578 = vmul.f32 %v3322, %v3546
      %v3579 = vmul.f32 %v3323, %v3547
      %v3580 = vmul.f32 %v3324, %v3548
      %v3581 = vmul.f32 %v3325, %v3549
      %v3582 = vmul.f32 %v3326, %v3550
      %v3583 = vmul.f32 %v3327, %v3551
      %v3584 = vmul.f32 %v3328, %v3552
      %v3585 = vmul.f32 %v3329, %v3553
      %v3586 = vmul.f32 %v3330, %v3554
      %v3587 = vmul.f32 %v3331, %v3555
      %v3588 = vmul.f32 %v3332, %v3556
      %v3589 = vmul.f32 %v3333, %v3557
      %s3590 = scalar_lea.vmem %s1, 320
      %v3591 = vld [vmem:[%s3590] sm:$0xf]
      %v3592 = vld [vmem:[%s3590 + $0x4] sm:$0xf]
      %v3593 = vld [vmem:[%s3590 + $0x8] sm:$0xf]
      %v3594 = vld [vmem:[%s3590 + $0xc] sm:$0xf]
      %v3595 = vld [vmem:[%s3590 + $0x10] sm:$0xf]
      %v3596 = vld [vmem:[%s3590 + $0x14] sm:$0xf]
      %v3597 = vld [vmem:[%s3590 + $0x18] sm:$0xf]
      %v3598 = vld [vmem:[%s3590 + $0x1c] sm:$0xf]
      %v3599 = vld [vmem:[%s3590 + $0x20] sm:$0xf]
      %v3600 = vld [vmem:[%s3590 + $0x24] sm:$0xf]
      %v3601 = vld [vmem:[%s3590 + $0x28] sm:$0xf]
      %v3602 = vld [vmem:[%s3590 + $0x2c] sm:$0xf]
      %v3603 = vld [vmem:[%s3590 + $0x30] sm:$0xf]
      %v3604 = vld [vmem:[%s3590 + $0x34] sm:$0xf]
      %v3605 = vld [vmem:[%s3590 + $0x38] sm:$0xf]
      %v3606 = vld [vmem:[%s3590 + $0x3c] sm:$0xf]
      %v3607 = vpack.c.bf16 %v3559, %v3558
      %v3608 = vpack.c.bf16 %v3561, %v3560
      %v3609 = vpack.c.bf16 %v3563, %v3562
      %v3610 = vpack.c.bf16 %v3565, %v3564
      %v3611 = vpack.c.bf16 %v3567, %v3566
      %v3612 = vpack.c.bf16 %v3569, %v3568
      %v3613 = vpack.c.bf16 %v3571, %v3570
      %v3614 = vpack.c.bf16 %v3573, %v3572
      %v3615 = vpack.c.bf16 %v3575, %v3574
      %v3616 = vpack.c.bf16 %v3577, %v3576
      %v3617 = vpack.c.bf16 %v3579, %v3578
      %v3618 = vpack.c.bf16 %v3581, %v3580
      %v3619 = vpack.c.bf16 %v3583, %v3582
      %v3620 = vpack.c.bf16 %v3585, %v3584
      %v3621 = vpack.c.bf16 %v3587, %v3586
      %v3622 = vpack.c.bf16 %v3589, %v3588
      %v3623 = vlaneseq
      %v3624 = vshrl.u32 %v3623, 7
      %v3625 = vsub.s32 7, %v3624
      %v3626 = vrot.slane %v202, %v3625
      %v3643 = vunpack.c.l.b16 %v3591
      %v3644 = vunpack.c.l.b16 %v3592
      %v3645 = vunpack.c.l.b16 %v3593
      %v3646 = vunpack.c.l.b16 %v3594
      %v3647 = vunpack.c.l.b16 %v3595
      %v3648 = vunpack.c.l.b16 %v3596
      %v3649 = vunpack.c.l.b16 %v3597
      %v3650 = vunpack.c.l.b16 %v3598
      %v3651 = vunpack.c.l.b16 %v3599
      %v3652 = vunpack.c.l.b16 %v3600
      %v3653 = vunpack.c.l.b16 %v3601
      %v3654 = vunpack.c.l.b16 %v3602
      %v3655 = vunpack.c.l.b16 %v3603
      %v3656 = vunpack.c.l.b16 %v3604
      %v3657 = vunpack.c.l.b16 %v3605
      %v3658 = vunpack.c.l.b16 %v3606
      %v3659 = vpack.c.b16 %v3644, %v3643
      %v3660 = vpack.c.b16 %v3646, %v3645
      %v3661 = vpack.c.b16 %v3648, %v3647
      %v3662 = vpack.c.b16 %v3650, %v3649
      %v3663 = vpack.c.b16 %v3652, %v3651
      %v3664 = vpack.c.b16 %v3654, %v3653
      %v3665 = vpack.c.b16 %v3656, %v3655
      %v3666 = vpack.c.b16 %v3658, %v3657
      %3675 = vmatprep.subr.bf16.mxu0 0
      %3676 = vmatpush1.bf16.msra.mxu0 %v3659
      %3677 = vmatprep.subr.bf16.mxu0 0
      %3678 = vmatpush1.bf16.msra.mxu0 %v3660
      %3679 = vmatprep.subr.bf16.mxu0 0
      %3680 = vmatpush1.bf16.msra.mxu0 %v3661
      %3681 = vmatprep.subr.bf16.mxu0 0
      %3682 = vmatpush1.bf16.msra.mxu0 %v3662
      %3683 = vmatprep.subr.bf16.mxu0 0
      %3684 = vmatpush1.bf16.msra.mxu0 %v3663
      %3685 = vmatprep.subr.bf16.mxu0 0
      %3686 = vmatpush1.bf16.msra.mxu0 %v3664
      %3687 = vmatprep.subr.bf16.mxu0 0
      %3688 = vmatpush1.bf16.msra.mxu0 %v3665
      %3689 = vmatprep.subr.bf16.mxu0 0
      %3690 = vmatpush1.bf16.msra.mxu0 %v3666
      %3691 = vmatprep.subr.bf16.mxu0 0
      %3692 = vmatpush1.bf16.msra.mxu0 0
      %3693 = vmatprep.subr.bf16.mxu0 0
      %3694 = vmatpush1.bf16.msra.mxu0 0
      %3695 = vmatprep.subr.bf16.mxu0 0
      %3696 = vmatpush1.bf16.msra.mxu0 0
      %3697 = vmatprep.subr.bf16.mxu0 0
      %3698 = vmatpush1.bf16.msra.mxu0 0
      %3699 = vmatprep.subr.bf16.mxu0 0
      %3700 = vmatpush1.bf16.msra.mxu0 0
      %3701 = vmatprep.subr.bf16.mxu0 0
      %3702 = vmatpush1.bf16.msra.mxu0 0
      %3703 = vmatprep.subr.bf16.mxu0 0
      %3704 = vmatpush1.bf16.msra.mxu0 0
      %3705 = vmatprep.subr.bf16.mxu0 0
      %3706 = vmatpush1.bf16.msra.mxu0 0
      %3707 = vmatprep.mubr.bf16.mxu0 0
      %3708 = vmatmul.mubr.bf16.gmra.mrb[0].mxu0 %v3607
      %v3709 = vpop.f32.mrb[0].mxu0
      %v3710 = vadd.f32 %v3626, %v3709
      %v3711 = vpop.f32.mrb[0].mxu0
      %v3712 = vpop.f32.mrb[0].mxu0
      %v3713 = vadd.f32 %v3626, %v3712
      %v3714 = vpop.f32.mrb[0].mxu0
      %3715 = vmatprep.mubr.bf16.mxu0 0
      %3716 = vmatmul.mubr.bf16.gmra.mrb[0].mxu0 %v3608
      %v3717 = vpop.f32.mrb[0].mxu0
      %v3718 = vadd.f32 %v3626, %v3717
      %v3719 = vpop.f32.mrb[0].mxu0
      %v3720 = vpop.f32.mrb[0].mxu0
      %v3721 = vadd.f32 %v3626, %v3720
      %v3722 = vpop.f32.mrb[0].mxu0
      %3723 = vmatprep.mubr.bf16.mxu0 0
      %3724 = vmatmul.mubr.bf16.gmra.mrb[0].mxu0 %v3609
      %v3725 = vpop.f32.mrb[0].mxu0
      %v3726 = vadd.f32 %v3626, %v3725
      %v3727 = vpop.f32.mrb[0].mxu0
      %v3728 = vpop.f32.mrb[0].mxu0
      %v3729 = vadd.f32 %v3626, %v3728
      %v3730 = vpop.f32.mrb[0].mxu0
      %3731 = vmatprep.mubr.bf16.mxu0 0
      %3732 = vmatmul.mubr.bf16.gmra.mrb[0].mxu0 %v3610
      %v3733 = vpop.f32.mrb[0].mxu0
      %v3734 = vadd.f32 %v3626, %v3733
      %v3735 = vpop.f32.mrb[0].mxu0
      %v3736 = vpop.f32.mrb[0].mxu0
      %v3737 = vadd.f32 %v3626, %v3736
      %v3738 = vpop.f32.mrb[0].mxu0
      %3739 = vmatprep.mubr.bf16.mxu0 0
      %3740 = vmatmul.mubr.bf16.gmra.mrb[0].mxu0 %v3611
      %v3741 = vpop.f32.mrb[0].mxu0
      %v3742 = vadd.f32 %v3626, %v3741
      %v3743 = vpop.f32.mrb[0].mxu0
      %v3744 = vpop.f32.mrb[0].mxu0
      %v3745 = vadd.f32 %v3626, %v3744
      %v3746 = vpop.f32.mrb[0].mxu0
      %3747 = vmatprep.mubr.bf16.mxu0 0
      %3748 = vmatmul.mubr.bf16.gmra.mrb[0].mxu0 %v3612
      %v3749 = vpop.f32.mrb[0].mxu0
      %v3750 = vadd.f32 %v3626, %v3749
      %v3751 = vpop.f32.mrb[0].mxu0
      %v3752 = vpop.f32.mrb[0].mxu0
      %v3753 = vadd.f32 %v3626, %v3752
      %v3754 = vpop.f32.mrb[0].mxu0
      %3755 = vmatprep.mubr.bf16.mxu0 0
      %3756 = vmatmul.mubr.bf16.gmra.mrb[0].mxu0 %v3613
      %v3757 = vpop.f32.mrb[0].mxu0
      %v3758 = vadd.f32 %v3626, %v3757
      %v3759 = vpop.f32.mrb[0].mxu0
      %v3760 = vpop.f32.mrb[0].mxu0
      %v3761 = vadd.f32 %v3626, %v3760
      %v3762 = vpop.f32.mrb[0].mxu0
      %3763 = vmatprep.mubr.bf16.mxu0 0
      %3764 = vmatmul.mubr.bf16.gmra.mrb[0].mxu0 %v3614
      %v3765 = vpop.f32.mrb[0].mxu0
      %v3766 = vadd.f32 %v3626, %v3765
      %v3767 = vpop.f32.mrb[0].mxu0
      %v3768 = vpop.f32.mrb[0].mxu0
      %v3769 = vadd.f32 %v3626, %v3768
      %v3770 = vpop.f32.mrb[0].mxu0
      %3771 = vmatprep.mubr.bf16.mxu0 0
      %3772 = vmatmul.mubr.bf16.gmra.mrb[0].mxu0 %v3615
      %v3773 = vpop.f32.mrb[0].mxu0
      %v3774 = vadd.f32 %v3626, %v3773
      %v3775 = vpop.f32.mrb[0].mxu0
      %v3776 = vpop.f32.mrb[0].mxu0
      %v3777 = vadd.f32 %v3626, %v3776
      %v3778 = vpop.f32.mrb[0].mxu0
      %3779 = vmatprep.mubr.bf16.mxu0 0
      %3780 = vmatmul.mubr.bf16.gmra.mrb[0].mxu0 %v3616
      %v3781 = vpop.f32.mrb[0].mxu0
      %v3782 = vadd.f32 %v3626, %v3781
      %v3783 = vpop.f32.mrb[0].mxu0
      %v3784 = vpop.f32.mrb[0].mxu0
      %v3785 = vadd.f32 %v3626, %v3784
      %v3786 = vpop.f32.mrb[0].mxu0
      %3787 = vmatprep.mubr.bf16.mxu0 0
      %3788 = vmatmul.mubr.bf16.gmra.mrb[0].mxu0 %v3617
      %v3789 = vpop.f32.mrb[0].mxu0
      %v3790 = vadd.f32 %v3626, %v3789
      %v3791 = vpop.f32.mrb[0].mxu0
      %v3792 = vpop.f32.mrb[0].mxu0
      %v3793 = vadd.f32 %v3626, %v3792
      %v3794 = vpop.f32.mrb[0].mxu0
      %3795 = vmatprep.mubr.bf16.mxu0 0
      %3796 = vmatmul.mubr.bf16.gmra.mrb[0].mxu0 %v3618
      %v3797 = vpop.f32.mrb[0].mxu0
      %v3798 = vadd.f32 %v3626, %v3797
      %v3799 = vpop.f32.mrb[0].mxu0
      %v3800 = vpop.f32.mrb[0].mxu0
      %v3801 = vadd.f32 %v3626, %v3800
      %v3802 = vpop.f32.mrb[0].mxu0
      %3803 = vmatprep.mubr.bf16.mxu0 0
      %3804 = vmatmul.mubr.bf16.gmra.mrb[0].mxu0 %v3619
      %v3805 = vpop.f32.mrb[0].mxu0
      %v3806 = vadd.f32 %v3626, %v3805
      %v3807 = vpop.f32.mrb[0].mxu0
      %v3808 = vpop.f32.mrb[0].mxu0
      %v3809 = vadd.f32 %v3626, %v3808
      %v3810 = vpop.f32.mrb[0].mxu0
      %3811 = vmatprep.mubr.bf16.mxu0 0
      %3812 = vmatmul.mubr.bf16.gmra.mrb[0].mxu0 %v3620
      %v3813 = vpop.f32.mrb[0].mxu0
      %v3814 = vadd.f32 %v3626, %v3813
      %v3815 = vpop.f32.mrb[0].mxu0
      %v3816 = vpop.f32.mrb[0].mxu0
      %v3817 = vadd.f32 %v3626, %v3816
      %v3818 = vpop.f32.mrb[0].mxu0
      %3819 = vmatprep.mubr.bf16.mxu0 0
      %3820 = vmatmul.mubr.bf16.gmra.mrb[0].mxu0 %v3621
      %v3821 = vpop.f32.mrb[0].mxu0
      %v3822 = vadd.f32 %v3626, %v3821
      %v3823 = vpop.f32.mrb[0].mxu0
      %v3824 = vpop.f32.mrb[0].mxu0
      %v3825 = vadd.f32 %v3626, %v3824
      %v3826 = vpop.f32.mrb[0].mxu0
      %3827 = vmatprep.mubr.bf16.mxu0 0
      %3828 = vmatmul.mubr.bf16.gmra.mrb[0].mxu0 %v3622
      %v3829 = vpop.f32.mrb[0].mxu0
      %v3830 = vadd.f32 %v3626, %v3829
      %v3831 = vpop.f32.mrb[0].mxu0
      %v3832 = vpop.f32.mrb[0].mxu0
      %v3833 = vadd.f32 %v3626, %v3832
      %v3834 = vpop.f32.mrb[0].mxu0
      %3835 = vdwg.mxu0
      %v3836 = vadd.f32 %v3710, %v1956
      %v3837 = vadd.f32 %v3713, %v1957
      %v3838 = vadd.f32 %v3718, %v1958
      %v3839 = vadd.f32 %v3721, %v1959
      %v3840 = vadd.f32 %v3726, %v1960
      %v3841 = vadd.f32 %v3729, %v1961
      %v3842 = vadd.f32 %v3734, %v1962
      %v3843 = vadd.f32 %v3737, %v1963
      %v3844 = vadd.f32 %v3742, %v1964
      %v3845 = vadd.f32 %v3745, %v1965
      %v3846 = vadd.f32 %v3750, %v1966
      %v3847 = vadd.f32 %v3753, %v1967
      %v3848 = vadd.f32 %v3758, %v1968
      %v3849 = vadd.f32 %v3761, %v1969
      %v3850 = vadd.f32 %v3766, %v1970
      %v3851 = vadd.f32 %v3769, %v1971
      %v3852 = vadd.f32 %v3774, %v1972
      %v3853 = vadd.f32 %v3777, %v1973
      %v3854 = vadd.f32 %v3782, %v1974
      %v3855 = vadd.f32 %v3785, %v1975
      %v3856 = vadd.f32 %v3790, %v1976
      %v3857 = vadd.f32 %v3793, %v1977
      %v3858 = vadd.f32 %v3798, %v1978
      %v3859 = vadd.f32 %v3801, %v1979
      %v3860 = vadd.f32 %v3806, %v1980
      %v3861 = vadd.f32 %v3809, %v1981
      %v3862 = vadd.f32 %v3814, %v1982
      %v3863 = vadd.f32 %v3817, %v1983
      %v3864 = vadd.f32 %v3822, %v1984
      %v3865 = vadd.f32 %v3825, %v1985
      %v3866 = vadd.f32 %v3830, %v1986
      %v3867 = vadd.f32 %v3833, %v1987
      %3868 = vst [vmem:[%s199] sm:$0xff] %v3836
      %3869 = vst [vmem:[%s199 + $0x8] sm:$0xff] %v3837
      %3870 = vst [vmem:[%s199 + $0x10] sm:$0xff] %v3838
      %3871 = vst [vmem:[%s199 + $0x18] sm:$0xff] %v3839
      %3872 = vst [vmem:[%s199 + $0x20] sm:$0xff] %v3840
      %3873 = vst [vmem:[%s199 + $0x28] sm:$0xff] %v3841
      %3874 = vst [vmem:[%s199 + $0x30] sm:$0xff] %v3842
      %3875 = vst [vmem:[%s199 + $0x38] sm:$0xff] %v3843
      %3876 = vst [vmem:[%s199 + $0x40] sm:$0xff] %v3844
      %3877 = vst [vmem:[%s199 + $0x48] sm:$0xff] %v3845
      %3878 = vst [vmem:[%s199 + $0x50] sm:$0xff] %v3846
      %3879 = vst [vmem:[%s199 + $0x58] sm:$0xff] %v3847
      %3880 = vst [vmem:[%s199 + $0x60] sm:$0xff] %v3848
      %3881 = vst [vmem:[%s199 + $0x68] sm:$0xff] %v3849
      %3882 = vst [vmem:[%s199 + $0x70] sm:$0xff] %v3850
      %3883 = vst [vmem:[%s199 + $0x78] sm:$0xff] %v3851
      %3884 = vst [vmem:[%s199 + $0x80] sm:$0xff] %v3852
      %3885 = vst [vmem:[%s199 + $0x88] sm:$0xff] %v3853
      %3886 = vst [vmem:[%s199 + $0x90] sm:$0xff] %v3854
      %3887 = vst [vmem:[%s199 + $0x98] sm:$0xff] %v3855
      %3888 = vst [vmem:[%s199 + $0xa0] sm:$0xff] %v3856
      %3889 = vst [vmem:[%s199 + $0xa8] sm:$0xff] %v3857
      %3890 = vst [vmem:[%s199 + $0xb0] sm:$0xff] %v3858
      %3891 = vst [vmem:[%s199 + $0xb8] sm:$0xff] %v3859
      %3892 = vst [vmem:[%s199 + $0xc0] sm:$0xff] %v3860
      %3893 = vst [vmem:[%s199 + $0xc8] sm:$0xff] %v3861
      %3894 = vst [vmem:[%s199 + $0xd0] sm:$0xff] %v3862
      %3895 = vst [vmem:[%s199 + $0xd8] sm:$0xff] %v3863
      %3896 = vst [vmem:[%s199 + $0xe0] sm:$0xff] %v3864
      %3897 = vst [vmem:[%s199 + $0xe8] sm:$0xff] %v3865
      %3898 = vst [vmem:[%s199 + $0xf0] sm:$0xff] %v3866
      %3899 = vst [vmem:[%s199 + $0xf8] sm:$0xff] %v3867
      %s3900 = smul.u32 32, %s15
      %p3901 = scmp.lt.s32.totalorder %s3900, 63
      %s3902 = scalar_select %p3901, %s3900, 63
      %s3903 = smul.addr %s3902, 8
      %s3904 = scalar_lea.vmem %s4, %s3903
      // Predicated region
      $region37: #{vae_forward.1} parent=35 // pred_check
        %p3905 = pneg %p122
      $region38: #{vae_forward.1} parent=35 // pred_check_branch
        %3907 = sbr.rel (%p3905) target = $region40
      $region39: #{vae_forward.1} parent=35 // pred_region
        %s3908 = smul.u32 32, %s15
      $region40: #{vae_forward.1} parent=35 // pred_fallthru
        _
    $region36: #{vae_forward.1} parent=5 // pred_fallthru
      _
    %p3909 = scmp.le.s32.totalorder 2, %s10
    // Predicated region
    $region41: #{vae_forward.1} parent=5 // pred_check
      %p3910 = pneg %p3909
    $region42: #{vae_forward.1} parent=5 // pred_check_branch
      %3912 = sbr.rel (%p3910) target = $region44
    $region43: #{vae_forward.1} parent=5 // pred_region
      %s3913 = ssub.s32 %s10, 2
      // Predicated region
      $region45: #{vae_forward.1} parent=43 // pred_check
        %p3914 = pneg %p128
      $region46: #{vae_forward.1} parent=43 // pred_check_branch
        %3916 = sbr.rel (%p3914) target = $region48
      $region47: #{vae_forward.1} parent=43 // pred_region
        %s3917 = smul.u32 32, %s16
        %p3918 = scmp.lt.s32.totalorder %s3917, 63
        %s3919 = scalar_select %p3918, %s3917, 63
        %s3920 = smul.addr %s3919, 8
        %s3921 = scalar_lea.vmem %s4, %s3920
      $region48: #{vae_forward.1} parent=43 // pred_fallthru
        _
    $region44: #{vae_forward.1} parent=5 // pred_fallthru
      _
  $region6: #{vae_forward.1} parent=0 // loop_footer
    %s14 = sadd.s32 1, %s10
  $region7: #{vae_forward.1} parent=0 // loop_footer_branch
    %9 = sbr.rel target = $region3
  $region8: #{vae_forward.1} parent=0 // loop_exit
    _

</llo_original>
